<compile_context>
chip_gen: v6e
topology: v6e:2x2x1
jax: 0.10.0
libtpu: 0.0.40
codegen_flags: <defaults>
</compile_context>

<pallas_src>
import numpy as np
import jax
import jax.numpy as jnp
from jax import lax
from jax.experimental import pallas as pl
from jax.experimental.pallas import tpu as pltpu


FACTOR = 2
BLUR_KERNEL_1D = (1.0, 3.0, 3.0, 1.0)   # default StyleGAN2 resample kernel


def _make_blur_kernel(k):
    """Same as mmgen's _make_kernel: outer product + normalize."""
    k = np.asarray(k, dtype=np.float32)
    if k.ndim == 1:
        k = k[None, :] * k[:, None]
    return k / k.sum()


def _polyphase_plan(kernel2d, factor):
    """Compile-time polyphase decomposition of upfirdn2d(up=factor, down=1).

    Returns ({(py, px): [(dy, dx, weight), ...]}, (pad_t, pad_b, pad_l, pad_r))
    such that out[f*a+py, f*b+px] = sum_terms weight * x[a+dy, b+dx]
    (x implicitly zero-padded).
    """
    kh, kw = kernel2d.shape
    p = kh - factor
    pad0 = (p + 1) // 2 + factor - 1
    kflip = kernel2d[::-1, ::-1]

    def axis_taps(phase, klen):
        taps = []
        for i in range(klen):
            if (phase + i - pad0) % factor == 0:
                taps.append(((phase + i - pad0) // factor, i))
        return taps

    ytaps = [axis_taps(py, kh) for py in range(factor)]
    xtaps = [axis_taps(px, kw) for px in range(factor)]

    dys = [d for taps in ytaps for (d, _) in taps] or [0]
    dxs = [d for taps in xtaps for (d, _) in taps] or [0]
    pads = (max(0, -min(dys)), max(0, max(dys)),
            max(0, -min(dxs)), max(0, max(dxs)))

    phase_terms = {}
    for py in range(factor):
        for px in range(factor):
            terms = []
            for (dy, iy) in ytaps[py]:
                for (dx, jx) in xtaps[px]:
                    terms.append((dy, dx, float(kflip[iy, jx])))
            phase_terms[(py, px)] = terms
    return phase_terms, pads


def _planes_per_block(nc, h, w, factor, itemsize):
    """Largest divisor of nc whose block comfortably fits the VMEM budget."""
    lane = 128
    fw = factor * w
    ow = factor * fw
    w_pad = -(-w // lane) * lane
    fw_pad = -(-fw // lane) * lane
    ow_pad = -(-ow // lane) * lane
    per_plane = (
        2 * h * w_pad * itemsize          # input block (double-buffered)
        + 2 * h * ow_pad * itemsize       # output block (double-buffered)
        + 12 * h * w_pad * 4              # padded tile + shifted views (f32)
        + 2 * factor * h * fw_pad * 4     # per-parity interleave results (f32)
        + factor * w * fw_pad * 4         # broadcast 0/1 selection matrices
    )
    budget = 10 * 1024 * 1024             # stay well inside scoped VMEM limits
    cap = int(max(1, budget // max(per_plane, 1)))
    for b in range(min(nc, cap), 0, -1):
        if nc % b == 0:
            return b
    return 1


def _build_fir_kernel(phase_terms, factor, pads, H, W):
    """Kernel factory: taps / offsets baked in as Python constants."""
    pad_t, pad_b, pad_l, pad_r = pads
    Wp = W + pad_l + pad_r
    fW = factor * W

    offsets = sorted({(dy, dx)
                      for terms in phase_terms.values()
                      for (dy, dx, wgt) in terms if wgt != 0.0})

    def kernel(x_ref, g_ref, o_ref):
        B = x_ref.shape[0]
        x = x_ref[...].astype(jnp.float32)                    # (B, H, W), f32

        # ---- fused zero-padding (VMEM values only, no HBM intermediate) ----
        if pad_l or pad_r:
            parts = []
            if pad_l:
                parts.append(jnp.zeros((B, H, pad_l), jnp.float32))
            parts.append(x)
            if pad_r:
                parts.append(jnp.zeros((B, H, pad_r), jnp.float32))
            x = jnp.concatenate(parts, axis=2)
        if pad_t or pad_b:
            parts = []
            if pad_t:
                parts.append(jnp.zeros((B, pad_t, Wp), jnp.float32))
            parts.append(x)
            if pad_b:
                parts.append(jnp.zeros((B, pad_b, Wp), jnp.float32))
            x = jnp.concatenate(parts, axis=1)                # (B, Hp, Wp)

        # ---- shifted views shared by all phases (static offsets) ----
        shifted = {
            (dy, dx): x[:, dy + pad_t: dy + pad_t + H,
                        dx + pad_l: dx + pad_l + W]
            for (dy, dx) in offsets
        }

        # ---- lane-interleave selection matrices, broadcast once (hoisted) ----
        gsel = [jnp.broadcast_to(g_ref[px], (B, W, fW)) for px in range(factor)]

        rows = []
        for py in range(factor):
            row = None
            for px in range(factor):
                prods = [shifted[(dy, dx)] * wgt
                         for (dy, dx, wgt) in phase_terms[(py, px)]
                         if wgt != 0.0]
                if not prods:
                    continue
                # tree-sum the taps (short dependency chains for the VALU)
                while len(prods) > 1:
                    nxt = [prods[i] + prods[i + 1]
                           for i in range(0, len(prods) - 1, 2)]
                    if len(prods) % 2:
                        nxt.append(prods[-1])
                    prods = nxt
                phase = prods[0]                              # (B, H, W) f32
                # scatter phase px into columns factor*b + px via an exact
                # 0/1 matmul on the MXU (overlaps with the VPU FIR work).
                contrib = lax.dot_general(
                    phase, gsel[px],
                    dimension_numbers=(((2,), (1,)), ((0,), (0,))),
                    preferred_element_type=jnp.float32)       # (B, H, fW)
                row = contrib if row is None else row + contrib
            if row is None:
                row = jnp.zeros((B, H, fW), jnp.float32)
            rows.append(row)

        # Concatenating the `factor` row-parities along the lane dim gives a
        # (B, H, factor*fW) block whose linear layout equals (B, fH, fW):
        # one dense, unmasked store per block.
        o_ref[...] = jnp.concatenate(rows, axis=-1).astype(o_ref.dtype)

    return kernel


def upsample_upfirdn(x, kernel2d, factor=FACTOR):
    """UpsampleUpFIRDn.forward: (N, C, H, W) -> (N, C, H*factor, W*factor)."""
    N, C, H, W = x.shape
    kernel2d = np.asarray(kernel2d, dtype=np.float32)
    kh, kw = kernel2d.shape
    p = kh - factor
    pad0 = (p + 1) // 2 + factor - 1
    pad1 = p // 2
    OH = H * factor + pad0 + pad1 - kh + 1
    OW = W * factor + pad0 + pad1 - kw + 1
    # TODO(synk): non-square blur kernels (kh != kw) break the uniform
    # polyphase layout; StyleGAN2 only uses square kernels.
    assert OH == factor * H and OW == factor * W, (OH, OW)

    phase_terms, pads = _polyphase_plan(kernel2d, factor)
    NC = N * C
    fW = factor * W
    ow = factor * fW                                   # kernel-side row width

    itemsize = jnp.dtype(x.dtype).itemsize
    B = _planes_per_block(NC, H, W, factor, itemsize)

    # constant 0/1 lane-interleave matrices: G[px][c, factor*c + px] = 1
    G = np.zeros((factor, W, fW), dtype=np.float32)
    for px in range(factor):
        G[px, np.arange(W), factor * np.arange(W) + px] = 1.0

    kern = _build_fir_kernel(phase_terms, factor, pads, H, W)

    out = pl.pallas_call(
        kern,
        out_shape=jax.ShapeDtypeStruct((NC, H, ow), x.dtype),
        grid=(NC // B,),
        in_specs=[
            pl.BlockSpec((B, H, W), lambda i: (i, 0, 0)),
            pl.BlockSpec((factor, W, fW), lambda i: (0, 0, 0)),  # resident
        ],
        out_specs=pl.BlockSpec((B, H, ow), lambda i: (i, 0, 0)),
        compiler_params=pltpu.CompilerParams(
            dimension_semantics=("parallel",),
            vmem_limit_bytes=32 * 1024 * 1024),
    )(x.reshape(NC, H, W), jnp.asarray(G))

    # (NC, H, factor**2 * W) and (N, C, factor*H, factor*W) share the same
    # linear layout -> metadata-only reshape, no extra HBM pass.
    return out.reshape(N, C, OH, OW)


# ---------------------------------------------------------------------------
# Pure-JAX reference (mirrors upfirdn2d_native) for the correctness check.
# ---------------------------------------------------------------------------
def _reference(x, kernel2d, factor):
    N, C, H, W = x.shape
    kh, kw = kernel2d.shape
    p = kh - factor
    pad0 = (p + 1) // 2 + factor - 1
    pad1 = p // 2
    lhs = x.reshape(N * C, 1, H, W)
    rhs = jnp.asarray(np.ascontiguousarray(kernel2d[::-1, ::-1]),
                      x.dtype).reshape(1, 1, kh, kw)
    out = lax.conv_general_dilated(
        lhs, rhs,
        window_strides=(1, 1),
        padding=((pad0, pad1 + factor - 1), (pad0, pad1 + factor - 1)),
        lhs_dilation=(factor, factor),
        dimension_numbers=("NCHW", "OIHW", "NCHW"))
    return out.reshape(N, C, out.shape[-2], out.shape[-1])


if __name__ == "__main__":
    # Deterministic buffer: kernel = _make_kernel([1,3,3,1]) * factor**2
    kernel2d = _make_blur_kernel(BLUR_KERNEL_1D) * (FACTOR ** 2)

    key = jax.random.PRNGKey(0)
    x = jax.random.normal(key, (2, 4, 16, 16), dtype=jnp.float32)

    y = jax.block_until_ready(upsample_upfirdn(x, kernel2d, FACTOR))
    assert y.shape == (2, 4, 32, 32), y.shape

    y_ref = jax.block_until_ready(_reference(x, kernel2d, FACTOR))
    np.testing.assert_allclose(np.asarray(y), np.asarray(y_ref),
                               rtol=1e-5, atol=1e-5)
    print("KERNEL_OK")
</pallas_src>

<mosaic_0001>
module attributes {stable_mosaic.version = 11 : i64} {
  func.func @kernel(%arg0: i32, %arg1: memref<8x16x16xf32, #tpu.memory_space<vmem>>, %arg2: memref<2x16x32xf32, #tpu.memory_space<vmem>>, %arg3: memref<8x16x64xf32, #tpu.memory_space<vmem>>) attributes {dimension_semantics = [#tpu.dimension_semantics<parallel>], iteration_bounds = array<i64: 1>, scalar_prefetch = 0 : i64, scratch_operands = 0 : i64, tpu.core_type = #tpu.core_type<tc>, window_params = [{transform_indices = @transform_0, window_bounds = array<i64: 8, 16, 16>}, {pipeline_mode = #tpu.pipeline_mode<synchronous>, transform_indices = @transform_1, window_bounds = array<i64: 2, 16, 32>}, {transform_indices = @transform_2, window_bounds = array<i64: 8, 16, 64>}]} {
    %c0 = arith.constant 0 : index
    %c0_0 = arith.constant 0 : index
    %c0_1 = arith.constant 0 : index
    %0 = vector.load %arg1[%c0, %c0_0, %c0_1] : memref<8x16x16xf32, #tpu.memory_space<vmem>>, vector<8x16x16xf32>
    %cst = arith.constant 0.000000e+00 : f32
    %1 = vector.broadcast %cst : f32 to vector<8x16x1xf32>
    %cst_2 = arith.constant 0.000000e+00 : f32
    %2 = vector.broadcast %cst_2 : f32 to vector<8x16x1xf32>
    %3 = tpu.concatenate %1, %0, %2 in 2 : vector<8x16x1xf32>, vector<8x16x16xf32>, vector<8x16x1xf32> -> vector<8x16x18xf32>
    %cst_3 = arith.constant 0.000000e+00 : f32
    %4 = vector.broadcast %cst_3 : f32 to vector<8x1x18xf32>
    %cst_4 = arith.constant 0.000000e+00 : f32
    %5 = vector.broadcast %cst_4 : f32 to vector<8x1x18xf32>
    %6 = tpu.concatenate %4, %3, %5 in 1 : vector<8x1x18xf32>, vector<8x16x18xf32>, vector<8x1x18xf32> -> vector<8x18x18xf32>
    %7 = vector.extract_strided_slice %6 {offsets = [0, 0, 0], sizes = [8, 16, 16], strides = [1, 1, 1]} : vector<8x18x18xf32> to vector<8x16x16xf32>
    %8 = vector.extract_strided_slice %6 {offsets = [0, 0, 1], sizes = [8, 16, 16], strides = [1, 1, 1]} : vector<8x18x18xf32> to vector<8x16x16xf32>
    %9 = vector.extract_strided_slice %6 {offsets = [0, 0, 2], sizes = [8, 16, 16], strides = [1, 1, 1]} : vector<8x18x18xf32> to vector<8x16x16xf32>
    %10 = vector.extract_strided_slice %6 {offsets = [0, 1, 0], sizes = [8, 16, 16], strides = [1, 1, 1]} : vector<8x18x18xf32> to vector<8x16x16xf32>
    %11 = vector.extract_strided_slice %6 {offsets = [0, 1, 1], sizes = [8, 16, 16], strides = [1, 1, 1]} : vector<8x18x18xf32> to vector<8x16x16xf32>
    %12 = vector.extract_strided_slice %6 {offsets = [0, 1, 2], sizes = [8, 16, 16], strides = [1, 1, 1]} : vector<8x18x18xf32> to vector<8x16x16xf32>
    %13 = vector.extract_strided_slice %6 {offsets = [0, 2, 0], sizes = [8, 16, 16], strides = [1, 1, 1]} : vector<8x18x18xf32> to vector<8x16x16xf32>
    %14 = vector.extract_strided_slice %6 {offsets = [0, 2, 1], sizes = [8, 16, 16], strides = [1, 1, 1]} : vector<8x18x18xf32> to vector<8x16x16xf32>
    %15 = vector.extract_strided_slice %6 {offsets = [0, 2, 2], sizes = [8, 16, 16], strides = [1, 1, 1]} : vector<8x18x18xf32> to vector<8x16x16xf32>
    %c0_5 = arith.constant 0 : index
    %c0_6 = arith.constant 0 : index
    %c0_7 = arith.constant 0 : index
    %16 = vector.load %arg2[%c0_5, %c0_6, %c0_7] : memref<2x16x32xf32, #tpu.memory_space<vmem>>, vector<1x16x32xf32>
    %17 = vector.shape_cast %16 : vector<1x16x32xf32> to vector<16x32xf32>
    %18 = vector.shape_cast %17 : vector<16x32xf32> to vector<1x16x32xf32>
    %19 = vector.broadcast %18 : vector<1x16x32xf32> to vector<8x16x32xf32>
    %c1 = arith.constant 1 : index
    %c0_8 = arith.constant 0 : index
    %c0_9 = arith.constant 0 : index
    %20 = vector.load %arg2[%c1, %c0_8, %c0_9] : memref<2x16x32xf32, #tpu.memory_space<vmem>>, vector<1x16x32xf32>
    %21 = vector.shape_cast %20 : vector<1x16x32xf32> to vector<16x32xf32>
    %22 = vector.shape_cast %21 : vector<16x32xf32> to vector<1x16x32xf32>
    %23 = vector.broadcast %22 : vector<1x16x32xf32> to vector<8x16x32xf32>
    %cst_10 = arith.constant 6.250000e-02 : f32
    %24 = vector.broadcast %cst_10 : f32 to vector<8x16x16xf32>
    %25 = arith.mulf %7, %24 : vector<8x16x16xf32>
    %cst_11 = arith.constant 1.875000e-01 : f32
    %26 = vector.broadcast %cst_11 : f32 to vector<8x16x16xf32>
    %27 = arith.mulf %8, %26 : vector<8x16x16xf32>
    %cst_12 = arith.constant 1.875000e-01 : f32
    %28 = vector.broadcast %cst_12 : f32 to vector<8x16x16xf32>
    %29 = arith.mulf %10, %28 : vector<8x16x16xf32>
    %cst_13 = arith.constant 5.625000e-01 : f32
    %30 = vector.broadcast %cst_13 : f32 to vector<8x16x16xf32>
    %31 = arith.mulf %11, %30 : vector<8x16x16xf32>
    %32 = arith.addf %25, %27 : vector<8x16x16xf32>
    %33 = arith.addf %29, %31 : vector<8x16x16xf32>
    %34 = arith.addf %32, %33 : vector<8x16x16xf32>
    %cst_14 = arith.constant dense<0.000000e+00> : vector<8x16x32xf32>
    %35 = tpu.matmul %34, %19, %cst_14 {dimension_numbers = #tpu.dot_dimension_numbers<[2], [1], [1], [2], [0, 0, 0, 1, 1, 2], [0], [0]>} : vector<8x16x16xf32>, vector<8x16x32xf32>, vector<8x16x32xf32> -> vector<8x16x32xf32>
    %cst_15 = arith.constant 1.875000e-01 : f32
    %36 = vector.broadcast %cst_15 : f32 to vector<8x16x16xf32>
    %37 = arith.mulf %8, %36 : vector<8x16x16xf32>
    %cst_16 = arith.constant 6.250000e-02 : f32
    %38 = vector.broadcast %cst_16 : f32 to vector<8x16x16xf32>
    %39 = arith.mulf %9, %38 : vector<8x16x16xf32>
    %cst_17 = arith.constant 5.625000e-01 : f32
    %40 = vector.broadcast %cst_17 : f32 to vector<8x16x16xf32>
    %41 = arith.mulf %11, %40 : vector<8x16x16xf32>
    %cst_18 = arith.constant 1.875000e-01 : f32
    %42 = vector.broadcast %cst_18 : f32 to vector<8x16x16xf32>
    %43 = arith.mulf %12, %42 : vector<8x16x16xf32>
    %44 = arith.addf %37, %39 : vector<8x16x16xf32>
    %45 = arith.addf %41, %43 : vector<8x16x16xf32>
    %46 = arith.addf %44, %45 : vector<8x16x16xf32>
    %cst_19 = arith.constant dense<0.000000e+00> : vector<8x16x32xf32>
    %47 = tpu.matmul %46, %23, %cst_19 {dimension_numbers = #tpu.dot_dimension_numbers<[2], [1], [1], [2], [0, 0, 0, 1, 1, 2], [0], [0]>} : vector<8x16x16xf32>, vector<8x16x32xf32>, vector<8x16x32xf32> -> vector<8x16x32xf32>
    %48 = arith.addf %35, %47 : vector<8x16x32xf32>
    %cst_20 = arith.constant 1.875000e-01 : f32
    %49 = vector.broadcast %cst_20 : f32 to vector<8x16x16xf32>
    %50 = arith.mulf %10, %49 : vector<8x16x16xf32>
    %cst_21 = arith.constant 5.625000e-01 : f32
    %51 = vector.broadcast %cst_21 : f32 to vector<8x16x16xf32>
    %52 = arith.mulf %11, %51 : vector<8x16x16xf32>
    %cst_22 = arith.constant 6.250000e-02 : f32
    %53 = vector.broadcast %cst_22 : f32 to vector<8x16x16xf32>
    %54 = arith.mulf %13, %53 : vector<8x16x16xf32>
    %cst_23 = arith.constant 1.875000e-01 : f32
    %55 = vector.broadcast %cst_23 : f32 to vector<8x16x16xf32>
    %56 = arith.mulf %14, %55 : vector<8x16x16xf32>
    %57 = arith.addf %50, %52 : vector<8x16x16xf32>
    %58 = arith.addf %54, %56 : vector<8x16x16xf32>
    %59 = arith.addf %57, %58 : vector<8x16x16xf32>
    %cst_24 = arith.constant dense<0.000000e+00> : vector<8x16x32xf32>
    %60 = tpu.matmul %59, %19, %cst_24 {dimension_numbers = #tpu.dot_dimension_numbers<[2], [1], [1], [2], [0, 0, 0, 1, 1, 2], [0], [0]>} : vector<8x16x16xf32>, vector<8x16x32xf32>, vector<8x16x32xf32> -> vector<8x16x32xf32>
    %cst_25 = arith.constant 5.625000e-01 : f32
    %61 = vector.broadcast %cst_25 : f32 to vector<8x16x16xf32>
    %62 = arith.mulf %11, %61 : vector<8x16x16xf32>
    %cst_26 = arith.constant 1.875000e-01 : f32
    %63 = vector.broadcast %cst_26 : f32 to vector<8x16x16xf32>
    %64 = arith.mulf %12, %63 : vector<8x16x16xf32>
    %cst_27 = arith.constant 1.875000e-01 : f32
    %65 = vector.broadcast %cst_27 : f32 to vector<8x16x16xf32>
    %66 = arith.mulf %14, %65 : vector<8x16x16xf32>
    %cst_28 = arith.constant 6.250000e-02 : f32
    %67 = vector.broadcast %cst_28 : f32 to vector<8x16x16xf32>
    %68 = arith.mulf %15, %67 : vector<8x16x16xf32>
    %69 = arith.addf %62, %64 : vector<8x16x16xf32>
    %70 = arith.addf %66, %68 : vector<8x16x16xf32>
    %71 = arith.addf %69, %70 : vector<8x16x16xf32>
    %cst_29 = arith.constant dense<0.000000e+00> : vector<8x16x32xf32>
    %72 = tpu.matmul %71, %23, %cst_29 {dimension_numbers = #tpu.dot_dimension_numbers<[2], [1], [1], [2], [0, 0, 0, 1, 1, 2], [0], [0]>} : vector<8x16x16xf32>, vector<8x16x32xf32>, vector<8x16x32xf32> -> vector<8x16x32xf32>
    %73 = arith.addf %60, %72 : vector<8x16x32xf32>
    %74 = tpu.concatenate %48, %73 in 2 : vector<8x16x32xf32>, vector<8x16x32xf32> -> vector<8x16x64xf32>
    %c0_30 = arith.constant 0 : index
    %c0_31 = arith.constant 0 : index
    %c0_32 = arith.constant 0 : index
    %75 = vector.load %arg3[%c0_30, %c0_31, %c0_32] : memref<8x16x64xf32, #tpu.memory_space<vmem>>, vector<8x16x64xf32>
    tpu.vector_store %arg3[%c0_30, %c0_31, %c0_32], %74 {strides = array<i32>} : memref<8x16x64xf32, #tpu.memory_space<vmem>>, vector<8x16x64xf32>,
    return
  }
  func.func @transform_0(%arg0: i32) -> (i32, i32, i32) {
    %c0_i32 = arith.constant 0 : i32
    %c0_i32_0 = arith.constant 0 : i32
    %c0_i32_1 = arith.constant 0 : i32
    return %arg0, %c0_i32, %c0_i32_0 : i32, i32, i32
  }
  func.func @transform_1(%arg0: i32) -> (i32, i32, i32) {
    %c0_i32 = arith.constant 0 : i32
    %c0_i32_0 = arith.constant 0 : i32
    %c0_i32_1 = arith.constant 0 : i32
    %c0_i32_2 = arith.constant 0 : i32
    return %c0_i32, %c0_i32_0, %c0_i32_1 : i32, i32, i32
  }
  func.func @transform_2(%arg0: i32) -> (i32, i32, i32) {
    %c0_i32 = arith.constant 0 : i32
    %c0_i32_0 = arith.constant 0 : i32
    %c0_i32_1 = arith.constant 0 : i32
    return %arg0, %c0_i32, %c0_i32_0 : i32, i32, i32
  }
}

</mosaic_0001>

<llo_original>
// kernel: tpu_custom_call.1
$region0: #{tpu_custom_call.1}
  #allocation0 [shape = 'u32[]', space=smem, size = 0x4, offset = 0x4, fixed_abs, tag = 'smem constant byte address 0x4 - core index']
  #allocation1 [shape = 'u32[144,128]{1,0:T(1,128)}', space=vmem, size = 0x12000, scoped, tag = 'internal scratch']
  %s0 = inlined_call_operand.hbm [shape: f32[8,16,16], index: 0, kind: input, shape index: {}]
  %s1 = inlined_call_operand.hbm [shape: f32[2,16,32], index: 1, kind: input, shape index: {}]
  %s2 = inlined_call_operand.hbm [shape: f32[8,16,64], index: 2, kind: output, shape index: {}]
  %s3 = sld [smem:[#allocation0]]
  $region26: #{tpu_custom_call.1} parent=0
    _
  %s5 = ssub.s32 1, %s3
  %s6 = scalar_select 0, %s5, %s3
  $region1: #{tpu_custom_call.1} parent=0
    #allocation2 [shape = 'u8[65536]{0}', space=vmem, size = 0x10000, scoped, tag = 'input window, operand 0, single buffered']
    #allocation3 [shape = 's32[1]{0}', space=sflag, size = 0x4, scoped, tag = 'scoped memory for tpu_custom_call.1']
    #allocation4 [shape = 's32[1]{0}', space=sflag, size = 0x4, scoped, tag = 'scoped memory for tpu_custom_call.1']
    #allocation5 [shape = 'u8[16384]{0}', space=vmem, size = 0x4000, scoped, tag = 'input window, operand 1, single buffered']
    #allocation6 [shape = 's32[1]{0}', space=sflag, size = 0x4, scoped, tag = 'scoped memory for tpu_custom_call.1']
    #allocation7 [shape = 'u8[65536]{0}', space=vmem, size = 0x10000, scoped, tag = 'output window, operand 0, single buffered']
    %7 = vsyncpa [#allocation3], 0
    %8 = vsyncpa [#allocation6], 0
    %9 = vsyncpa [#allocation4], 0
    // Predicated region
    $region2: #{tpu_custom_call.1} parent=1 // pred_check
      _
    $region3: #{tpu_custom_call.1} parent=1 // pred_check_branch
      %11 = sbr.rel (0) target = $region5
    $region4: #{tpu_custom_call.1} parent=1 // pred_region
      %s13 = ssub.s32 2048, 2048
      %14 = vsyncadd [#allocation3], %s13
      %s15 = sshll.u32 [#allocation2], 4
      %s16 = int_to_ptr.vmem [resolvable:$true] %s15
      %21 = dma.hbm_to_vmem [thread:$0]  %s0, 2048, %s16, [#allocation3], 128, 128, 8
    $region5: #{tpu_custom_call.1} parent=1 // pred_fallthru
      _
    // Predicated region
    $region6: #{tpu_custom_call.1} parent=1 // pred_check
      _
    $region7: #{tpu_custom_call.1} parent=1 // pred_check_branch
      %23 = sbr.rel (0) target = $region9
    $region8: #{tpu_custom_call.1} parent=1 // pred_region
      %s25 = ssub.s32 512, 512
      %26 = vsyncadd [#allocation6], %s25
      %s27 = sshll.u32 [#allocation5], 4
      %s28 = int_to_ptr.vmem [resolvable:$true] %s27
      %33 = dma.hbm_to_vmem [thread:$0]  %s1, 512, %s28, [#allocation6], 128, 128, 8
    $region9: #{tpu_custom_call.1} parent=1 // pred_fallthru
      _
    // Predicated region
    $region10: #{tpu_custom_call.1} parent=1 // pred_check
      _
    $region11: #{tpu_custom_call.1} parent=1 // pred_check_branch
      %35 = sbr.rel (0) target = $region13
    $region12: #{tpu_custom_call.1} parent=1 // pred_region
      %36 = dma.done [#allocation3], 2048
    $region13: #{tpu_custom_call.1} parent=1 // pred_fallthru
      _
    // Predicated region
    $region14: #{tpu_custom_call.1} parent=1 // pred_check
      _
    $region15: #{tpu_custom_call.1} parent=1 // pred_check_branch
      %38 = sbr.rel (0) target = $region17
    $region16: #{tpu_custom_call.1} parent=1 // pred_region
      %39 = dma.done [#allocation6], 512
    $region17: #{tpu_custom_call.1} parent=1 // pred_fallthru
      _
    %v40 = vld [vmem:[#allocation2] sm:$0xff]
    %v41 = vld [vmem:[#allocation2 + $0x8] sm:$0xff]
    %v42 = vld [vmem:[#allocation2 + $0x10] sm:$0xff]
    %v43 = vld [vmem:[#allocation2 + $0x18] sm:$0xff]
    %v44 = vld [vmem:[#allocation2 + $0x20] sm:$0xff]
    %v45 = vld [vmem:[#allocation2 + $0x28] sm:$0xff]
    %v46 = vld [vmem:[#allocation2 + $0x30] sm:$0xff]
    %v47 = vld [vmem:[#allocation2 + $0x38] sm:$0xff]
    %v48 = vld [vmem:[#allocation2 + $0x40] sm:$0xff]
    %v49 = vld [vmem:[#allocation2 + $0x48] sm:$0xff]
    %v50 = vld [vmem:[#allocation2 + $0x50] sm:$0xff]
    %v51 = vld [vmem:[#allocation2 + $0x58] sm:$0xff]
    %v52 = vld [vmem:[#allocation2 + $0x60] sm:$0xff]
    %v53 = vld [vmem:[#allocation2 + $0x68] sm:$0xff]
    %v54 = vld [vmem:[#allocation2 + $0x70] sm:$0xff]
    %v55 = vld [vmem:[#allocation2 + $0x78] sm:$0xff]
    %72 = vrot.lane.b32.xlu0 %v40, 1
    %v73 = vpop.permute.xlu0 %72
    %74 = vrot.lane.b32.xlu0 %v41, 1
    %v75 = vpop.permute.xlu0 %74
    %76 = vrot.lane.b32.xlu0 %v42, 1
    %v77 = vpop.permute.xlu0 %76
    %78 = vrot.lane.b32.xlu0 %v43, 1
    %v79 = vpop.permute.xlu0 %78
    %80 = vrot.lane.b32.xlu0 %v44, 1
    %v81 = vpop.permute.xlu0 %80
    %82 = vrot.lane.b32.xlu0 %v45, 1
    %v83 = vpop.permute.xlu0 %82
    %84 = vrot.lane.b32.xlu0 %v46, 1
    %v85 = vpop.permute.xlu0 %84
    %86 = vrot.lane.b32.xlu0 %v47, 1
    %v87 = vpop.permute.xlu0 %86
    %88 = vrot.lane.b32.xlu0 %v48, 1
    %v89 = vpop.permute.xlu0 %88
    %90 = vrot.lane.b32.xlu0 %v49, 1
    %v91 = vpop.permute.xlu0 %90
    %92 = vrot.lane.b32.xlu0 %v50, 1
    %v93 = vpop.permute.xlu0 %92
    %94 = vrot.lane.b32.xlu0 %v51, 1
    %v95 = vpop.permute.xlu0 %94
    %96 = vrot.lane.b32.xlu0 %v52, 1
    %v97 = vpop.permute.xlu0 %96
    %98 = vrot.lane.b32.xlu0 %v53, 1
    %v99 = vpop.permute.xlu0 %98
    %100 = vrot.lane.b32.xlu0 %v54, 1
    %v101 = vpop.permute.xlu0 %100
    %102 = vrot.lane.b32.xlu0 %v55, 1
    %v103 = vpop.permute.xlu0 %102
    %vm120 = vcmask 7168
    %v121 = vsel %vm120, 0.0, %v73
    %v122 = vsel %vm120, 0.0, %v75
    %v123 = vsel %vm120, 0.0, %v77
    %v124 = vsel %vm120, 0.0, %v79
    %v125 = vsel %vm120, 0.0, %v81
    %v126 = vsel %vm120, 0.0, %v83
    %v127 = vsel %vm120, 0.0, %v85
    %v128 = vsel %vm120, 0.0, %v87
    %v129 = vsel %vm120, 0.0, %v89
    %v130 = vsel %vm120, 0.0, %v91
    %v131 = vsel %vm120, 0.0, %v93
    %v132 = vsel %vm120, 0.0, %v95
    %v133 = vsel %vm120, 0.0, %v97
    %v134 = vsel %vm120, 0.0, %v99
    %v135 = vsel %vm120, 0.0, %v101
    %v136 = vsel %vm120, 0.0, %v103
    %vm137 = vcmask 138240
    %v138 = vsel %vm137, %v121, 0.0
    %v139 = vsel %vm137, %v122, 0.0
    %v140 = vsel %vm137, %v123, 0.0
    %v141 = vsel %vm137, %v124, 0.0
    %v142 = vsel %vm137, %v125, 0.0
    %v143 = vsel %vm137, %v126, 0.0
    %v144 = vsel %vm137, %v127, 0.0
    %v145 = vsel %vm137, %v128, 0.0
    %v146 = vsel %vm137, %v129, 0.0
    %v147 = vsel %vm137, %v130, 0.0
    %v148 = vsel %vm137, %v131, 0.0
    %v149 = vsel %vm137, %v132, 0.0
    %v150 = vsel %vm137, %v133, 0.0
    %v151 = vsel %vm137, %v134, 0.0
    %v152 = vsel %vm137, %v135, 0.0
    %v153 = vsel %vm137, %v136, 0.0
    %vm170 = vcmask 1040384
    %v171 = vrot.slane %v138, 7
    %v172 = vrot.slane %v139, 7
    %v173 = vsel %vm170, %v171, %v172
    %v174 = vrot.slane %v140, 7
    %v175 = vrot.slane %v141, 7
    %v176 = vsel %vm170, %v174, %v175
    %v177 = vrot.slane %v142, 7
    %v178 = vrot.slane %v143, 7
    %v179 = vsel %vm170, %v177, %v178
    %v180 = vrot.slane %v144, 7
    %v181 = vrot.slane %v145, 7
    %v182 = vsel %vm170, %v180, %v181
    %v183 = vrot.slane %v146, 7
    %v184 = vrot.slane %v147, 7
    %v185 = vsel %vm170, %v183, %v184
    %v186 = vrot.slane %v148, 7
    %v187 = vrot.slane %v149, 7
    %v188 = vsel %vm170, %v186, %v187
    %v189 = vrot.slane %v150, 7
    %v190 = vrot.slane %v151, 7
    %v191 = vsel %vm170, %v189, %v190
    %v192 = vrot.slane %v152, 7
    %v193 = vrot.slane %v153, 7
    %v194 = vsel %vm170, %v192, %v193
    %v219 = vsel %vm170, 0.0, %v171
    %v220 = vsel %vm170, 0.0, %v174
    %v221 = vsel %vm170, 0.0, %v177
    %v222 = vsel %vm170, 0.0, %v180
    %v223 = vsel %vm170, 0.0, %v183
    %v224 = vsel %vm170, 0.0, %v186
    %v225 = vsel %vm170, 0.0, %v189
    %v226 = vsel %vm170, 0.0, %v192
    %v227 = vsel %vm170, %v172, 0.0
    %v228 = vsel %vm170, %v175, 0.0
    %v229 = vsel %vm170, %v178, 0.0
    %v230 = vsel %vm170, %v181, 0.0
    %v231 = vsel %vm170, %v184, 0.0
    %v232 = vsel %vm170, %v187, 0.0
    %v233 = vsel %vm170, %v190, 0.0
    %v234 = vsel %vm170, %v193, 0.0
    %v235 = vld [vmem:[#allocation5] sm:$0xff]
    %v236 = vld [vmem:[#allocation5 + $0x8] sm:$0xff]
    %s237 = scalar_lea.vmem [#allocation5], 16
    %v238 = vld [vmem:[%s237] sm:$0xff]
    %v239 = vld [vmem:[%s237 + $0x8] sm:$0xff]
    %v240 = vmul.f32 %v219, 0.0625
    %v241 = vmul.f32 %v173, 0.0625
    %v242 = vmul.f32 %v220, 0.0625
    %v243 = vmul.f32 %v176, 0.0625
    %v244 = vmul.f32 %v221, 0.0625
    %v245 = vmul.f32 %v179, 0.0625
    %v246 = vmul.f32 %v222, 0.0625
    %v247 = vmul.f32 %v182, 0.0625
    %v248 = vmul.f32 %v223, 0.0625
    %v249 = vmul.f32 %v185, 0.0625
    %v250 = vmul.f32 %v224, 0.0625
    %v251 = vmul.f32 %v188, 0.0625
    %v252 = vmul.f32 %v225, 0.0625
    %v253 = vmul.f32 %v191, 0.0625
    %v254 = vmul.f32 %v226, 0.0625
    %v255 = vmul.f32 %v194, 0.0625
    %v256 = vmul.f32 %v219, 0.1875
    %v257 = vmul.f32 %v173, 0.1875
    %v258 = vmul.f32 %v220, 0.1875
    %v259 = vmul.f32 %v176, 0.1875
    %v260 = vmul.f32 %v221, 0.1875
    %v261 = vmul.f32 %v179, 0.1875
    %v262 = vmul.f32 %v222, 0.1875
    %v263 = vmul.f32 %v182, 0.1875
    %v264 = vmul.f32 %v223, 0.1875
    %v265 = vmul.f32 %v185, 0.1875
    %v266 = vmul.f32 %v224, 0.1875
    %v267 = vmul.f32 %v188, 0.1875
    %v268 = vmul.f32 %v225, 0.1875
    %v269 = vmul.f32 %v191, 0.1875
    %v270 = vmul.f32 %v226, 0.1875
    %v271 = vmul.f32 %v194, 0.1875
    %v272 = vmul.f32 %v227, 0.1875
    %v273 = vmul.f32 %v228, 0.1875
    %v274 = vmul.f32 %v229, 0.1875
    %v275 = vmul.f32 %v230, 0.1875
    %v276 = vmul.f32 %v231, 0.1875
    %v277 = vmul.f32 %v232, 0.1875
    %v278 = vmul.f32 %v233, 0.1875
    %v279 = vmul.f32 %v234, 0.1875
    %v280 = vmul.f32 %v219, 0.5625
    %v281 = vmul.f32 %v173, 0.5625
    %v282 = vmul.f32 %v227, 0.5625
    %v283 = vmul.f32 %v220, 0.5625
    %v284 = vmul.f32 %v176, 0.5625
    %v285 = vmul.f32 %v228, 0.5625
    %v286 = vmul.f32 %v221, 0.5625
    %v287 = vmul.f32 %v179, 0.5625
    %v288 = vmul.f32 %v229, 0.5625
    %v289 = vmul.f32 %v222, 0.5625
    %v290 = vmul.f32 %v182, 0.5625
    %v291 = vmul.f32 %v230, 0.5625
    %v292 = vmul.f32 %v223, 0.5625
    %v293 = vmul.f32 %v185, 0.5625
    %v294 = vmul.f32 %v231, 0.5625
    %v295 = vmul.f32 %v224, 0.5625
    %v296 = vmul.f32 %v188, 0.5625
    %v297 = vmul.f32 %v232, 0.5625
    %v298 = vmul.f32 %v225, 0.5625
    %v299 = vmul.f32 %v191, 0.5625
    %v300 = vmul.f32 %v233, 0.5625
    %v301 = vmul.f32 %v226, 0.5625
    %v302 = vmul.f32 %v194, 0.5625
    %v303 = vmul.f32 %v234, 0.5625
    %320 = vrot.lane.b32.xlu0 %v256, 127
    %v321 = vpop.permute.xlu0 %320
    %322 = vrot.lane.b32.xlu0 %v257, 127
    %v323 = vpop.permute.xlu0 %322
    %324 = vrot.lane.b32.xlu0 %v258, 127
    %v325 = vpop.permute.xlu0 %324
    %326 = vrot.lane.b32.xlu0 %v259, 127
    %v327 = vpop.permute.xlu0 %326
    %328 = vrot.lane.b32.xlu0 %v260, 127
    %v329 = vpop.permute.xlu0 %328
    %330 = vrot.lane.b32.xlu0 %v261, 127
    %v331 = vpop.permute.xlu0 %330
    %332 = vrot.lane.b32.xlu0 %v262, 127
    %v333 = vpop.permute.xlu0 %332
    %334 = vrot.lane.b32.xlu0 %v263, 127
    %v335 = vpop.permute.xlu0 %334
    %336 = vrot.lane.b32.xlu0 %v264, 127
    %v337 = vpop.permute.xlu0 %336
    %338 = vrot.lane.b32.xlu0 %v265, 127
    %v339 = vpop.permute.xlu0 %338
    %340 = vrot.lane.b32.xlu0 %v266, 127
    %v341 = vpop.permute.xlu0 %340
    %342 = vrot.lane.b32.xlu0 %v267, 127
    %v343 = vpop.permute.xlu0 %342
    %344 = vrot.lane.b32.xlu0 %v268, 127
    %v345 = vpop.permute.xlu0 %344
    %346 = vrot.lane.b32.xlu0 %v269, 127
    %v347 = vpop.permute.xlu0 %346
    %348 = vrot.lane.b32.xlu0 %v270, 127
    %v349 = vpop.permute.xlu0 %348
    %350 = vrot.lane.b32.xlu0 %v271, 127
    %v351 = vpop.permute.xlu0 %350
    %v368 = vadd.f32 %v240, %v321
    %v369 = vadd.f32 %v241, %v323
    %v370 = vadd.f32 %v242, %v325
    %v371 = vadd.f32 %v243, %v327
    %v372 = vadd.f32 %v244, %v329
    %v373 = vadd.f32 %v245, %v331
    %v374 = vadd.f32 %v246, %v333
    %v375 = vadd.f32 %v247, %v335
    %v376 = vadd.f32 %v248, %v337
    %v377 = vadd.f32 %v249, %v339
    %v378 = vadd.f32 %v250, %v341
    %v379 = vadd.f32 %v251, %v343
    %v380 = vadd.f32 %v252, %v345
    %v381 = vadd.f32 %v253, %v347
    %v382 = vadd.f32 %v254, %v349
    %v383 = vadd.f32 %v255, %v351
    %408 = vrot.lane.b32.xlu0 %v280, 127
    %v409 = vpop.permute.xlu0 %408
    %410 = vrot.lane.b32.xlu0 %v281, 127
    %v411 = vpop.permute.xlu0 %410
    %412 = vrot.lane.b32.xlu0 %v282, 127
    %v413 = vpop.permute.xlu0 %412
    %414 = vrot.lane.b32.xlu0 %v283, 127
    %v415 = vpop.permute.xlu0 %414
    %416 = vrot.lane.b32.xlu0 %v284, 127
    %v417 = vpop.permute.xlu0 %416
    %418 = vrot.lane.b32.xlu0 %v285, 127
    %v419 = vpop.permute.xlu0 %418
    %420 = vrot.lane.b32.xlu0 %v286, 127
    %v421 = vpop.permute.xlu0 %420
    %422 = vrot.lane.b32.xlu0 %v287, 127
    %v423 = vpop.permute.xlu0 %422
    %424 = vrot.lane.b32.xlu0 %v288, 127
    %v425 = vpop.permute.xlu0 %424
    %426 = vrot.lane.b32.xlu0 %v289, 127
    %v427 = vpop.permute.xlu0 %426
    %428 = vrot.lane.b32.xlu0 %v290, 127
    %v429 = vpop.permute.xlu0 %428
    %430 = vrot.lane.b32.xlu0 %v291, 127
    %v431 = vpop.permute.xlu0 %430
    %432 = vrot.lane.b32.xlu0 %v292, 127
    %v433 = vpop.permute.xlu0 %432
    %434 = vrot.lane.b32.xlu0 %v293, 127
    %v435 = vpop.permute.xlu0 %434
    %436 = vrot.lane.b32.xlu0 %v294, 127
    %v437 = vpop.permute.xlu0 %436
    %438 = vrot.lane.b32.xlu0 %v295, 127
    %v439 = vpop.permute.xlu0 %438
    %440 = vrot.lane.b32.xlu0 %v296, 127
    %v441 = vpop.permute.xlu0 %440
    %442 = vrot.lane.b32.xlu0 %v297, 127
    %v443 = vpop.permute.xlu0 %442
    %444 = vrot.lane.b32.xlu0 %v298, 127
    %v445 = vpop.permute.xlu0 %444
    %446 = vrot.lane.b32.xlu0 %v299, 127
    %v447 = vpop.permute.xlu0 %446
    %448 = vrot.lane.b32.xlu0 %v300, 127
    %v449 = vpop.permute.xlu0 %448
    %450 = vrot.lane.b32.xlu0 %v301, 127
    %v451 = vpop.permute.xlu0 %450
    %452 = vrot.lane.b32.xlu0 %v302, 127
    %v453 = vpop.permute.xlu0 %452
    %454 = vrot.lane.b32.xlu0 %v303, 127
    %v455 = vpop.permute.xlu0 %454
    %v480 = vadd.f32 %v256, %v409
    %v481 = vadd.f32 %v257, %v411
    %v482 = vadd.f32 %v272, %v413
    %v483 = vadd.f32 %v258, %v415
    %v484 = vadd.f32 %v259, %v417
    %v485 = vadd.f32 %v273, %v419
    %v486 = vadd.f32 %v260, %v421
    %v487 = vadd.f32 %v261, %v423
    %v488 = vadd.f32 %v274, %v425
    %v489 = vadd.f32 %v262, %v427
    %v490 = vadd.f32 %v263, %v429
    %v491 = vadd.f32 %v275, %v431
    %v492 = vadd.f32 %v264, %v433
    %v493 = vadd.f32 %v265, %v435
    %v494 = vadd.f32 %v276, %v437
    %v495 = vadd.f32 %v266, %v439
    %v496 = vadd.f32 %v267, %v441
    %v497 = vadd.f32 %v277, %v443
    %v498 = vadd.f32 %v268, %v445
    %v499 = vadd.f32 %v269, %v447
    %v500 = vadd.f32 %v278, %v449
    %v501 = vadd.f32 %v270, %v451
    %v502 = vadd.f32 %v271, %v453
    %v503 = vadd.f32 %v279, %v455
    %vm528 = vcmask 1046528
    %v529 = vrot.slane %v480, 1
    %v530 = vrot.slane %v481, 1
    %v531 = vsel %vm528, %v529, %v530
    %v532 = vrot.slane %v482, 1
    %v533 = vsel %vm528, %v530, %v532
    %v534 = vrot.slane %v483, 1
    %v535 = vrot.slane %v484, 1
    %v536 = vsel %vm528, %v534, %v535
    %v537 = vrot.slane %v485, 1
    %v538 = vsel %vm528, %v535, %v537
    %v539 = vrot.slane %v486, 1
    %v540 = vrot.slane %v487, 1
    %v541 = vsel %vm528, %v539, %v540
    %v542 = vrot.slane %v488, 1
    %v543 = vsel %vm528, %v540, %v542
    %v544 = vrot.slane %v489, 1
    %v545 = vrot.slane %v490, 1
    %v546 = vsel %vm528, %v544, %v545
    %v547 = vrot.slane %v491, 1
    %v548 = vsel %vm528, %v545, %v547
    %v549 = vrot.slane %v492, 1
    %v550 = vrot.slane %v493, 1
    %v551 = vsel %vm528, %v549, %v550
    %v552 = vrot.slane %v494, 1
    %v553 = vsel %vm528, %v550, %v552
    %v554 = vrot.slane %v495, 1
    %v555 = vrot.slane %v496, 1
    %v556 = vsel %vm528, %v554, %v555
    %v557 = vrot.slane %v497, 1
    %v558 = vsel %vm528, %v555, %v557
    %v559 = vrot.slane %v498, 1
    %v560 = vrot.slane %v499, 1
    %v561 = vsel %vm528, %v559, %v560
    %v562 = vrot.slane %v500, 1
    %v563 = vsel %vm528, %v560, %v562
    %v564 = vrot.slane %v501, 1
    %v565 = vrot.slane %v502, 1
    %v566 = vsel %vm528, %v564, %v565
    %v567 = vrot.slane %v503, 1
    %v568 = vsel %vm528, %v565, %v567
    %v585 = vadd.f32 %v368, %v531
    %v586 = vadd.f32 %v369, %v533
    %v587 = vadd.f32 %v370, %v536
    %v588 = vadd.f32 %v371, %v538
    %v589 = vadd.f32 %v372, %v541
    %v590 = vadd.f32 %v373, %v543
    %v591 = vadd.f32 %v374, %v546
    %v592 = vadd.f32 %v375, %v548
    %v593 = vadd.f32 %v376, %v551
    %v594 = vadd.f32 %v377, %v553
    %v595 = vadd.f32 %v378, %v556
    %v596 = vadd.f32 %v379, %v558
    %v597 = vadd.f32 %v380, %v561
    %v598 = vadd.f32 %v381, %v563
    %v599 = vadd.f32 %v382, %v566
    %v600 = vadd.f32 %v383, %v568
    %617 = vrot.lane.b32.xlu0 %v240, 127
    %v618 = vpop.permute.xlu0 %617
    %619 = vrot.lane.b32.xlu0 %v241, 127
    %v620 = vpop.permute.xlu0 %619
    %621 = vrot.lane.b32.xlu0 %v242, 127
    %v622 = vpop.permute.xlu0 %621
    %623 = vrot.lane.b32.xlu0 %v243, 127
    %v624 = vpop.permute.xlu0 %623
    %625 = vrot.lane.b32.xlu0 %v244, 127
    %v626 = vpop.permute.xlu0 %625
    %627 = vrot.lane.b32.xlu0 %v245, 127
    %v628 = vpop.permute.xlu0 %627
    %629 = vrot.lane.b32.xlu0 %v246, 127
    %v630 = vpop.permute.xlu0 %629
    %631 = vrot.lane.b32.xlu0 %v247, 127
    %v632 = vpop.permute.xlu0 %631
    %633 = vrot.lane.b32.xlu0 %v248, 127
    %v634 = vpop.permute.xlu0 %633
    %635 = vrot.lane.b32.xlu0 %v249, 127
    %v636 = vpop.permute.xlu0 %635
    %637 = vrot.lane.b32.xlu0 %v250, 127
    %v638 = vpop.permute.xlu0 %637
    %639 = vrot.lane.b32.xlu0 %v251, 127
    %v640 = vpop.permute.xlu0 %639
    %641 = vrot.lane.b32.xlu0 %v252, 127
    %v642 = vpop.permute.xlu0 %641
    %643 = vrot.lane.b32.xlu0 %v253, 127
    %v644 = vpop.permute.xlu0 %643
    %645 = vrot.lane.b32.xlu0 %v254, 127
    %v646 = vpop.permute.xlu0 %645
    %647 = vrot.lane.b32.xlu0 %v255, 127
    %v648 = vpop.permute.xlu0 %647
    %v665 = vadd.f32 %v256, %v618
    %v666 = vadd.f32 %v257, %v620
    %v667 = vadd.f32 %v258, %v622
    %v668 = vadd.f32 %v259, %v624
    %v669 = vadd.f32 %v260, %v626
    %v670 = vadd.f32 %v261, %v628
    %v671 = vadd.f32 %v262, %v630
    %v672 = vadd.f32 %v263, %v632
    %v673 = vadd.f32 %v264, %v634
    %v674 = vadd.f32 %v265, %v636
    %v675 = vadd.f32 %v266, %v638
    %v676 = vadd.f32 %v267, %v640
    %v677 = vadd.f32 %v268, %v642
    %v678 = vadd.f32 %v269, %v644
    %v679 = vadd.f32 %v270, %v646
    %v680 = vadd.f32 %v271, %v648
    %689 = vrot.lane.b32.xlu0 %v272, 127
    %v690 = vpop.permute.xlu0 %689
    %691 = vrot.lane.b32.xlu0 %v273, 127
    %v692 = vpop.permute.xlu0 %691
    %693 = vrot.lane.b32.xlu0 %v274, 127
    %v694 = vpop.permute.xlu0 %693
    %695 = vrot.lane.b32.xlu0 %v275, 127
    %v696 = vpop.permute.xlu0 %695
    %697 = vrot.lane.b32.xlu0 %v276, 127
    %v698 = vpop.permute.xlu0 %697
    %699 = vrot.lane.b32.xlu0 %v277, 127
    %v700 = vpop.permute.xlu0 %699
    %701 = vrot.lane.b32.xlu0 %v278, 127
    %v702 = vpop.permute.xlu0 %701
    %703 = vrot.lane.b32.xlu0 %v279, 127
    %v704 = vpop.permute.xlu0 %703
    %v713 = vadd.f32 %v280, %v321
    %v714 = vadd.f32 %v281, %v323
    %v715 = vadd.f32 %v282, %v690
    %v716 = vadd.f32 %v283, %v325
    %v717 = vadd.f32 %v284, %v327
    %v718 = vadd.f32 %v285, %v692
    %v719 = vadd.f32 %v286, %v329
    %v720 = vadd.f32 %v287, %v331
    %v721 = vadd.f32 %v288, %v694
    %v722 = vadd.f32 %v289, %v333
    %v723 = vadd.f32 %v290, %v335
    %v724 = vadd.f32 %v291, %v696
    %v725 = vadd.f32 %v292, %v337
    %v726 = vadd.f32 %v293, %v339
    %v727 = vadd.f32 %v294, %v698
    %v728 = vadd.f32 %v295, %v341
    %v729 = vadd.f32 %v296, %v343
    %v730 = vadd.f32 %v297, %v700
    %v731 = vadd.f32 %v298, %v345
    %v732 = vadd.f32 %v299, %v347
    %v733 = vadd.f32 %v300, %v702
    %v734 = vadd.f32 %v301, %v349
    %v735 = vadd.f32 %v302, %v351
    %v736 = vadd.f32 %v303, %v704
    %v761 = vrot.slane %v713, 1
    %v762 = vrot.slane %v714, 1
    %v763 = vsel %vm528, %v761, %v762
    %v764 = vrot.slane %v715, 1
    %v765 = vsel %vm528, %v762, %v764
    %v766 = vrot.slane %v716, 1
    %v767 = vrot.slane %v717, 1
    %v768 = vsel %vm528, %v766, %v767
    %v769 = vrot.slane %v718, 1
    %v770 = vsel %vm528, %v767, %v769
    %v771 = vrot.slane %v719, 1
    %v772 = vrot.slane %v720, 1
    %v773 = vsel %vm528, %v771, %v772
    %v774 = vrot.slane %v721, 1
    %v775 = vsel %vm528, %v772, %v774
    %v776 = vrot.slane %v722, 1
    %v777 = vrot.slane %v723, 1
    %v778 = vsel %vm528, %v776, %v777
    %v779 = vrot.slane %v724, 1
    %v780 = vsel %vm528, %v777, %v779
    %v781 = vrot.slane %v725, 1
    %v782 = vrot.slane %v726, 1
    %v783 = vsel %vm528, %v781, %v782
    %v784 = vrot.slane %v727, 1
    %v785 = vsel %vm528, %v782, %v784
    %v786 = vrot.slane %v728, 1
    %v787 = vrot.slane %v729, 1
    %v788 = vsel %vm528, %v786, %v787
    %v789 = vrot.slane %v730, 1
    %v790 = vsel %vm528, %v787, %v789
    %v791 = vrot.slane %v731, 1
    %v792 = vrot.slane %v732, 1
    %v793 = vsel %vm528, %v791, %v792
    %v794 = vrot.slane %v733, 1
    %v795 = vsel %vm528, %v792, %v794
    %v796 = vrot.slane %v734, 1
    %v797 = vrot.slane %v735, 1
    %v798 = vsel %vm528, %v796, %v797
    %v799 = vrot.slane %v736, 1
    %v800 = vsel %vm528, %v797, %v799
    %v817 = vadd.f32 %v665, %v763
    %v818 = vadd.f32 %v666, %v765
    %v819 = vadd.f32 %v667, %v768
    %v820 = vadd.f32 %v668, %v770
    %v821 = vadd.f32 %v669, %v773
    %v822 = vadd.f32 %v670, %v775
    %v823 = vadd.f32 %v671, %v778
    %v824 = vadd.f32 %v672, %v780
    %v825 = vadd.f32 %v673, %v783
    %v826 = vadd.f32 %v674, %v785
    %v827 = vadd.f32 %v675, %v788
    %v828 = vadd.f32 %v676, %v790
    %v829 = vadd.f32 %v677, %v793
    %v830 = vadd.f32 %v678, %v795
    %v831 = vadd.f32 %v679, %v798
    %v832 = vadd.f32 %v680, %v800
    %835 = vrot.lane.b32.xlu0 %v817, 127
    %v836 = vpop.permute.xlu0 %835
    %837 = vrot.lane.b32.xlu0 %v818, 127
    %v838 = vpop.permute.xlu0 %837
    %vm839 = vcmask 130048
    %v840 = vsel %vm839, %v836, 0
    %v842 = vsel %vm839, %v838, 0
    %844 = vmatprep.subr.mxu0 0.0
    %845 = vmatpush1.msra.mxu0 0.0
    %846 = vmatprep.subr.mxu0 0.0
    %847 = vmatpush1.msra.mxu0 0.0
    %848 = vmatprep.subr.mxu0 0.0
    %849 = vmatpush1.msra.mxu0 0.0
    %850 = vmatprep.subr.mxu0 0.0
    %851 = vmatpush1.msra.mxu0 0.0
    %852 = vmatprep.subr.mxu0 0.0
    %853 = vmatpush1.msra.mxu0 0.0
    %854 = vmatprep.subr.mxu0 0.0
    %855 = vmatpush1.msra.mxu0 0.0
    %856 = vmatprep.subr.mxu0 0.0
    %857 = vmatpush1.msra.mxu0 0.0
    %858 = vmatprep.subr.mxu0 0.0
    %859 = vmatpush1.msra.mxu0 0.0
    %860 = vmatprep.subr.mxu0 0.0
    %861 = vmatpush1.msra.mxu0 0.0
    %862 = vmatprep.subr.mxu0 0.0
    %863 = vmatpush1.msra.mxu0 0.0
    %864 = vmatprep.subr.mxu0 0.0
    %865 = vmatpush1.msra.mxu0 0.0
    %866 = vmatprep.subr.mxu0 0.0
    %867 = vmatpush1.msra.mxu0 0.0
    %868 = vmatprep.subr.mxu0 0.0
    %869 = vmatpush1.msra.mxu0 0.0
    %870 = vmatprep.subr.mxu0 0.0
    %871 = vmatpush1.msra.mxu0 0.0
    %872 = vmatprep.subr.mxu0 0.0
    %873 = vmatpush1.msra.mxu0 %v239
    %874 = vmatprep.subr.mxu0 0.0
    %875 = vmatpush1.msra.mxu0 %v238
    %876 = vmatprep.subr.mxu0 0.0
    %877 = vmatpush2.msra.mxu0 0.0
    %878 = vmatprep.subr.mxu0 0.0
    %879 = vmatpush2.msra.mxu0 0.0
    %880 = vmatprep.subr.mxu0 0.0
    %881 = vmatpush2.msra.mxu0 0.0
    %882 = vmatprep.subr.mxu0 0.0
    %883 = vmatpush2.msra.mxu0 0.0
    %884 = vmatprep.subr.mxu0 0.0
    %885 = vmatpush2.msra.mxu0 0.0
    %886 = vmatprep.subr.mxu0 0.0
    %887 = vmatpush2.msra.mxu0 0.0
    %888 = vmatprep.subr.mxu0 0.0
    %889 = vmatpush2.msra.mxu0 0.0
    %890 = vmatprep.subr.mxu0 0.0
    %891 = vmatpush2.msra.mxu0 0.0
    %892 = vmatprep.subr.mxu0 0.0
    %893 = vmatpush2.msra.mxu0 0.0
    %894 = vmatprep.subr.mxu0 0.0
    %895 = vmatpush2.msra.mxu0 0.0
    %896 = vmatprep.subr.mxu0 0.0
    %897 = vmatpush2.msra.mxu0 0.0
    %898 = vmatprep.subr.mxu0 0.0
    %899 = vmatpush2.msra.mxu0 0.0
    %900 = vmatprep.subr.mxu0 0.0
    %901 = vmatpush2.msra.mxu0 0.0
    %902 = vmatprep.subr.mxu0 0.0
    %903 = vmatpush2.msra.mxu0 0.0
    %904 = vmatprep.subr.mxu0 0.0
    %905 = vmatpush2.msra.mxu0 0.0
    %906 = vmatprep.subr.mxu0 0.0
    %907 = vmatpush2.msra.mxu0 0.0
    %908 = vmatprep.mubr.f32.mxu0 0.0
    %909 = vmatmul.mubr.f32.gmra.mxu0 %v840
    %v910 = vpop.f32.mrf.mxu0
    %v911 = vadd.f32 0.0, %v910
    %v912 = vpop.f32.mrf.mxu0
    %913 = vmatprep.mubr.f32.mxu0 0.0
    %914 = vmatmul.mubr.f32.gmra.mxu0 %v842
    %v915 = vpop.f32.mrf.mxu0
    %v916 = vadd.f32 0.0, %v915
    %v917 = vpop.f32.mrf.mxu0
    %918 = vdwg.mxu0
    %921 = vrot.lane.b32.xlu0 %v819, 127
    %v922 = vpop.permute.xlu0 %921
    %923 = vrot.lane.b32.xlu0 %v820, 127
    %v924 = vpop.permute.xlu0 %923
    %v925 = vsel %vm839, %v922, 0
    %v927 = vsel %vm839, %v924, 0
    %929 = vmatprep.subr.mxu0 0.0
    %930 = vmatpush1.msra.mxu0 0.0
    %931 = vmatprep.subr.mxu0 0.0
    %932 = vmatpush1.msra.mxu0 0.0
    %933 = vmatprep.subr.mxu0 0.0
    %934 = vmatpush1.msra.mxu0 0.0
    %935 = vmatprep.subr.mxu0 0.0
    %936 = vmatpush1.msra.mxu0 0.0
    %937 = vmatprep.subr.mxu0 0.0
    %938 = vmatpush1.msra.mxu0 0.0
    %939 = vmatprep.subr.mxu0 0.0
    %940 = vmatpush1.msra.mxu0 0.0
    %941 = vmatprep.subr.mxu0 0.0
    %942 = vmatpush1.msra.mxu0 0.0
    %943 = vmatprep.subr.mxu0 0.0
    %944 = vmatpush1.msra.mxu0 0.0
    %945 = vmatprep.subr.mxu0 0.0
    %946 = vmatpush1.msra.mxu0 0.0
    %947 = vmatprep.subr.mxu0 0.0
    %948 = vmatpush1.msra.mxu0 0.0
    %949 = vmatprep.subr.mxu0 0.0
    %950 = vmatpush1.msra.mxu0 0.0
    %951 = vmatprep.subr.mxu0 0.0
    %952 = vmatpush1.msra.mxu0 0.0
    %953 = vmatprep.subr.mxu0 0.0
    %954 = vmatpush1.msra.mxu0 0.0
    %955 = vmatprep.subr.mxu0 0.0
    %956 = vmatpush1.msra.mxu0 0.0
    %957 = vmatprep.subr.mxu0 0.0
    %958 = vmatpush1.msra.mxu0 %v239
    %959 = vmatprep.subr.mxu0 0.0
    %960 = vmatpush1.msra.mxu0 %v238
    %961 = vmatprep.subr.mxu0 0.0
    %962 = vmatpush2.msra.mxu0 0.0
    %963 = vmatprep.subr.mxu0 0.0
    %964 = vmatpush2.msra.mxu0 0.0
    %965 = vmatprep.subr.mxu0 0.0
    %966 = vmatpush2.msra.mxu0 0.0
    %967 = vmatprep.subr.mxu0 0.0
    %968 = vmatpush2.msra.mxu0 0.0
    %969 = vmatprep.subr.mxu0 0.0
    %970 = vmatpush2.msra.mxu0 0.0
    %971 = vmatprep.subr.mxu0 0.0
    %972 = vmatpush2.msra.mxu0 0.0
    %973 = vmatprep.subr.mxu0 0.0
    %974 = vmatpush2.msra.mxu0 0.0
    %975 = vmatprep.subr.mxu0 0.0
    %976 = vmatpush2.msra.mxu0 0.0
    %977 = vmatprep.subr.mxu0 0.0
    %978 = vmatpush2.msra.mxu0 0.0
    %979 = vmatprep.subr.mxu0 0.0
    %980 = vmatpush2.msra.mxu0 0.0
    %981 = vmatprep.subr.mxu0 0.0
    %982 = vmatpush2.msra.mxu0 0.0
    %983 = vmatprep.subr.mxu0 0.0
    %984 = vmatpush2.msra.mxu0 0.0
    %985 = vmatprep.subr.mxu0 0.0
    %986 = vmatpush2.msra.mxu0 0.0
    %987 = vmatprep.subr.mxu0 0.0
    %988 = vmatpush2.msra.mxu0 0.0
    %989 = vmatprep.subr.mxu0 0.0
    %990 = vmatpush2.msra.mxu0 0.0
    %991 = vmatprep.subr.mxu0 0.0
    %992 = vmatpush2.msra.mxu0 0.0
    %993 = vmatprep.mubr.f32.mxu0 0.0
    %994 = vmatmul.mubr.f32.gmra.mxu0 %v925
    %v995 = vpop.f32.mrf.mxu0
    %v996 = vadd.f32 0.0, %v995
    %v997 = vpop.f32.mrf.mxu0
    %998 = vmatprep.mubr.f32.mxu0 0.0
    %999 = vmatmul.mubr.f32.gmra.mxu0 %v927
    %v1000 = vpop.f32.mrf.mxu0
    %v1001 = vadd.f32 0.0, %v1000
    %v1002 = vpop.f32.mrf.mxu0
    %1003 = vdwg.mxu0
    %1006 = vrot.lane.b32.xlu0 %v821, 127
    %v1007 = vpop.permute.xlu0 %1006
    %1008 = vrot.lane.b32.xlu0 %v822, 127
    %v1009 = vpop.permute.xlu0 %1008
    %v1010 = vsel %vm839, %v1007, 0
    %v1012 = vsel %vm839, %v1009, 0
    %1014 = vmatprep.subr.mxu0 0.0
    %1015 = vmatpush1.msra.mxu0 0.0
    %1016 = vmatprep.subr.mxu0 0.0
    %1017 = vmatpush1.msra.mxu0 0.0
    %1018 = vmatprep.subr.mxu0 0.0
    %1019 = vmatpush1.msra.mxu0 0.0
    %1020 = vmatprep.subr.mxu0 0.0
    %1021 = vmatpush1.msra.mxu0 0.0
    %1022 = vmatprep.subr.mxu0 0.0
    %1023 = vmatpush1.msra.mxu0 0.0
    %1024 = vmatprep.subr.mxu0 0.0
    %1025 = vmatpush1.msra.mxu0 0.0
    %1026 = vmatprep.subr.mxu0 0.0
    %1027 = vmatpush1.msra.mxu0 0.0
    %1028 = vmatprep.subr.mxu0 0.0
    %1029 = vmatpush1.msra.mxu0 0.0
    %1030 = vmatprep.subr.mxu0 0.0
    %1031 = vmatpush1.msra.mxu0 0.0
    %1032 = vmatprep.subr.mxu0 0.0
    %1033 = vmatpush1.msra.mxu0 0.0
    %1034 = vmatprep.subr.mxu0 0.0
    %1035 = vmatpush1.msra.mxu0 0.0
    %1036 = vmatprep.subr.mxu0 0.0
    %1037 = vmatpush1.msra.mxu0 0.0
    %1038 = vmatprep.subr.mxu0 0.0
    %1039 = vmatpush1.msra.mxu0 0.0
    %1040 = vmatprep.subr.mxu0 0.0
    %1041 = vmatpush1.msra.mxu0 0.0
    %1042 = vmatprep.subr.mxu0 0.0
    %1043 = vmatpush1.msra.mxu0 %v239
    %1044 = vmatprep.subr.mxu0 0.0
    %1045 = vmatpush1.msra.mxu0 %v238
    %1046 = vmatprep.subr.mxu0 0.0
    %1047 = vmatpush2.msra.mxu0 0.0
    %1048 = vmatprep.subr.mxu0 0.0
    %1049 = vmatpush2.msra.mxu0 0.0
    %1050 = vmatprep.subr.mxu0 0.0
    %1051 = vmatpush2.msra.mxu0 0.0
    %1052 = vmatprep.subr.mxu0 0.0
    %1053 = vmatpush2.msra.mxu0 0.0
    %1054 = vmatprep.subr.mxu0 0.0
    %1055 = vmatpush2.msra.mxu0 0.0
    %1056 = vmatprep.subr.mxu0 0.0
    %1057 = vmatpush2.msra.mxu0 0.0
    %1058 = vmatprep.subr.mxu0 0.0
    %1059 = vmatpush2.msra.mxu0 0.0
    %1060 = vmatprep.subr.mxu0 0.0
    %1061 = vmatpush2.msra.mxu0 0.0
    %1062 = vmatprep.subr.mxu0 0.0
    %1063 = vmatpush2.msra.mxu0 0.0
    %1064 = vmatprep.subr.mxu0 0.0
    %1065 = vmatpush2.msra.mxu0 0.0
    %1066 = vmatprep.subr.mxu0 0.0
    %1067 = vmatpush2.msra.mxu0 0.0
    %1068 = vmatprep.subr.mxu0 0.0
    %1069 = vmatpush2.msra.mxu0 0.0
    %1070 = vmatprep.subr.mxu0 0.0
    %1071 = vmatpush2.msra.mxu0 0.0
    %1072 = vmatprep.subr.mxu0 0.0
    %1073 = vmatpush2.msra.mxu0 0.0
    %1074 = vmatprep.subr.mxu0 0.0
    %1075 = vmatpush2.msra.mxu0 0.0
    %1076 = vmatprep.subr.mxu0 0.0
    %1077 = vmatpush2.msra.mxu0 0.0
    %1078 = vmatprep.mubr.f32.mxu0 0.0
    %1079 = vmatmul.mubr.f32.gmra.mxu0 %v1010
    %v1080 = vpop.f32.mrf.mxu0
    %v1081 = vadd.f32 0.0, %v1080
    %v1082 = vpop.f32.mrf.mxu0
    %1083 = vmatprep.mubr.f32.mxu0 0.0
    %1084 = vmatmul.mubr.f32.gmra.mxu0 %v1012
    %v1085 = vpop.f32.mrf.mxu0
    %v1086 = vadd.f32 0.0, %v1085
    %v1087 = vpop.f32.mrf.mxu0
    %1088 = vdwg.mxu0
    %1091 = vrot.lane.b32.xlu0 %v823, 127
    %v1092 = vpop.permute.xlu0 %1091
    %1093 = vrot.lane.b32.xlu0 %v824, 127
    %v1094 = vpop.permute.xlu0 %1093
    %v1095 = vsel %vm839, %v1092, 0
    %v1097 = vsel %vm839, %v1094, 0
    %1099 = vmatprep.subr.mxu0 0.0
    %1100 = vmatpush1.msra.mxu0 0.0
    %1101 = vmatprep.subr.mxu0 0.0
    %1102 = vmatpush1.msra.mxu0 0.0
    %1103 = vmatprep.subr.mxu0 0.0
    %1104 = vmatpush1.msra.mxu0 0.0
    %1105 = vmatprep.subr.mxu0 0.0
    %1106 = vmatpush1.msra.mxu0 0.0
    %1107 = vmatprep.subr.mxu0 0.0
    %1108 = vmatpush1.msra.mxu0 0.0
    %1109 = vmatprep.subr.mxu0 0.0
    %1110 = vmatpush1.msra.mxu0 0.0
    %1111 = vmatprep.subr.mxu0 0.0
    %1112 = vmatpush1.msra.mxu0 0.0
    %1113 = vmatprep.subr.mxu0 0.0
    %1114 = vmatpush1.msra.mxu0 0.0
    %1115 = vmatprep.subr.mxu0 0.0
    %1116 = vmatpush1.msra.mxu0 0.0
    %1117 = vmatprep.subr.mxu0 0.0
    %1118 = vmatpush1.msra.mxu0 0.0
    %1119 = vmatprep.subr.mxu0 0.0
    %1120 = vmatpush1.msra.mxu0 0.0
    %1121 = vmatprep.subr.mxu0 0.0
    %1122 = vmatpush1.msra.mxu0 0.0
    %1123 = vmatprep.subr.mxu0 0.0
    %1124 = vmatpush1.msra.mxu0 0.0
    %1125 = vmatprep.subr.mxu0 0.0
    %1126 = vmatpush1.msra.mxu0 0.0
    %1127 = vmatprep.subr.mxu0 0.0
    %1128 = vmatpush1.msra.mxu0 %v239
    %1129 = vmatprep.subr.mxu0 0.0
    %1130 = vmatpush1.msra.mxu0 %v238
    %1131 = vmatprep.subr.mxu0 0.0
    %1132 = vmatpush2.msra.mxu0 0.0
    %1133 = vmatprep.subr.mxu0 0.0
    %1134 = vmatpush2.msra.mxu0 0.0
    %1135 = vmatprep.subr.mxu0 0.0
    %1136 = vmatpush2.msra.mxu0 0.0
    %1137 = vmatprep.subr.mxu0 0.0
    %1138 = vmatpush2.msra.mxu0 0.0
    %1139 = vmatprep.subr.mxu0 0.0
    %1140 = vmatpush2.msra.mxu0 0.0
    %1141 = vmatprep.subr.mxu0 0.0
    %1142 = vmatpush2.msra.mxu0 0.0
    %1143 = vmatprep.subr.mxu0 0.0
    %1144 = vmatpush2.msra.mxu0 0.0
    %1145 = vmatprep.subr.mxu0 0.0
    %1146 = vmatpush2.msra.mxu0 0.0
    %1147 = vmatprep.subr.mxu0 0.0
    %1148 = vmatpush2.msra.mxu0 0.0
    %1149 = vmatprep.subr.mxu0 0.0
    %1150 = vmatpush2.msra.mxu0 0.0
    %1151 = vmatprep.subr.mxu0 0.0
    %1152 = vmatpush2.msra.mxu0 0.0
    %1153 = vmatprep.subr.mxu0 0.0
    %1154 = vmatpush2.msra.mxu0 0.0
    %1155 = vmatprep.subr.mxu0 0.0
    %1156 = vmatpush2.msra.mxu0 0.0
    %1157 = vmatprep.subr.mxu0 0.0
    %1158 = vmatpush2.msra.mxu0 0.0
    %1159 = vmatprep.subr.mxu0 0.0
    %1160 = vmatpush2.msra.mxu0 0.0
    %1161 = vmatprep.subr.mxu0 0.0
    %1162 = vmatpush2.msra.mxu0 0.0
    %1163 = vmatprep.mubr.f32.mxu0 0.0
    %1164 = vmatmul.mubr.f32.gmra.mxu0 %v1095
    %v1165 = vpop.f32.mrf.mxu0
    %v1166 = vadd.f32 0.0, %v1165
    %v1167 = vpop.f32.mrf.mxu0
    %1168 = vmatprep.mubr.f32.mxu0 0.0
    %1169 = vmatmul.mubr.f32.gmra.mxu0 %v1097
    %v1170 = vpop.f32.mrf.mxu0
    %v1171 = vadd.f32 0.0, %v1170
    %v1172 = vpop.f32.mrf.mxu0
    %1173 = vdwg.mxu0
    %1176 = vrot.lane.b32.xlu0 %v825, 127
    %v1177 = vpop.permute.xlu0 %1176
    %1178 = vrot.lane.b32.xlu0 %v826, 127
    %v1179 = vpop.permute.xlu0 %1178
    %v1180 = vsel %vm839, %v1177, 0
    %v1182 = vsel %vm839, %v1179, 0
    %1184 = vmatprep.subr.mxu0 0.0
    %1185 = vmatpush1.msra.mxu0 0.0
    %1186 = vmatprep.subr.mxu0 0.0
    %1187 = vmatpush1.msra.mxu0 0.0
    %1188 = vmatprep.subr.mxu0 0.0
    %1189 = vmatpush1.msra.mxu0 0.0
    %1190 = vmatprep.subr.mxu0 0.0
    %1191 = vmatpush1.msra.mxu0 0.0
    %1192 = vmatprep.subr.mxu0 0.0
    %1193 = vmatpush1.msra.mxu0 0.0
    %1194 = vmatprep.subr.mxu0 0.0
    %1195 = vmatpush1.msra.mxu0 0.0
    %1196 = vmatprep.subr.mxu0 0.0
    %1197 = vmatpush1.msra.mxu0 0.0
    %1198 = vmatprep.subr.mxu0 0.0
    %1199 = vmatpush1.msra.mxu0 0.0
    %1200 = vmatprep.subr.mxu0 0.0
    %1201 = vmatpush1.msra.mxu0 0.0
    %1202 = vmatprep.subr.mxu0 0.0
    %1203 = vmatpush1.msra.mxu0 0.0
    %1204 = vmatprep.subr.mxu0 0.0
    %1205 = vmatpush1.msra.mxu0 0.0
    %1206 = vmatprep.subr.mxu0 0.0
    %1207 = vmatpush1.msra.mxu0 0.0
    %1208 = vmatprep.subr.mxu0 0.0
    %1209 = vmatpush1.msra.mxu0 0.0
    %1210 = vmatprep.subr.mxu0 0.0
    %1211 = vmatpush1.msra.mxu0 0.0
    %1212 = vmatprep.subr.mxu0 0.0
    %1213 = vmatpush1.msra.mxu0 %v239
    %1214 = vmatprep.subr.mxu0 0.0
    %1215 = vmatpush1.msra.mxu0 %v238
    %1216 = vmatprep.subr.mxu0 0.0
    %1217 = vmatpush2.msra.mxu0 0.0
    %1218 = vmatprep.subr.mxu0 0.0
    %1219 = vmatpush2.msra.mxu0 0.0
    %1220 = vmatprep.subr.mxu0 0.0
    %1221 = vmatpush2.msra.mxu0 0.0
    %1222 = vmatprep.subr.mxu0 0.0
    %1223 = vmatpush2.msra.mxu0 0.0
    %1224 = vmatprep.subr.mxu0 0.0
    %1225 = vmatpush2.msra.mxu0 0.0
    %1226 = vmatprep.subr.mxu0 0.0
    %1227 = vmatpush2.msra.mxu0 0.0
    %1228 = vmatprep.subr.mxu0 0.0
    %1229 = vmatpush2.msra.mxu0 0.0
    %1230 = vmatprep.subr.mxu0 0.0
    %1231 = vmatpush2.msra.mxu0 0.0
    %1232 = vmatprep.subr.mxu0 0.0
    %1233 = vmatpush2.msra.mxu0 0.0
    %1234 = vmatprep.subr.mxu0 0.0
    %1235 = vmatpush2.msra.mxu0 0.0
    %1236 = vmatprep.subr.mxu0 0.0
    %1237 = vmatpush2.msra.mxu0 0.0
    %1238 = vmatprep.subr.mxu0 0.0
    %1239 = vmatpush2.msra.mxu0 0.0
    %1240 = vmatprep.subr.mxu0 0.0
    %1241 = vmatpush2.msra.mxu0 0.0
    %1242 = vmatprep.subr.mxu0 0.0
    %1243 = vmatpush2.msra.mxu0 0.0
    %1244 = vmatprep.subr.mxu0 0.0
    %1245 = vmatpush2.msra.mxu0 0.0
    %1246 = vmatprep.subr.mxu0 0.0
    %1247 = vmatpush2.msra.mxu0 0.0
    %1248 = vmatprep.mubr.f32.mxu0 0.0
    %1249 = vmatmul.mubr.f32.gmra.mxu0 %v1180
    %v1250 = vpop.f32.mrf.mxu0
    %v1251 = vadd.f32 0.0, %v1250
    %v1252 = vpop.f32.mrf.mxu0
    %1253 = vmatprep.mubr.f32.mxu0 0.0
    %1254 = vmatmul.mubr.f32.gmra.mxu0 %v1182
    %v1255 = vpop.f32.mrf.mxu0
    %v1256 = vadd.f32 0.0, %v1255
    %v1257 = vpop.f32.mrf.mxu0
    %1258 = vdwg.mxu0
    %1261 = vrot.lane.b32.xlu0 %v827, 127
    %v1262 = vpop.permute.xlu0 %1261
    %1263 = vrot.lane.b32.xlu0 %v828, 127
    %v1264 = vpop.permute.xlu0 %1263
    %v1265 = vsel %vm839, %v1262, 0
    %v1267 = vsel %vm839, %v1264, 0
    %1269 = vmatprep.subr.mxu0 0.0
    %1270 = vmatpush1.msra.mxu0 0.0
    %1271 = vmatprep.subr.mxu0 0.0
    %1272 = vmatpush1.msra.mxu0 0.0
    %1273 = vmatprep.subr.mxu0 0.0
    %1274 = vmatpush1.msra.mxu0 0.0
    %1275 = vmatprep.subr.mxu0 0.0
    %1276 = vmatpush1.msra.mxu0 0.0
    %1277 = vmatprep.subr.mxu0 0.0
    %1278 = vmatpush1.msra.mxu0 0.0
    %1279 = vmatprep.subr.mxu0 0.0
    %1280 = vmatpush1.msra.mxu0 0.0
    %1281 = vmatprep.subr.mxu0 0.0
    %1282 = vmatpush1.msra.mxu0 0.0
    %1283 = vmatprep.subr.mxu0 0.0
    %1284 = vmatpush1.msra.mxu0 0.0
    %1285 = vmatprep.subr.mxu0 0.0
    %1286 = vmatpush1.msra.mxu0 0.0
    %1287 = vmatprep.subr.mxu0 0.0
    %1288 = vmatpush1.msra.mxu0 0.0
    %1289 = vmatprep.subr.mxu0 0.0
    %1290 = vmatpush1.msra.mxu0 0.0
    %1291 = vmatprep.subr.mxu0 0.0
    %1292 = vmatpush1.msra.mxu0 0.0
    %1293 = vmatprep.subr.mxu0 0.0
    %1294 = vmatpush1.msra.mxu0 0.0
    %1295 = vmatprep.subr.mxu0 0.0
    %1296 = vmatpush1.msra.mxu0 0.0
    %1297 = vmatprep.subr.mxu0 0.0
    %1298 = vmatpush1.msra.mxu0 %v239
    %1299 = vmatprep.subr.mxu0 0.0
    %1300 = vmatpush1.msra.mxu0 %v238
    %1301 = vmatprep.subr.mxu0 0.0
    %1302 = vmatpush2.msra.mxu0 0.0
    %1303 = vmatprep.subr.mxu0 0.0
    %1304 = vmatpush2.msra.mxu0 0.0
    %1305 = vmatprep.subr.mxu0 0.0
    %1306 = vmatpush2.msra.mxu0 0.0
    %1307 = vmatprep.subr.mxu0 0.0
    %1308 = vmatpush2.msra.mxu0 0.0
    %1309 = vmatprep.subr.mxu0 0.0
    %1310 = vmatpush2.msra.mxu0 0.0
    %1311 = vmatprep.subr.mxu0 0.0
    %1312 = vmatpush2.msra.mxu0 0.0
    %1313 = vmatprep.subr.mxu0 0.0
    %1314 = vmatpush2.msra.mxu0 0.0
    %1315 = vmatprep.subr.mxu0 0.0
    %1316 = vmatpush2.msra.mxu0 0.0
    %1317 = vmatprep.subr.mxu0 0.0
    %1318 = vmatpush2.msra.mxu0 0.0
    %1319 = vmatprep.subr.mxu0 0.0
    %1320 = vmatpush2.msra.mxu0 0.0
    %1321 = vmatprep.subr.mxu0 0.0
    %1322 = vmatpush2.msra.mxu0 0.0
    %1323 = vmatprep.subr.mxu0 0.0
    %1324 = vmatpush2.msra.mxu0 0.0
    %1325 = vmatprep.subr.mxu0 0.0
    %1326 = vmatpush2.msra.mxu0 0.0
    %1327 = vmatprep.subr.mxu0 0.0
    %1328 = vmatpush2.msra.mxu0 0.0
    %1329 = vmatprep.subr.mxu0 0.0
    %1330 = vmatpush2.msra.mxu0 0.0
    %1331 = vmatprep.subr.mxu0 0.0
    %1332 = vmatpush2.msra.mxu0 0.0
    %1333 = vmatprep.mubr.f32.mxu0 0.0
    %1334 = vmatmul.mubr.f32.gmra.mxu0 %v1265
    %v1335 = vpop.f32.mrf.mxu0
    %v1336 = vadd.f32 0.0, %v1335
    %v1337 = vpop.f32.mrf.mxu0
    %1338 = vmatprep.mubr.f32.mxu0 0.0
    %1339 = vmatmul.mubr.f32.gmra.mxu0 %v1267
    %v1340 = vpop.f32.mrf.mxu0
    %v1341 = vadd.f32 0.0, %v1340
    %v1342 = vpop.f32.mrf.mxu0
    %1343 = vdwg.mxu0
    %1346 = vrot.lane.b32.xlu0 %v829, 127
    %v1347 = vpop.permute.xlu0 %1346
    %1348 = vrot.lane.b32.xlu0 %v830, 127
    %v1349 = vpop.permute.xlu0 %1348
    %v1350 = vsel %vm839, %v1347, 0
    %v1352 = vsel %vm839, %v1349, 0
    %1354 = vmatprep.subr.mxu0 0.0
    %1355 = vmatpush1.msra.mxu0 0.0
    %1356 = vmatprep.subr.mxu0 0.0
    %1357 = vmatpush1.msra.mxu0 0.0
    %1358 = vmatprep.subr.mxu0 0.0
    %1359 = vmatpush1.msra.mxu0 0.0
    %1360 = vmatprep.subr.mxu0 0.0
    %1361 = vmatpush1.msra.mxu0 0.0
    %1362 = vmatprep.subr.mxu0 0.0
    %1363 = vmatpush1.msra.mxu0 0.0
    %1364 = vmatprep.subr.mxu0 0.0
    %1365 = vmatpush1.msra.mxu0 0.0
    %1366 = vmatprep.subr.mxu0 0.0
    %1367 = vmatpush1.msra.mxu0 0.0
    %1368 = vmatprep.subr.mxu0 0.0
    %1369 = vmatpush1.msra.mxu0 0.0
    %1370 = vmatprep.subr.mxu0 0.0
    %1371 = vmatpush1.msra.mxu0 0.0
    %1372 = vmatprep.subr.mxu0 0.0
    %1373 = vmatpush1.msra.mxu0 0.0
    %1374 = vmatprep.subr.mxu0 0.0
    %1375 = vmatpush1.msra.mxu0 0.0
    %1376 = vmatprep.subr.mxu0 0.0
    %1377 = vmatpush1.msra.mxu0 0.0
    %1378 = vmatprep.subr.mxu0 0.0
    %1379 = vmatpush1.msra.mxu0 0.0
    %1380 = vmatprep.subr.mxu0 0.0
    %1381 = vmatpush1.msra.mxu0 0.0
    %1382 = vmatprep.subr.mxu0 0.0
    %1383 = vmatpush1.msra.mxu0 %v239
    %1384 = vmatprep.subr.mxu0 0.0
    %1385 = vmatpush1.msra.mxu0 %v238
    %1386 = vmatprep.subr.mxu0 0.0
    %1387 = vmatpush2.msra.mxu0 0.0
    %1388 = vmatprep.subr.mxu0 0.0
    %1389 = vmatpush2.msra.mxu0 0.0
    %1390 = vmatprep.subr.mxu0 0.0
    %1391 = vmatpush2.msra.mxu0 0.0
    %1392 = vmatprep.subr.mxu0 0.0
    %1393 = vmatpush2.msra.mxu0 0.0
    %1394 = vmatprep.subr.mxu0 0.0
    %1395 = vmatpush2.msra.mxu0 0.0
    %1396 = vmatprep.subr.mxu0 0.0
    %1397 = vmatpush2.msra.mxu0 0.0
    %1398 = vmatprep.subr.mxu0 0.0
    %1399 = vmatpush2.msra.mxu0 0.0
    %1400 = vmatprep.subr.mxu0 0.0
    %1401 = vmatpush2.msra.mxu0 0.0
    %1402 = vmatprep.subr.mxu0 0.0
    %1403 = vmatpush2.msra.mxu0 0.0
    %1404 = vmatprep.subr.mxu0 0.0
    %1405 = vmatpush2.msra.mxu0 0.0
    %1406 = vmatprep.subr.mxu0 0.0
    %1407 = vmatpush2.msra.mxu0 0.0
    %1408 = vmatprep.subr.mxu0 0.0
    %1409 = vmatpush2.msra.mxu0 0.0
    %1410 = vmatprep.subr.mxu0 0.0
    %1411 = vmatpush2.msra.mxu0 0.0
    %1412 = vmatprep.subr.mxu0 0.0
    %1413 = vmatpush2.msra.mxu0 0.0
    %1414 = vmatprep.subr.mxu0 0.0
    %1415 = vmatpush2.msra.mxu0 0.0
    %1416 = vmatprep.subr.mxu0 0.0
    %1417 = vmatpush2.msra.mxu0 0.0
    %1418 = vmatprep.mubr.f32.mxu0 0.0
    %1419 = vmatmul.mubr.f32.gmra.mxu0 %v1350
    %v1420 = vpop.f32.mrf.mxu0
    %v1421 = vadd.f32 0.0, %v1420
    %v1422 = vpop.f32.mrf.mxu0
    %1423 = vmatprep.mubr.f32.mxu0 0.0
    %1424 = vmatmul.mubr.f32.gmra.mxu0 %v1352
    %v1425 = vpop.f32.mrf.mxu0
    %v1426 = vadd.f32 0.0, %v1425
    %v1427 = vpop.f32.mrf.mxu0
    %1428 = vdwg.mxu0
    %1431 = vrot.lane.b32.xlu0 %v831, 127
    %v1432 = vpop.permute.xlu0 %1431
    %1433 = vrot.lane.b32.xlu0 %v832, 127
    %v1434 = vpop.permute.xlu0 %1433
    %v1435 = vsel %vm839, %v1432, 0
    %v1437 = vsel %vm839, %v1434, 0
    %1439 = vmatprep.subr.mxu0 0.0
    %1440 = vmatpush1.msra.mxu0 0.0
    %1441 = vmatprep.subr.mxu0 0.0
    %1442 = vmatpush1.msra.mxu0 0.0
    %1443 = vmatprep.subr.mxu0 0.0
    %1444 = vmatpush1.msra.mxu0 0.0
    %1445 = vmatprep.subr.mxu0 0.0
    %1446 = vmatpush1.msra.mxu0 0.0
    %1447 = vmatprep.subr.mxu0 0.0
    %1448 = vmatpush1.msra.mxu0 0.0
    %1449 = vmatprep.subr.mxu0 0.0
    %1450 = vmatpush1.msra.mxu0 0.0
    %1451 = vmatprep.subr.mxu0 0.0
    %1452 = vmatpush1.msra.mxu0 0.0
    %1453 = vmatprep.subr.mxu0 0.0
    %1454 = vmatpush1.msra.mxu0 0.0
    %1455 = vmatprep.subr.mxu0 0.0
    %1456 = vmatpush1.msra.mxu0 0.0
    %1457 = vmatprep.subr.mxu0 0.0
    %1458 = vmatpush1.msra.mxu0 0.0
    %1459 = vmatprep.subr.mxu0 0.0
    %1460 = vmatpush1.msra.mxu0 0.0
    %1461 = vmatprep.subr.mxu0 0.0
    %1462 = vmatpush1.msra.mxu0 0.0
    %1463 = vmatprep.subr.mxu0 0.0
    %1464 = vmatpush1.msra.mxu0 0.0
    %1465 = vmatprep.subr.mxu0 0.0
    %1466 = vmatpush1.msra.mxu0 0.0
    %1467 = vmatprep.subr.mxu0 0.0
    %1468 = vmatpush1.msra.mxu0 %v239
    %1469 = vmatprep.subr.mxu0 0.0
    %1470 = vmatpush1.msra.mxu0 %v238
    %1471 = vmatprep.subr.mxu0 0.0
    %1472 = vmatpush2.msra.mxu0 0.0
    %1473 = vmatprep.subr.mxu0 0.0
    %1474 = vmatpush2.msra.mxu0 0.0
    %1475 = vmatprep.subr.mxu0 0.0
    %1476 = vmatpush2.msra.mxu0 0.0
    %1477 = vmatprep.subr.mxu0 0.0
    %1478 = vmatpush2.msra.mxu0 0.0
    %1479 = vmatprep.subr.mxu0 0.0
    %1480 = vmatpush2.msra.mxu0 0.0
    %1481 = vmatprep.subr.mxu0 0.0
    %1482 = vmatpush2.msra.mxu0 0.0
    %1483 = vmatprep.subr.mxu0 0.0
    %1484 = vmatpush2.msra.mxu0 0.0
    %1485 = vmatprep.subr.mxu0 0.0
    %1486 = vmatpush2.msra.mxu0 0.0
    %1487 = vmatprep.subr.mxu0 0.0
    %1488 = vmatpush2.msra.mxu0 0.0
    %1489 = vmatprep.subr.mxu0 0.0
    %1490 = vmatpush2.msra.mxu0 0.0
    %1491 = vmatprep.subr.mxu0 0.0
    %1492 = vmatpush2.msra.mxu0 0.0
    %1493 = vmatprep.subr.mxu0 0.0
    %1494 = vmatpush2.msra.mxu0 0.0
    %1495 = vmatprep.subr.mxu0 0.0
    %1496 = vmatpush2.msra.mxu0 0.0
    %1497 = vmatprep.subr.mxu0 0.0
    %1498 = vmatpush2.msra.mxu0 0.0
    %1499 = vmatprep.subr.mxu0 0.0
    %1500 = vmatpush2.msra.mxu0 0.0
    %1501 = vmatprep.subr.mxu0 0.0
    %1502 = vmatpush2.msra.mxu0 0.0
    %1503 = vmatprep.mubr.f32.mxu0 0.0
    %1504 = vmatmul.mubr.f32.gmra.mxu0 %v1435
    %v1505 = vpop.f32.mrf.mxu0
    %v1506 = vadd.f32 0.0, %v1505
    %v1507 = vpop.f32.mrf.mxu0
    %1508 = vmatprep.mubr.f32.mxu0 0.0
    %1509 = vmatmul.mubr.f32.gmra.mxu0 %v1437
    %v1510 = vpop.f32.mrf.mxu0
    %v1511 = vadd.f32 0.0, %v1510
    %v1512 = vpop.f32.mrf.mxu0
    %1513 = vdwg.mxu0
    %v1515 = vsel %vm839, %v585, 0
    %v1518 = vsel %vm839, %v586, 0
    %1520 = vmatprep.subr.mxu0 0.0
    %1521 = vmatpush1.msra.mxu0 0.0
    %1522 = vmatprep.subr.mxu0 0.0
    %1523 = vmatpush1.msra.mxu0 0.0
    %1524 = vmatprep.subr.mxu0 0.0
    %1525 = vmatpush1.msra.mxu0 0.0
    %1526 = vmatprep.subr.mxu0 0.0
    %1527 = vmatpush1.msra.mxu0 0.0
    %1528 = vmatprep.subr.mxu0 0.0
    %1529 = vmatpush1.msra.mxu0 0.0
    %1530 = vmatprep.subr.mxu0 0.0
    %1531 = vmatpush1.msra.mxu0 0.0
    %1532 = vmatprep.subr.mxu0 0.0
    %1533 = vmatpush1.msra.mxu0 0.0
    %1534 = vmatprep.subr.mxu0 0.0
    %1535 = vmatpush1.msra.mxu0 0.0
    %1536 = vmatprep.subr.mxu0 0.0
    %1537 = vmatpush1.msra.mxu0 0.0
    %1538 = vmatprep.subr.mxu0 0.0
    %1539 = vmatpush1.msra.mxu0 0.0
    %1540 = vmatprep.subr.mxu0 0.0
    %1541 = vmatpush1.msra.mxu0 0.0
    %1542 = vmatprep.subr.mxu0 0.0
    %1543 = vmatpush1.msra.mxu0 0.0
    %1544 = vmatprep.subr.mxu0 0.0
    %1545 = vmatpush1.msra.mxu0 0.0
    %1546 = vmatprep.subr.mxu0 0.0
    %1547 = vmatpush1.msra.mxu0 0.0
    %1548 = vmatprep.subr.mxu0 0.0
    %1549 = vmatpush1.msra.mxu0 %v236
    %1550 = vmatprep.subr.mxu0 0.0
    %1551 = vmatpush1.msra.mxu0 %v235
    %1552 = vmatprep.subr.mxu0 0.0
    %1553 = vmatpush2.msra.mxu0 0.0
    %1554 = vmatprep.subr.mxu0 0.0
    %1555 = vmatpush2.msra.mxu0 0.0
    %1556 = vmatprep.subr.mxu0 0.0
    %1557 = vmatpush2.msra.mxu0 0.0
    %1558 = vmatprep.subr.mxu0 0.0
    %1559 = vmatpush2.msra.mxu0 0.0
    %1560 = vmatprep.subr.mxu0 0.0
    %1561 = vmatpush2.msra.mxu0 0.0
    %1562 = vmatprep.subr.mxu0 0.0
    %1563 = vmatpush2.msra.mxu0 0.0
    %1564 = vmatprep.subr.mxu0 0.0
    %1565 = vmatpush2.msra.mxu0 0.0
    %1566 = vmatprep.subr.mxu0 0.0
    %1567 = vmatpush2.msra.mxu0 0.0
    %1568 = vmatprep.subr.mxu0 0.0
    %1569 = vmatpush2.msra.mxu0 0.0
    %1570 = vmatprep.subr.mxu0 0.0
    %1571 = vmatpush2.msra.mxu0 0.0
    %1572 = vmatprep.subr.mxu0 0.0
    %1573 = vmatpush2.msra.mxu0 0.0
    %1574 = vmatprep.subr.mxu0 0.0
    %1575 = vmatpush2.msra.mxu0 0.0
    %1576 = vmatprep.subr.mxu0 0.0
    %1577 = vmatpush2.msra.mxu0 0.0
    %1578 = vmatprep.subr.mxu0 0.0
    %1579 = vmatpush2.msra.mxu0 0.0
    %1580 = vmatprep.subr.mxu0 0.0
    %1581 = vmatpush2.msra.mxu0 0.0
    %1582 = vmatprep.subr.mxu0 0.0
    %1583 = vmatpush2.msra.mxu0 0.0
    %1584 = vmatprep.mubr.f32.mxu0 0.0
    %1585 = vmatmul.mubr.f32.gmra.mxu0 %v1515
    %v1586 = vpop.f32.mrf.mxu0
    %v1587 = vadd.f32 %v911, %v1586
    %v1588 = vpop.f32.mrf.mxu0
    %1589 = vmatprep.mubr.f32.mxu0 0.0
    %1590 = vmatmul.mubr.f32.gmra.mxu0 %v1518
    %v1591 = vpop.f32.mrf.mxu0
    %v1592 = vadd.f32 %v916, %v1591
    %v1593 = vpop.f32.mrf.mxu0
    %1594 = vdwg.mxu0
    %v1596 = vsel %vm839, %v587, 0
    %v1599 = vsel %vm839, %v588, 0
    %1601 = vmatprep.subr.mxu0 0.0
    %1602 = vmatpush1.msra.mxu0 0.0
    %1603 = vmatprep.subr.mxu0 0.0
    %1604 = vmatpush1.msra.mxu0 0.0
    %1605 = vmatprep.subr.mxu0 0.0
    %1606 = vmatpush1.msra.mxu0 0.0
    %1607 = vmatprep.subr.mxu0 0.0
    %1608 = vmatpush1.msra.mxu0 0.0
    %1609 = vmatprep.subr.mxu0 0.0
    %1610 = vmatpush1.msra.mxu0 0.0
    %1611 = vmatprep.subr.mxu0 0.0
    %1612 = vmatpush1.msra.mxu0 0.0
    %1613 = vmatprep.subr.mxu0 0.0
    %1614 = vmatpush1.msra.mxu0 0.0
    %1615 = vmatprep.subr.mxu0 0.0
    %1616 = vmatpush1.msra.mxu0 0.0
    %1617 = vmatprep.subr.mxu0 0.0
    %1618 = vmatpush1.msra.mxu0 0.0
    %1619 = vmatprep.subr.mxu0 0.0
    %1620 = vmatpush1.msra.mxu0 0.0
    %1621 = vmatprep.subr.mxu0 0.0
    %1622 = vmatpush1.msra.mxu0 0.0
    %1623 = vmatprep.subr.mxu0 0.0
    %1624 = vmatpush1.msra.mxu0 0.0
    %1625 = vmatprep.subr.mxu0 0.0
    %1626 = vmatpush1.msra.mxu0 0.0
    %1627 = vmatprep.subr.mxu0 0.0
    %1628 = vmatpush1.msra.mxu0 0.0
    %1629 = vmatprep.subr.mxu0 0.0
    %1630 = vmatpush1.msra.mxu0 %v236
    %1631 = vmatprep.subr.mxu0 0.0
    %1632 = vmatpush1.msra.mxu0 %v235
    %1633 = vmatprep.subr.mxu0 0.0
    %1634 = vmatpush2.msra.mxu0 0.0
    %1635 = vmatprep.subr.mxu0 0.0
    %1636 = vmatpush2.msra.mxu0 0.0
    %1637 = vmatprep.subr.mxu0 0.0
    %1638 = vmatpush2.msra.mxu0 0.0
    %1639 = vmatprep.subr.mxu0 0.0
    %1640 = vmatpush2.msra.mxu0 0.0
    %1641 = vmatprep.subr.mxu0 0.0
    %1642 = vmatpush2.msra.mxu0 0.0
    %1643 = vmatprep.subr.mxu0 0.0
    %1644 = vmatpush2.msra.mxu0 0.0
    %1645 = vmatprep.subr.mxu0 0.0
    %1646 = vmatpush2.msra.mxu0 0.0
    %1647 = vmatprep.subr.mxu0 0.0
    %1648 = vmatpush2.msra.mxu0 0.0
    %1649 = vmatprep.subr.mxu0 0.0
    %1650 = vmatpush2.msra.mxu0 0.0
    %1651 = vmatprep.subr.mxu0 0.0
    %1652 = vmatpush2.msra.mxu0 0.0
    %1653 = vmatprep.subr.mxu0 0.0
    %1654 = vmatpush2.msra.mxu0 0.0
    %1655 = vmatprep.subr.mxu0 0.0
    %1656 = vmatpush2.msra.mxu0 0.0
    %1657 = vmatprep.subr.mxu0 0.0
    %1658 = vmatpush2.msra.mxu0 0.0
    %1659 = vmatprep.subr.mxu0 0.0
    %1660 = vmatpush2.msra.mxu0 0.0
    %1661 = vmatprep.subr.mxu0 0.0
    %1662 = vmatpush2.msra.mxu0 0.0
    %1663 = vmatprep.subr.mxu0 0.0
    %1664 = vmatpush2.msra.mxu0 0.0
    %1665 = vmatprep.mubr.f32.mxu0 0.0
    %1666 = vmatmul.mubr.f32.gmra.mxu0 %v1596
    %v1667 = vpop.f32.mrf.mxu0
    %v1668 = vadd.f32 %v996, %v1667
    %v1669 = vpop.f32.mrf.mxu0
    %1670 = vmatprep.mubr.f32.mxu0 0.0
    %1671 = vmatmul.mubr.f32.gmra.mxu0 %v1599
    %v1672 = vpop.f32.mrf.mxu0
    %v1673 = vadd.f32 %v1001, %v1672
    %v1674 = vpop.f32.mrf.mxu0
    %1675 = vdwg.mxu0
    %v1677 = vsel %vm839, %v589, 0
    %v1680 = vsel %vm839, %v590, 0
    %1682 = vmatprep.subr.mxu0 0.0
    %1683 = vmatpush1.msra.mxu0 0.0
    %1684 = vmatprep.subr.mxu0 0.0
    %1685 = vmatpush1.msra.mxu0 0.0
    %1686 = vmatprep.subr.mxu0 0.0
    %1687 = vmatpush1.msra.mxu0 0.0
    %1688 = vmatprep.subr.mxu0 0.0
    %1689 = vmatpush1.msra.mxu0 0.0
    %1690 = vmatprep.subr.mxu0 0.0
    %1691 = vmatpush1.msra.mxu0 0.0
    %1692 = vmatprep.subr.mxu0 0.0
    %1693 = vmatpush1.msra.mxu0 0.0
    %1694 = vmatprep.subr.mxu0 0.0
    %1695 = vmatpush1.msra.mxu0 0.0
    %1696 = vmatprep.subr.mxu0 0.0
    %1697 = vmatpush1.msra.mxu0 0.0
    %1698 = vmatprep.subr.mxu0 0.0
    %1699 = vmatpush1.msra.mxu0 0.0
    %1700 = vmatprep.subr.mxu0 0.0
    %1701 = vmatpush1.msra.mxu0 0.0
    %1702 = vmatprep.subr.mxu0 0.0
    %1703 = vmatpush1.msra.mxu0 0.0
    %1704 = vmatprep.subr.mxu0 0.0
    %1705 = vmatpush1.msra.mxu0 0.0
    %1706 = vmatprep.subr.mxu0 0.0
    %1707 = vmatpush1.msra.mxu0 0.0
    %1708 = vmatprep.subr.mxu0 0.0
    %1709 = vmatpush1.msra.mxu0 0.0
    %1710 = vmatprep.subr.mxu0 0.0
    %1711 = vmatpush1.msra.mxu0 %v236
    %1712 = vmatprep.subr.mxu0 0.0
    %1713 = vmatpush1.msra.mxu0 %v235
    %1714 = vmatprep.subr.mxu0 0.0
    %1715 = vmatpush2.msra.mxu0 0.0
    %1716 = vmatprep.subr.mxu0 0.0
    %1717 = vmatpush2.msra.mxu0 0.0
    %1718 = vmatprep.subr.mxu0 0.0
    %1719 = vmatpush2.msra.mxu0 0.0
    %1720 = vmatprep.subr.mxu0 0.0
    %1721 = vmatpush2.msra.mxu0 0.0
    %1722 = vmatprep.subr.mxu0 0.0
    %1723 = vmatpush2.msra.mxu0 0.0
    %1724 = vmatprep.subr.mxu0 0.0
    %1725 = vmatpush2.msra.mxu0 0.0
    %1726 = vmatprep.subr.mxu0 0.0
    %1727 = vmatpush2.msra.mxu0 0.0
    %1728 = vmatprep.subr.mxu0 0.0
    %1729 = vmatpush2.msra.mxu0 0.0
    %1730 = vmatprep.subr.mxu0 0.0
    %1731 = vmatpush2.msra.mxu0 0.0
    %1732 = vmatprep.subr.mxu0 0.0
    %1733 = vmatpush2.msra.mxu0 0.0
    %1734 = vmatprep.subr.mxu0 0.0
    %1735 = vmatpush2.msra.mxu0 0.0
    %1736 = vmatprep.subr.mxu0 0.0
    %1737 = vmatpush2.msra.mxu0 0.0
    %1738 = vmatprep.subr.mxu0 0.0
    %1739 = vmatpush2.msra.mxu0 0.0
    %1740 = vmatprep.subr.mxu0 0.0
    %1741 = vmatpush2.msra.mxu0 0.0
    %1742 = vmatprep.subr.mxu0 0.0
    %1743 = vmatpush2.msra.mxu0 0.0
    %1744 = vmatprep.subr.mxu0 0.0
    %1745 = vmatpush2.msra.mxu0 0.0
    %1746 = vmatprep.mubr.f32.mxu0 0.0
    %1747 = vmatmul.mubr.f32.gmra.mxu0 %v1677
    %v1748 = vpop.f32.mrf.mxu0
    %v1749 = vadd.f32 %v1081, %v1748
    %v1750 = vpop.f32.mrf.mxu0
    %1751 = vmatprep.mubr.f32.mxu0 0.0
    %1752 = vmatmul.mubr.f32.gmra.mxu0 %v1680
    %v1753 = vpop.f32.mrf.mxu0
    %v1754 = vadd.f32 %v1086, %v1753
    %v1755 = vpop.f32.mrf.mxu0
    %1756 = vdwg.mxu0
    %v1758 = vsel %vm839, %v591, 0
    %v1761 = vsel %vm839, %v592, 0
    %1763 = vmatprep.subr.mxu0 0.0
    %1764 = vmatpush1.msra.mxu0 0.0
    %1765 = vmatprep.subr.mxu0 0.0
    %1766 = vmatpush1.msra.mxu0 0.0
    %1767 = vmatprep.subr.mxu0 0.0
    %1768 = vmatpush1.msra.mxu0 0.0
    %1769 = vmatprep.subr.mxu0 0.0
    %1770 = vmatpush1.msra.mxu0 0.0
    %1771 = vmatprep.subr.mxu0 0.0
    %1772 = vmatpush1.msra.mxu0 0.0
    %1773 = vmatprep.subr.mxu0 0.0
    %1774 = vmatpush1.msra.mxu0 0.0
    %1775 = vmatprep.subr.mxu0 0.0
    %1776 = vmatpush1.msra.mxu0 0.0
    %1777 = vmatprep.subr.mxu0 0.0
    %1778 = vmatpush1.msra.mxu0 0.0
    %1779 = vmatprep.subr.mxu0 0.0
    %1780 = vmatpush1.msra.mxu0 0.0
    %1781 = vmatprep.subr.mxu0 0.0
    %1782 = vmatpush1.msra.mxu0 0.0
    %1783 = vmatprep.subr.mxu0 0.0
    %1784 = vmatpush1.msra.mxu0 0.0
    %1785 = vmatprep.subr.mxu0 0.0
    %1786 = vmatpush1.msra.mxu0 0.0
    %1787 = vmatprep.subr.mxu0 0.0
    %1788 = vmatpush1.msra.mxu0 0.0
    %1789 = vmatprep.subr.mxu0 0.0
    %1790 = vmatpush1.msra.mxu0 0.0
    %1791 = vmatprep.subr.mxu0 0.0
    %1792 = vmatpush1.msra.mxu0 %v236
    %1793 = vmatprep.subr.mxu0 0.0
    %1794 = vmatpush1.msra.mxu0 %v235
    %1795 = vmatprep.subr.mxu0 0.0
    %1796 = vmatpush2.msra.mxu0 0.0
    %1797 = vmatprep.subr.mxu0 0.0
    %1798 = vmatpush2.msra.mxu0 0.0
    %1799 = vmatprep.subr.mxu0 0.0
    %1800 = vmatpush2.msra.mxu0 0.0
    %1801 = vmatprep.subr.mxu0 0.0
    %1802 = vmatpush2.msra.mxu0 0.0
    %1803 = vmatprep.subr.mxu0 0.0
    %1804 = vmatpush2.msra.mxu0 0.0
    %1805 = vmatprep.subr.mxu0 0.0
    %1806 = vmatpush2.msra.mxu0 0.0
    %1807 = vmatprep.subr.mxu0 0.0
    %1808 = vmatpush2.msra.mxu0 0.0
    %1809 = vmatprep.subr.mxu0 0.0
    %1810 = vmatpush2.msra.mxu0 0.0
    %1811 = vmatprep.subr.mxu0 0.0
    %1812 = vmatpush2.msra.mxu0 0.0
    %1813 = vmatprep.subr.mxu0 0.0
    %1814 = vmatpush2.msra.mxu0 0.0
    %1815 = vmatprep.subr.mxu0 0.0
    %1816 = vmatpush2.msra.mxu0 0.0
    %1817 = vmatprep.subr.mxu0 0.0
    %1818 = vmatpush2.msra.mxu0 0.0
    %1819 = vmatprep.subr.mxu0 0.0
    %1820 = vmatpush2.msra.mxu0 0.0
    %1821 = vmatprep.subr.mxu0 0.0
    %1822 = vmatpush2.msra.mxu0 0.0
    %1823 = vmatprep.subr.mxu0 0.0
    %1824 = vmatpush2.msra.mxu0 0.0
    %1825 = vmatprep.subr.mxu0 0.0
    %1826 = vmatpush2.msra.mxu0 0.0
    %1827 = vmatprep.mubr.f32.mxu0 0.0
    %1828 = vmatmul.mubr.f32.gmra.mxu0 %v1758
    %v1829 = vpop.f32.mrf.mxu0
    %v1830 = vadd.f32 %v1166, %v1829
    %v1831 = vpop.f32.mrf.mxu0
    %1832 = vmatprep.mubr.f32.mxu0 0.0
    %1833 = vmatmul.mubr.f32.gmra.mxu0 %v1761
    %v1834 = vpop.f32.mrf.mxu0
    %v1835 = vadd.f32 %v1171, %v1834
    %v1836 = vpop.f32.mrf.mxu0
    %1837 = vdwg.mxu0
    %v1839 = vsel %vm839, %v593, 0
    %v1842 = vsel %vm839, %v594, 0
    %1844 = vmatprep.subr.mxu0 0.0
    %1845 = vmatpush1.msra.mxu0 0.0
    %1846 = vmatprep.subr.mxu0 0.0
    %1847 = vmatpush1.msra.mxu0 0.0
    %1848 = vmatprep.subr.mxu0 0.0
    %1849 = vmatpush1.msra.mxu0 0.0
    %1850 = vmatprep.subr.mxu0 0.0
    %1851 = vmatpush1.msra.mxu0 0.0
    %1852 = vmatprep.subr.mxu0 0.0
    %1853 = vmatpush1.msra.mxu0 0.0
    %1854 = vmatprep.subr.mxu0 0.0
    %1855 = vmatpush1.msra.mxu0 0.0
    %1856 = vmatprep.subr.mxu0 0.0
    %1857 = vmatpush1.msra.mxu0 0.0
    %1858 = vmatprep.subr.mxu0 0.0
    %1859 = vmatpush1.msra.mxu0 0.0
    %1860 = vmatprep.subr.mxu0 0.0
    %1861 = vmatpush1.msra.mxu0 0.0
    %1862 = vmatprep.subr.mxu0 0.0
    %1863 = vmatpush1.msra.mxu0 0.0
    %1864 = vmatprep.subr.mxu0 0.0
    %1865 = vmatpush1.msra.mxu0 0.0
    %1866 = vmatprep.subr.mxu0 0.0
    %1867 = vmatpush1.msra.mxu0 0.0
    %1868 = vmatprep.subr.mxu0 0.0
    %1869 = vmatpush1.msra.mxu0 0.0
    %1870 = vmatprep.subr.mxu0 0.0
    %1871 = vmatpush1.msra.mxu0 0.0
    %1872 = vmatprep.subr.mxu0 0.0
    %1873 = vmatpush1.msra.mxu0 %v236
    %1874 = vmatprep.subr.mxu0 0.0
    %1875 = vmatpush1.msra.mxu0 %v235
    %1876 = vmatprep.subr.mxu0 0.0
    %1877 = vmatpush2.msra.mxu0 0.0
    %1878 = vmatprep.subr.mxu0 0.0
    %1879 = vmatpush2.msra.mxu0 0.0
    %1880 = vmatprep.subr.mxu0 0.0
    %1881 = vmatpush2.msra.mxu0 0.0
    %1882 = vmatprep.subr.mxu0 0.0
    %1883 = vmatpush2.msra.mxu0 0.0
    %1884 = vmatprep.subr.mxu0 0.0
    %1885 = vmatpush2.msra.mxu0 0.0
    %1886 = vmatprep.subr.mxu0 0.0
    %1887 = vmatpush2.msra.mxu0 0.0
    %1888 = vmatprep.subr.mxu0 0.0
    %1889 = vmatpush2.msra.mxu0 0.0
    %1890 = vmatprep.subr.mxu0 0.0
    %1891 = vmatpush2.msra.mxu0 0.0
    %1892 = vmatprep.subr.mxu0 0.0
    %1893 = vmatpush2.msra.mxu0 0.0
    %1894 = vmatprep.subr.mxu0 0.0
    %1895 = vmatpush2.msra.mxu0 0.0
    %1896 = vmatprep.subr.mxu0 0.0
    %1897 = vmatpush2.msra.mxu0 0.0
    %1898 = vmatprep.subr.mxu0 0.0
    %1899 = vmatpush2.msra.mxu0 0.0
    %1900 = vmatprep.subr.mxu0 0.0
    %1901 = vmatpush2.msra.mxu0 0.0
    %1902 = vmatprep.subr.mxu0 0.0
    %1903 = vmatpush2.msra.mxu0 0.0
    %1904 = vmatprep.subr.mxu0 0.0
    %1905 = vmatpush2.msra.mxu0 0.0
    %1906 = vmatprep.subr.mxu0 0.0
    %1907 = vmatpush2.msra.mxu0 0.0
    %1908 = vmatprep.mubr.f32.mxu0 0.0
    %1909 = vmatmul.mubr.f32.gmra.mxu0 %v1839
    %v1910 = vpop.f32.mrf.mxu0
    %v1911 = vadd.f32 %v1251, %v1910
    %v1912 = vpop.f32.mrf.mxu0
    %1913 = vmatprep.mubr.f32.mxu0 0.0
    %1914 = vmatmul.mubr.f32.gmra.mxu0 %v1842
    %v1915 = vpop.f32.mrf.mxu0
    %v1916 = vadd.f32 %v1256, %v1915
    %v1917 = vpop.f32.mrf.mxu0
    %1918 = vdwg.mxu0
    %v1920 = vsel %vm839, %v595, 0
    %v1923 = vsel %vm839, %v596, 0
    %1925 = vmatprep.subr.mxu0 0.0
    %1926 = vmatpush1.msra.mxu0 0.0
    %1927 = vmatprep.subr.mxu0 0.0
    %1928 = vmatpush1.msra.mxu0 0.0
    %1929 = vmatprep.subr.mxu0 0.0
    %1930 = vmatpush1.msra.mxu0 0.0
    %1931 = vmatprep.subr.mxu0 0.0
    %1932 = vmatpush1.msra.mxu0 0.0
    %1933 = vmatprep.subr.mxu0 0.0
    %1934 = vmatpush1.msra.mxu0 0.0
    %1935 = vmatprep.subr.mxu0 0.0
    %1936 = vmatpush1.msra.mxu0 0.0
    %1937 = vmatprep.subr.mxu0 0.0
    %1938 = vmatpush1.msra.mxu0 0.0
    %1939 = vmatprep.subr.mxu0 0.0
    %1940 = vmatpush1.msra.mxu0 0.0
    %1941 = vmatprep.subr.mxu0 0.0
    %1942 = vmatpush1.msra.mxu0 0.0
    %1943 = vmatprep.subr.mxu0 0.0
    %1944 = vmatpush1.msra.mxu0 0.0
    %1945 = vmatprep.subr.mxu0 0.0
    %1946 = vmatpush1.msra.mxu0 0.0
    %1947 = vmatprep.subr.mxu0 0.0
    %1948 = vmatpush1.msra.mxu0 0.0
    %1949 = vmatprep.subr.mxu0 0.0
    %1950 = vmatpush1.msra.mxu0 0.0
    %1951 = vmatprep.subr.mxu0 0.0
    %1952 = vmatpush1.msra.mxu0 0.0
    %1953 = vmatprep.subr.mxu0 0.0
    %1954 = vmatpush1.msra.mxu0 %v236
    %1955 = vmatprep.subr.mxu0 0.0
    %1956 = vmatpush1.msra.mxu0 %v235
    %1957 = vmatprep.subr.mxu0 0.0
    %1958 = vmatpush2.msra.mxu0 0.0
    %1959 = vmatprep.subr.mxu0 0.0
    %1960 = vmatpush2.msra.mxu0 0.0
    %1961 = vmatprep.subr.mxu0 0.0
    %1962 = vmatpush2.msra.mxu0 0.0
    %1963 = vmatprep.subr.mxu0 0.0
    %1964 = vmatpush2.msra.mxu0 0.0
    %1965 = vmatprep.subr.mxu0 0.0
    %1966 = vmatpush2.msra.mxu0 0.0
    %1967 = vmatprep.subr.mxu0 0.0
    %1968 = vmatpush2.msra.mxu0 0.0
    %1969 = vmatprep.subr.mxu0 0.0
    %1970 = vmatpush2.msra.mxu0 0.0
    %1971 = vmatprep.subr.mxu0 0.0
    %1972 = vmatpush2.msra.mxu0 0.0
    %1973 = vmatprep.subr.mxu0 0.0
    %1974 = vmatpush2.msra.mxu0 0.0
    %1975 = vmatprep.subr.mxu0 0.0
    %1976 = vmatpush2.msra.mxu0 0.0
    %1977 = vmatprep.subr.mxu0 0.0
    %1978 = vmatpush2.msra.mxu0 0.0
    %1979 = vmatprep.subr.mxu0 0.0
    %1980 = vmatpush2.msra.mxu0 0.0
    %1981 = vmatprep.subr.mxu0 0.0
    %1982 = vmatpush2.msra.mxu0 0.0
    %1983 = vmatprep.subr.mxu0 0.0
    %1984 = vmatpush2.msra.mxu0 0.0
    %1985 = vmatprep.subr.mxu0 0.0
    %1986 = vmatpush2.msra.mxu0 0.0
    %1987 = vmatprep.subr.mxu0 0.0
    %1988 = vmatpush2.msra.mxu0 0.0
    %1989 = vmatprep.mubr.f32.mxu0 0.0
    %1990 = vmatmul.mubr.f32.gmra.mxu0 %v1920
    %v1991 = vpop.f32.mrf.mxu0
    %v1992 = vadd.f32 %v1336, %v1991
    %v1993 = vpop.f32.mrf.mxu0
    %1994 = vmatprep.mubr.f32.mxu0 0.0
    %1995 = vmatmul.mubr.f32.gmra.mxu0 %v1923
    %v1996 = vpop.f32.mrf.mxu0
    %v1997 = vadd.f32 %v1341, %v1996
    %v1998 = vpop.f32.mrf.mxu0
    %1999 = vdwg.mxu0
    %v2001 = vsel %vm839, %v597, 0
    %v2004 = vsel %vm839, %v598, 0
    %2006 = vmatprep.subr.mxu0 0.0
    %2007 = vmatpush1.msra.mxu0 0.0
    %2008 = vmatprep.subr.mxu0 0.0
    %2009 = vmatpush1.msra.mxu0 0.0
    %2010 = vmatprep.subr.mxu0 0.0
    %2011 = vmatpush1.msra.mxu0 0.0
    %2012 = vmatprep.subr.mxu0 0.0
    %2013 = vmatpush1.msra.mxu0 0.0
    %2014 = vmatprep.subr.mxu0 0.0
    %2015 = vmatpush1.msra.mxu0 0.0
    %2016 = vmatprep.subr.mxu0 0.0
    %2017 = vmatpush1.msra.mxu0 0.0
    %2018 = vmatprep.subr.mxu0 0.0
    %2019 = vmatpush1.msra.mxu0 0.0
    %2020 = vmatprep.subr.mxu0 0.0
    %2021 = vmatpush1.msra.mxu0 0.0
    %2022 = vmatprep.subr.mxu0 0.0
    %2023 = vmatpush1.msra.mxu0 0.0
    %2024 = vmatprep.subr.mxu0 0.0
    %2025 = vmatpush1.msra.mxu0 0.0
    %2026 = vmatprep.subr.mxu0 0.0
    %2027 = vmatpush1.msra.mxu0 0.0
    %2028 = vmatprep.subr.mxu0 0.0
    %2029 = vmatpush1.msra.mxu0 0.0
    %2030 = vmatprep.subr.mxu0 0.0
    %2031 = vmatpush1.msra.mxu0 0.0
    %2032 = vmatprep.subr.mxu0 0.0
    %2033 = vmatpush1.msra.mxu0 0.0
    %2034 = vmatprep.subr.mxu0 0.0
    %2035 = vmatpush1.msra.mxu0 %v236
    %2036 = vmatprep.subr.mxu0 0.0
    %2037 = vmatpush1.msra.mxu0 %v235
    %2038 = vmatprep.subr.mxu0 0.0
    %2039 = vmatpush2.msra.mxu0 0.0
    %2040 = vmatprep.subr.mxu0 0.0
    %2041 = vmatpush2.msra.mxu0 0.0
    %2042 = vmatprep.subr.mxu0 0.0
    %2043 = vmatpush2.msra.mxu0 0.0
    %2044 = vmatprep.subr.mxu0 0.0
    %2045 = vmatpush2.msra.mxu0 0.0
    %2046 = vmatprep.subr.mxu0 0.0
    %2047 = vmatpush2.msra.mxu0 0.0
    %2048 = vmatprep.subr.mxu0 0.0
    %2049 = vmatpush2.msra.mxu0 0.0
    %2050 = vmatprep.subr.mxu0 0.0
    %2051 = vmatpush2.msra.mxu0 0.0
    %2052 = vmatprep.subr.mxu0 0.0
    %2053 = vmatpush2.msra.mxu0 0.0
    %2054 = vmatprep.subr.mxu0 0.0
    %2055 = vmatpush2.msra.mxu0 0.0
    %2056 = vmatprep.subr.mxu0 0.0
    %2057 = vmatpush2.msra.mxu0 0.0
    %2058 = vmatprep.subr.mxu0 0.0
    %2059 = vmatpush2.msra.mxu0 0.0
    %2060 = vmatprep.subr.mxu0 0.0
    %2061 = vmatpush2.msra.mxu0 0.0
    %2062 = vmatprep.subr.mxu0 0.0
    %2063 = vmatpush2.msra.mxu0 0.0
    %2064 = vmatprep.subr.mxu0 0.0
    %2065 = vmatpush2.msra.mxu0 0.0
    %2066 = vmatprep.subr.mxu0 0.0
    %2067 = vmatpush2.msra.mxu0 0.0
    %2068 = vmatprep.subr.mxu0 0.0
    %2069 = vmatpush2.msra.mxu0 0.0
    %2070 = vmatprep.mubr.f32.mxu0 0.0
    %2071 = vmatmul.mubr.f32.gmra.mxu0 %v2001
    %v2072 = vpop.f32.mrf.mxu0
    %v2073 = vadd.f32 %v1421, %v2072
    %v2074 = vpop.f32.mrf.mxu0
    %2075 = vmatprep.mubr.f32.mxu0 0.0
    %2076 = vmatmul.mubr.f32.gmra.mxu0 %v2004
    %v2077 = vpop.f32.mrf.mxu0
    %v2078 = vadd.f32 %v1426, %v2077
    %v2079 = vpop.f32.mrf.mxu0
    %2080 = vdwg.mxu0
    %v2082 = vsel %vm839, %v599, 0
    %v2085 = vsel %vm839, %v600, 0
    %2087 = vmatprep.subr.mxu0 0.0
    %2088 = vmatpush1.msra.mxu0 0.0
    %2089 = vmatprep.subr.mxu0 0.0
    %2090 = vmatpush1.msra.mxu0 0.0
    %2091 = vmatprep.subr.mxu0 0.0
    %2092 = vmatpush1.msra.mxu0 0.0
    %2093 = vmatprep.subr.mxu0 0.0
    %2094 = vmatpush1.msra.mxu0 0.0
    %2095 = vmatprep.subr.mxu0 0.0
    %2096 = vmatpush1.msra.mxu0 0.0
    %2097 = vmatprep.subr.mxu0 0.0
    %2098 = vmatpush1.msra.mxu0 0.0
    %2099 = vmatprep.subr.mxu0 0.0
    %2100 = vmatpush1.msra.mxu0 0.0
    %2101 = vmatprep.subr.mxu0 0.0
    %2102 = vmatpush1.msra.mxu0 0.0
    %2103 = vmatprep.subr.mxu0 0.0
    %2104 = vmatpush1.msra.mxu0 0.0
    %2105 = vmatprep.subr.mxu0 0.0
    %2106 = vmatpush1.msra.mxu0 0.0
    %2107 = vmatprep.subr.mxu0 0.0
    %2108 = vmatpush1.msra.mxu0 0.0
    %2109 = vmatprep.subr.mxu0 0.0
    %2110 = vmatpush1.msra.mxu0 0.0
    %2111 = vmatprep.subr.mxu0 0.0
    %2112 = vmatpush1.msra.mxu0 0.0
    %2113 = vmatprep.subr.mxu0 0.0
    %2114 = vmatpush1.msra.mxu0 0.0
    %2115 = vmatprep.subr.mxu0 0.0
    %2116 = vmatpush1.msra.mxu0 %v236
    %2117 = vmatprep.subr.mxu0 0.0
    %2118 = vmatpush1.msra.mxu0 %v235
    %2119 = vmatprep.subr.mxu0 0.0
    %2120 = vmatpush2.msra.mxu0 0.0
    %2121 = vmatprep.subr.mxu0 0.0
    %2122 = vmatpush2.msra.mxu0 0.0
    %2123 = vmatprep.subr.mxu0 0.0
    %2124 = vmatpush2.msra.mxu0 0.0
    %2125 = vmatprep.subr.mxu0 0.0
    %2126 = vmatpush2.msra.mxu0 0.0
    %2127 = vmatprep.subr.mxu0 0.0
    %2128 = vmatpush2.msra.mxu0 0.0
    %2129 = vmatprep.subr.mxu0 0.0
    %2130 = vmatpush2.msra.mxu0 0.0
    %2131 = vmatprep.subr.mxu0 0.0
    %2132 = vmatpush2.msra.mxu0 0.0
    %2133 = vmatprep.subr.mxu0 0.0
    %2134 = vmatpush2.msra.mxu0 0.0
    %2135 = vmatprep.subr.mxu0 0.0
    %2136 = vmatpush2.msra.mxu0 0.0
    %2137 = vmatprep.subr.mxu0 0.0
    %2138 = vmatpush2.msra.mxu0 0.0
    %2139 = vmatprep.subr.mxu0 0.0
    %2140 = vmatpush2.msra.mxu0 0.0
    %2141 = vmatprep.subr.mxu0 0.0
    %2142 = vmatpush2.msra.mxu0 0.0
    %2143 = vmatprep.subr.mxu0 0.0
    %2144 = vmatpush2.msra.mxu0 0.0
    %2145 = vmatprep.subr.mxu0 0.0
    %2146 = vmatpush2.msra.mxu0 0.0
    %2147 = vmatprep.subr.mxu0 0.0
    %2148 = vmatpush2.msra.mxu0 0.0
    %2149 = vmatprep.subr.mxu0 0.0
    %2150 = vmatpush2.msra.mxu0 0.0
    %2151 = vmatprep.mubr.f32.mxu0 0.0
    %2152 = vmatmul.mubr.f32.gmra.mxu0 %v2082
    %v2153 = vpop.f32.mrf.mxu0
    %v2154 = vadd.f32 %v1506, %v2153
    %v2155 = vpop.f32.mrf.mxu0
    %2156 = vmatprep.mubr.f32.mxu0 0.0
    %2157 = vmatmul.mubr.f32.gmra.mxu0 %v2085
    %v2158 = vpop.f32.mrf.mxu0
    %v2159 = vadd.f32 %v1511, %v2158
    %v2160 = vpop.f32.mrf.mxu0
    %2161 = vdwg.mxu0
    %v2162 = vmul.f32 %v227, 0.0625
    %v2163 = vmul.f32 %v228, 0.0625
    %v2164 = vmul.f32 %v229, 0.0625
    %v2165 = vmul.f32 %v230, 0.0625
    %v2166 = vmul.f32 %v231, 0.0625
    %v2167 = vmul.f32 %v232, 0.0625
    %v2168 = vmul.f32 %v233, 0.0625
    %v2169 = vmul.f32 %v234, 0.0625
    %v2170 = vadd.f32 %v2162, %v690
    %v2171 = vadd.f32 %v2163, %v692
    %v2172 = vadd.f32 %v2164, %v694
    %v2173 = vadd.f32 %v2165, %v696
    %v2174 = vadd.f32 %v2166, %v698
    %v2175 = vadd.f32 %v2167, %v700
    %v2176 = vadd.f32 %v2168, %v702
    %v2177 = vadd.f32 %v2169, %v704
    %v2202 = vrot.slane %v368, 1
    %v2203 = vrot.slane %v369, 1
    %v2204 = vsel %vm528, %v2202, %v2203
    %v2205 = vrot.slane %v2170, 1
    %v2206 = vsel %vm528, %v2203, %v2205
    %v2207 = vrot.slane %v370, 1
    %v2208 = vrot.slane %v371, 1
    %v2209 = vsel %vm528, %v2207, %v2208
    %v2210 = vrot.slane %v2171, 1
    %v2211 = vsel %vm528, %v2208, %v2210
    %v2212 = vrot.slane %v372, 1
    %v2213 = vrot.slane %v373, 1
    %v2214 = vsel %vm528, %v2212, %v2213
    %v2215 = vrot.slane %v2172, 1
    %v2216 = vsel %vm528, %v2213, %v2215
    %v2217 = vrot.slane %v374, 1
    %v2218 = vrot.slane %v375, 1
    %v2219 = vsel %vm528, %v2217, %v2218
    %v2220 = vrot.slane %v2173, 1
    %v2221 = vsel %vm528, %v2218, %v2220
    %v2222 = vrot.slane %v376, 1
    %v2223 = vrot.slane %v377, 1
    %v2224 = vsel %vm528, %v2222, %v2223
    %v2225 = vrot.slane %v2174, 1
    %v2226 = vsel %vm528, %v2223, %v2225
    %v2227 = vrot.slane %v378, 1
    %v2228 = vrot.slane %v379, 1
    %v2229 = vsel %vm528, %v2227, %v2228
    %v2230 = vrot.slane %v2175, 1
    %v2231 = vsel %vm528, %v2228, %v2230
    %v2232 = vrot.slane %v380, 1
    %v2233 = vrot.slane %v381, 1
    %v2234 = vsel %vm528, %v2232, %v2233
    %v2235 = vrot.slane %v2176, 1
    %v2236 = vsel %vm528, %v2233, %v2235
    %v2237 = vrot.slane %v382, 1
    %v2238 = vrot.slane %v383, 1
    %v2239 = vsel %vm528, %v2237, %v2238
    %v2240 = vrot.slane %v2177, 1
    %v2241 = vsel %vm528, %v2238, %v2240
    %v2266 = vadd.f32 %v480, %v2204
    %v2267 = vadd.f32 %v481, %v2206
    %v2268 = vadd.f32 %v482, %v2205
    %v2269 = vadd.f32 %v483, %v2209
    %v2270 = vadd.f32 %v484, %v2211
    %v2271 = vadd.f32 %v485, %v2210
    %v2272 = vadd.f32 %v486, %v2214
    %v2273 = vadd.f32 %v487, %v2216
    %v2274 = vadd.f32 %v488, %v2215
    %v2275 = vadd.f32 %v489, %v2219
    %v2276 = vadd.f32 %v490, %v2221
    %v2277 = vadd.f32 %v491, %v2220
    %v2278 = vadd.f32 %v492, %v2224
    %v2279 = vadd.f32 %v493, %v2226
    %v2280 = vadd.f32 %v494, %v2225
    %v2281 = vadd.f32 %v495, %v2229
    %v2282 = vadd.f32 %v496, %v2231
    %v2283 = vadd.f32 %v497, %v2230
    %v2284 = vadd.f32 %v498, %v2234
    %v2285 = vadd.f32 %v499, %v2236
    %v2286 = vadd.f32 %v500, %v2235
    %v2287 = vadd.f32 %v501, %v2239
    %v2288 = vadd.f32 %v502, %v2241
    %v2289 = vadd.f32 %v503, %v2240
    %2298 = vrot.lane.b32.xlu0 %v2162, 127
    %v2299 = vpop.permute.xlu0 %2298
    %2300 = vrot.lane.b32.xlu0 %v2163, 127
    %v2301 = vpop.permute.xlu0 %2300
    %2302 = vrot.lane.b32.xlu0 %v2164, 127
    %v2303 = vpop.permute.xlu0 %2302
    %2304 = vrot.lane.b32.xlu0 %v2165, 127
    %v2305 = vpop.permute.xlu0 %2304
    %2306 = vrot.lane.b32.xlu0 %v2166, 127
    %v2307 = vpop.permute.xlu0 %2306
    %2308 = vrot.lane.b32.xlu0 %v2167, 127
    %v2309 = vpop.permute.xlu0 %2308
    %2310 = vrot.lane.b32.xlu0 %v2168, 127
    %v2311 = vpop.permute.xlu0 %2310
    %2312 = vrot.lane.b32.xlu0 %v2169, 127
    %v2313 = vpop.permute.xlu0 %2312
    %v2322 = vadd.f32 %v272, %v2299
    %v2323 = vadd.f32 %v273, %v2301
    %v2324 = vadd.f32 %v274, %v2303
    %v2325 = vadd.f32 %v275, %v2305
    %v2326 = vadd.f32 %v276, %v2307
    %v2327 = vadd.f32 %v277, %v2309
    %v2328 = vadd.f32 %v278, %v2311
    %v2329 = vadd.f32 %v279, %v2313
    %v2354 = vrot.slane %v665, 1
    %v2355 = vrot.slane %v666, 1
    %v2356 = vsel %vm528, %v2354, %v2355
    %v2357 = vrot.slane %v2322, 1
    %v2358 = vsel %vm528, %v2355, %v2357
    %v2359 = vrot.slane %v667, 1
    %v2360 = vrot.slane %v668, 1
    %v2361 = vsel %vm528, %v2359, %v2360
    %v2362 = vrot.slane %v2323, 1
    %v2363 = vsel %vm528, %v2360, %v2362
    %v2364 = vrot.slane %v669, 1
    %v2365 = vrot.slane %v670, 1
    %v2366 = vsel %vm528, %v2364, %v2365
    %v2367 = vrot.slane %v2324, 1
    %v2368 = vsel %vm528, %v2365, %v2367
    %v2369 = vrot.slane %v671, 1
    %v2370 = vrot.slane %v672, 1
    %v2371 = vsel %vm528, %v2369, %v2370
    %v2372 = vrot.slane %v2325, 1
    %v2373 = vsel %vm528, %v2370, %v2372
    %v2374 = vrot.slane %v673, 1
    %v2375 = vrot.slane %v674, 1
    %v2376 = vsel %vm528, %v2374, %v2375
    %v2377 = vrot.slane %v2326, 1
    %v2378 = vsel %vm528, %v2375, %v2377
    %v2379 = vrot.slane %v675, 1
    %v2380 = vrot.slane %v676, 1
    %v2381 = vsel %vm528, %v2379, %v2380
    %v2382 = vrot.slane %v2327, 1
    %v2383 = vsel %vm528, %v2380, %v2382
    %v2384 = vrot.slane %v677, 1
    %v2385 = vrot.slane %v678, 1
    %v2386 = vsel %vm528, %v2384, %v2385
    %v2387 = vrot.slane %v2328, 1
    %v2388 = vsel %vm528, %v2385, %v2387
    %v2389 = vrot.slane %v679, 1
    %v2390 = vrot.slane %v680, 1
    %v2391 = vsel %vm528, %v2389, %v2390
    %v2392 = vrot.slane %v2329, 1
    %v2393 = vsel %vm528, %v2390, %v2392
    %v2418 = vadd.f32 %v713, %v2356
    %v2419 = vadd.f32 %v714, %v2358
    %v2420 = vadd.f32 %v715, %v2357
    %v2421 = vadd.f32 %v716, %v2361
    %v2422 = vadd.f32 %v717, %v2363
    %v2423 = vadd.f32 %v718, %v2362
    %v2424 = vadd.f32 %v719, %v2366
    %v2425 = vadd.f32 %v720, %v2368
    %v2426 = vadd.f32 %v721, %v2367
    %v2427 = vadd.f32 %v722, %v2371
    %v2428 = vadd.f32 %v723, %v2373
    %v2429 = vadd.f32 %v724, %v2372
    %v2430 = vadd.f32 %v725, %v2376
    %v2431 = vadd.f32 %v726, %v2378
    %v2432 = vadd.f32 %v727, %v2377
    %v2433 = vadd.f32 %v728, %v2381
    %v2434 = vadd.f32 %v729, %v2383
    %v2435 = vadd.f32 %v730, %v2382
    %v2436 = vadd.f32 %v731, %v2386
    %v2437 = vadd.f32 %v732, %v2388
    %v2438 = vadd.f32 %v733, %v2387
    %v2439 = vadd.f32 %v734, %v2391
    %v2440 = vadd.f32 %v735, %v2393
    %v2441 = vadd.f32 %v736, %v2392
    %v2445 = vrot.slane %v2418, 1
    %v2446 = vrot.slane %v2419, 1
    %v2447 = vsel %vm528, %v2445, %v2446
    %v2448 = vrot.slane %v2420, 1
    %v2449 = vsel %vm528, %v2446, %v2448
    %2450 = vrot.lane.b32.xlu0 %v2447, 127
    %v2451 = vpop.permute.xlu0 %2450
    %2452 = vrot.lane.b32.xlu0 %v2449, 127
    %v2453 = vpop.permute.xlu0 %2452
    %v2454 = vsel %vm839, %v2451, 0
    %v2456 = vsel %vm839, %v2453, 0
    %2458 = vmatprep.subr.mxu0 0.0
    %2459 = vmatpush1.msra.mxu0 0.0
    %2460 = vmatprep.subr.mxu0 0.0
    %2461 = vmatpush1.msra.mxu0 0.0
    %2462 = vmatprep.subr.mxu0 0.0
    %2463 = vmatpush1.msra.mxu0 0.0
    %2464 = vmatprep.subr.mxu0 0.0
    %2465 = vmatpush1.msra.mxu0 0.0
    %2466 = vmatprep.subr.mxu0 0.0
    %2467 = vmatpush1.msra.mxu0 0.0
    %2468 = vmatprep.subr.mxu0 0.0
    %2469 = vmatpush1.msra.mxu0 0.0
    %2470 = vmatprep.subr.mxu0 0.0
    %2471 = vmatpush1.msra.mxu0 0.0
    %2472 = vmatprep.subr.mxu0 0.0
    %2473 = vmatpush1.msra.mxu0 0.0
    %2474 = vmatprep.subr.mxu0 0.0
    %2475 = vmatpush1.msra.mxu0 0.0
    %2476 = vmatprep.subr.mxu0 0.0
    %2477 = vmatpush1.msra.mxu0 0.0
    %2478 = vmatprep.subr.mxu0 0.0
    %2479 = vmatpush1.msra.mxu0 0.0
    %2480 = vmatprep.subr.mxu0 0.0
    %2481 = vmatpush1.msra.mxu0 0.0
    %2482 = vmatprep.subr.mxu0 0.0
    %2483 = vmatpush1.msra.mxu0 0.0
    %2484 = vmatprep.subr.mxu0 0.0
    %2485 = vmatpush1.msra.mxu0 0.0
    %2486 = vmatprep.subr.mxu0 0.0
    %2487 = vmatpush1.msra.mxu0 %v239
    %2488 = vmatprep.subr.mxu0 0.0
    %2489 = vmatpush1.msra.mxu0 %v238
    %2490 = vmatprep.subr.mxu0 0.0
    %2491 = vmatpush2.msra.mxu0 0.0
    %2492 = vmatprep.subr.mxu0 0.0
    %2493 = vmatpush2.msra.mxu0 0.0
    %2494 = vmatprep.subr.mxu0 0.0
    %2495 = vmatpush2.msra.mxu0 0.0
    %2496 = vmatprep.subr.mxu0 0.0
    %2497 = vmatpush2.msra.mxu0 0.0
    %2498 = vmatprep.subr.mxu0 0.0
    %2499 = vmatpush2.msra.mxu0 0.0
    %2500 = vmatprep.subr.mxu0 0.0
    %2501 = vmatpush2.msra.mxu0 0.0
    %2502 = vmatprep.subr.mxu0 0.0
    %2503 = vmatpush2.msra.mxu0 0.0
    %2504 = vmatprep.subr.mxu0 0.0
    %2505 = vmatpush2.msra.mxu0 0.0
    %2506 = vmatprep.subr.mxu0 0.0
    %2507 = vmatpush2.msra.mxu0 0.0
    %2508 = vmatprep.subr.mxu0 0.0
    %2509 = vmatpush2.msra.mxu0 0.0
    %2510 = vmatprep.subr.mxu0 0.0
    %2511 = vmatpush2.msra.mxu0 0.0
    %2512 = vmatprep.subr.mxu0 0.0
    %2513 = vmatpush2.msra.mxu0 0.0
    %2514 = vmatprep.subr.mxu0 0.0
    %2515 = vmatpush2.msra.mxu0 0.0
    %2516 = vmatprep.subr.mxu0 0.0
    %2517 = vmatpush2.msra.mxu0 0.0
    %2518 = vmatprep.subr.mxu0 0.0
    %2519 = vmatpush2.msra.mxu0 0.0
    %2520 = vmatprep.subr.mxu0 0.0
    %2521 = vmatpush2.msra.mxu0 0.0
    %2522 = vmatprep.mubr.f32.mxu0 0.0
    %2523 = vmatmul.mubr.f32.gmra.mxu0 %v2454
    %v2524 = vpop.f32.mrf.mxu0
    %v2525 = vadd.f32 0.0, %v2524
    %v2526 = vpop.f32.mrf.mxu0
    %2527 = vmatprep.mubr.f32.mxu0 0.0
    %2528 = vmatmul.mubr.f32.gmra.mxu0 %v2456
    %v2529 = vpop.f32.mrf.mxu0
    %v2530 = vadd.f32 0.0, %v2529
    %v2531 = vpop.f32.mrf.mxu0
    %2532 = vdwg.mxu0
    %v2536 = vrot.slane %v2421, 1
    %v2537 = vrot.slane %v2422, 1
    %v2538 = vsel %vm528, %v2536, %v2537
    %v2539 = vrot.slane %v2423, 1
    %v2540 = vsel %vm528, %v2537, %v2539
    %2541 = vrot.lane.b32.xlu0 %v2538, 127
    %v2542 = vpop.permute.xlu0 %2541
    %2543 = vrot.lane.b32.xlu0 %v2540, 127
    %v2544 = vpop.permute.xlu0 %2543
    %v2545 = vsel %vm839, %v2542, 0
    %v2547 = vsel %vm839, %v2544, 0
    %2549 = vmatprep.subr.mxu0 0.0
    %2550 = vmatpush1.msra.mxu0 0.0
    %2551 = vmatprep.subr.mxu0 0.0
    %2552 = vmatpush1.msra.mxu0 0.0
    %2553 = vmatprep.subr.mxu0 0.0
    %2554 = vmatpush1.msra.mxu0 0.0
    %2555 = vmatprep.subr.mxu0 0.0
    %2556 = vmatpush1.msra.mxu0 0.0
    %2557 = vmatprep.subr.mxu0 0.0
    %2558 = vmatpush1.msra.mxu0 0.0
    %2559 = vmatprep.subr.mxu0 0.0
    %2560 = vmatpush1.msra.mxu0 0.0
    %2561 = vmatprep.subr.mxu0 0.0
    %2562 = vmatpush1.msra.mxu0 0.0
    %2563 = vmatprep.subr.mxu0 0.0
    %2564 = vmatpush1.msra.mxu0 0.0
    %2565 = vmatprep.subr.mxu0 0.0
    %2566 = vmatpush1.msra.mxu0 0.0
    %2567 = vmatprep.subr.mxu0 0.0
    %2568 = vmatpush1.msra.mxu0 0.0
    %2569 = vmatprep.subr.mxu0 0.0
    %2570 = vmatpush1.msra.mxu0 0.0
    %2571 = vmatprep.subr.mxu0 0.0
    %2572 = vmatpush1.msra.mxu0 0.0
    %2573 = vmatprep.subr.mxu0 0.0
    %2574 = vmatpush1.msra.mxu0 0.0
    %2575 = vmatprep.subr.mxu0 0.0
    %2576 = vmatpush1.msra.mxu0 0.0
    %2577 = vmatprep.subr.mxu0 0.0
    %2578 = vmatpush1.msra.mxu0 %v239
    %2579 = vmatprep.subr.mxu0 0.0
    %2580 = vmatpush1.msra.mxu0 %v238
    %2581 = vmatprep.subr.mxu0 0.0
    %2582 = vmatpush2.msra.mxu0 0.0
    %2583 = vmatprep.subr.mxu0 0.0
    %2584 = vmatpush2.msra.mxu0 0.0
    %2585 = vmatprep.subr.mxu0 0.0
    %2586 = vmatpush2.msra.mxu0 0.0
    %2587 = vmatprep.subr.mxu0 0.0
    %2588 = vmatpush2.msra.mxu0 0.0
    %2589 = vmatprep.subr.mxu0 0.0
    %2590 = vmatpush2.msra.mxu0 0.0
    %2591 = vmatprep.subr.mxu0 0.0
    %2592 = vmatpush2.msra.mxu0 0.0
    %2593 = vmatprep.subr.mxu0 0.0
    %2594 = vmatpush2.msra.mxu0 0.0
    %2595 = vmatprep.subr.mxu0 0.0
    %2596 = vmatpush2.msra.mxu0 0.0
    %2597 = vmatprep.subr.mxu0 0.0
    %2598 = vmatpush2.msra.mxu0 0.0
    %2599 = vmatprep.subr.mxu0 0.0
    %2600 = vmatpush2.msra.mxu0 0.0
    %2601 = vmatprep.subr.mxu0 0.0
    %2602 = vmatpush2.msra.mxu0 0.0
    %2603 = vmatprep.subr.mxu0 0.0
    %2604 = vmatpush2.msra.mxu0 0.0
    %2605 = vmatprep.subr.mxu0 0.0
    %2606 = vmatpush2.msra.mxu0 0.0
    %2607 = vmatprep.subr.mxu0 0.0
    %2608 = vmatpush2.msra.mxu0 0.0
    %2609 = vmatprep.subr.mxu0 0.0
    %2610 = vmatpush2.msra.mxu0 0.0
    %2611 = vmatprep.subr.mxu0 0.0
    %2612 = vmatpush2.msra.mxu0 0.0
    %2613 = vmatprep.mubr.f32.mxu0 0.0
    %2614 = vmatmul.mubr.f32.gmra.mxu0 %v2545
    %v2615 = vpop.f32.mrf.mxu0
    %v2616 = vadd.f32 0.0, %v2615
    %v2617 = vpop.f32.mrf.mxu0
    %2618 = vmatprep.mubr.f32.mxu0 0.0
    %2619 = vmatmul.mubr.f32.gmra.mxu0 %v2547
    %v2620 = vpop.f32.mrf.mxu0
    %v2621 = vadd.f32 0.0, %v2620
    %v2622 = vpop.f32.mrf.mxu0
    %2623 = vdwg.mxu0
    %v2627 = vrot.slane %v2424, 1
    %v2628 = vrot.slane %v2425, 1
    %v2629 = vsel %vm528, %v2627, %v2628
    %v2630 = vrot.slane %v2426, 1
    %v2631 = vsel %vm528, %v2628, %v2630
    %2632 = vrot.lane.b32.xlu0 %v2629, 127
    %v2633 = vpop.permute.xlu0 %2632
    %2634 = vrot.lane.b32.xlu0 %v2631, 127
    %v2635 = vpop.permute.xlu0 %2634
    %v2636 = vsel %vm839, %v2633, 0
    %v2638 = vsel %vm839, %v2635, 0
    %2640 = vmatprep.subr.mxu0 0.0
    %2641 = vmatpush1.msra.mxu0 0.0
    %2642 = vmatprep.subr.mxu0 0.0
    %2643 = vmatpush1.msra.mxu0 0.0
    %2644 = vmatprep.subr.mxu0 0.0
    %2645 = vmatpush1.msra.mxu0 0.0
    %2646 = vmatprep.subr.mxu0 0.0
    %2647 = vmatpush1.msra.mxu0 0.0
    %2648 = vmatprep.subr.mxu0 0.0
    %2649 = vmatpush1.msra.mxu0 0.0
    %2650 = vmatprep.subr.mxu0 0.0
    %2651 = vmatpush1.msra.mxu0 0.0
    %2652 = vmatprep.subr.mxu0 0.0
    %2653 = vmatpush1.msra.mxu0 0.0
    %2654 = vmatprep.subr.mxu0 0.0
    %2655 = vmatpush1.msra.mxu0 0.0
    %2656 = vmatprep.subr.mxu0 0.0
    %2657 = vmatpush1.msra.mxu0 0.0
    %2658 = vmatprep.subr.mxu0 0.0
    %2659 = vmatpush1.msra.mxu0 0.0
    %2660 = vmatprep.subr.mxu0 0.0
    %2661 = vmatpush1.msra.mxu0 0.0
    %2662 = vmatprep.subr.mxu0 0.0
    %2663 = vmatpush1.msra.mxu0 0.0
    %2664 = vmatprep.subr.mxu0 0.0
    %2665 = vmatpush1.msra.mxu0 0.0
    %2666 = vmatprep.subr.mxu0 0.0
    %2667 = vmatpush1.msra.mxu0 0.0
    %2668 = vmatprep.subr.mxu0 0.0
    %2669 = vmatpush1.msra.mxu0 %v239
    %2670 = vmatprep.subr.mxu0 0.0
    %2671 = vmatpush1.msra.mxu0 %v238
    %2672 = vmatprep.subr.mxu0 0.0
    %2673 = vmatpush2.msra.mxu0 0.0
    %2674 = vmatprep.subr.mxu0 0.0
    %2675 = vmatpush2.msra.mxu0 0.0
    %2676 = vmatprep.subr.mxu0 0.0
    %2677 = vmatpush2.msra.mxu0 0.0
    %2678 = vmatprep.subr.mxu0 0.0
    %2679 = vmatpush2.msra.mxu0 0.0
    %2680 = vmatprep.subr.mxu0 0.0
    %2681 = vmatpush2.msra.mxu0 0.0
    %2682 = vmatprep.subr.mxu0 0.0
    %2683 = vmatpush2.msra.mxu0 0.0
    %2684 = vmatprep.subr.mxu0 0.0
    %2685 = vmatpush2.msra.mxu0 0.0
    %2686 = vmatprep.subr.mxu0 0.0
    %2687 = vmatpush2.msra.mxu0 0.0
    %2688 = vmatprep.subr.mxu0 0.0
    %2689 = vmatpush2.msra.mxu0 0.0
    %2690 = vmatprep.subr.mxu0 0.0
    %2691 = vmatpush2.msra.mxu0 0.0
    %2692 = vmatprep.subr.mxu0 0.0
    %2693 = vmatpush2.msra.mxu0 0.0
    %2694 = vmatprep.subr.mxu0 0.0
    %2695 = vmatpush2.msra.mxu0 0.0
    %2696 = vmatprep.subr.mxu0 0.0
    %2697 = vmatpush2.msra.mxu0 0.0
    %2698 = vmatprep.subr.mxu0 0.0
    %2699 = vmatpush2.msra.mxu0 0.0
    %2700 = vmatprep.subr.mxu0 0.0
    %2701 = vmatpush2.msra.mxu0 0.0
    %2702 = vmatprep.subr.mxu0 0.0
    %2703 = vmatpush2.msra.mxu0 0.0
    %2704 = vmatprep.mubr.f32.mxu0 0.0
    %2705 = vmatmul.mubr.f32.gmra.mxu0 %v2636
    %v2706 = vpop.f32.mrf.mxu0
    %v2707 = vadd.f32 0.0, %v2706
    %v2708 = vpop.f32.mrf.mxu0
    %2709 = vmatprep.mubr.f32.mxu0 0.0
    %2710 = vmatmul.mubr.f32.gmra.mxu0 %v2638
    %v2711 = vpop.f32.mrf.mxu0
    %v2712 = vadd.f32 0.0, %v2711
    %v2713 = vpop.f32.mrf.mxu0
    %2714 = vdwg.mxu0
    %v2718 = vrot.slane %v2427, 1
    %v2719 = vrot.slane %v2428, 1
    %v2720 = vsel %vm528, %v2718, %v2719
    %v2721 = vrot.slane %v2429, 1
    %v2722 = vsel %vm528, %v2719, %v2721
    %2723 = vrot.lane.b32.xlu0 %v2720, 127
    %v2724 = vpop.permute.xlu0 %2723
    %2725 = vrot.lane.b32.xlu0 %v2722, 127
    %v2726 = vpop.permute.xlu0 %2725
    %v2727 = vsel %vm839, %v2724, 0
    %v2729 = vsel %vm839, %v2726, 0
    %2731 = vmatprep.subr.mxu0 0.0
    %2732 = vmatpush1.msra.mxu0 0.0
    %2733 = vmatprep.subr.mxu0 0.0
    %2734 = vmatpush1.msra.mxu0 0.0
    %2735 = vmatprep.subr.mxu0 0.0
    %2736 = vmatpush1.msra.mxu0 0.0
    %2737 = vmatprep.subr.mxu0 0.0
    %2738 = vmatpush1.msra.mxu0 0.0
    %2739 = vmatprep.subr.mxu0 0.0
    %2740 = vmatpush1.msra.mxu0 0.0
    %2741 = vmatprep.subr.mxu0 0.0
    %2742 = vmatpush1.msra.mxu0 0.0
    %2743 = vmatprep.subr.mxu0 0.0
    %2744 = vmatpush1.msra.mxu0 0.0
    %2745 = vmatprep.subr.mxu0 0.0
    %2746 = vmatpush1.msra.mxu0 0.0
    %2747 = vmatprep.subr.mxu0 0.0
    %2748 = vmatpush1.msra.mxu0 0.0
    %2749 = vmatprep.subr.mxu0 0.0
    %2750 = vmatpush1.msra.mxu0 0.0
    %2751 = vmatprep.subr.mxu0 0.0
    %2752 = vmatpush1.msra.mxu0 0.0
    %2753 = vmatprep.subr.mxu0 0.0
    %2754 = vmatpush1.msra.mxu0 0.0
    %2755 = vmatprep.subr.mxu0 0.0
    %2756 = vmatpush1.msra.mxu0 0.0
    %2757 = vmatprep.subr.mxu0 0.0
    %2758 = vmatpush1.msra.mxu0 0.0
    %2759 = vmatprep.subr.mxu0 0.0
    %2760 = vmatpush1.msra.mxu0 %v239
    %2761 = vmatprep.subr.mxu0 0.0
    %2762 = vmatpush1.msra.mxu0 %v238
    %2763 = vmatprep.subr.mxu0 0.0
    %2764 = vmatpush2.msra.mxu0 0.0
    %2765 = vmatprep.subr.mxu0 0.0
    %2766 = vmatpush2.msra.mxu0 0.0
    %2767 = vmatprep.subr.mxu0 0.0
    %2768 = vmatpush2.msra.mxu0 0.0
    %2769 = vmatprep.subr.mxu0 0.0
    %2770 = vmatpush2.msra.mxu0 0.0
    %2771 = vmatprep.subr.mxu0 0.0
    %2772 = vmatpush2.msra.mxu0 0.0
    %2773 = vmatprep.subr.mxu0 0.0
    %2774 = vmatpush2.msra.mxu0 0.0
    %2775 = vmatprep.subr.mxu0 0.0
    %2776 = vmatpush2.msra.mxu0 0.0
    %2777 = vmatprep.subr.mxu0 0.0
    %2778 = vmatpush2.msra.mxu0 0.0
    %2779 = vmatprep.subr.mxu0 0.0
    %2780 = vmatpush2.msra.mxu0 0.0
    %2781 = vmatprep.subr.mxu0 0.0
    %2782 = vmatpush2.msra.mxu0 0.0
    %2783 = vmatprep.subr.mxu0 0.0
    %2784 = vmatpush2.msra.mxu0 0.0
    %2785 = vmatprep.subr.mxu0 0.0
    %2786 = vmatpush2.msra.mxu0 0.0
    %2787 = vmatprep.subr.mxu0 0.0
    %2788 = vmatpush2.msra.mxu0 0.0
    %2789 = vmatprep.subr.mxu0 0.0
    %2790 = vmatpush2.msra.mxu0 0.0
    %2791 = vmatprep.subr.mxu0 0.0
    %2792 = vmatpush2.msra.mxu0 0.0
    %2793 = vmatprep.subr.mxu0 0.0
    %2794 = vmatpush2.msra.mxu0 0.0
    %2795 = vmatprep.mubr.f32.mxu0 0.0
    %2796 = vmatmul.mubr.f32.gmra.mxu0 %v2727
    %v2797 = vpop.f32.mrf.mxu0
    %v2798 = vadd.f32 0.0, %v2797
    %v2799 = vpop.f32.mrf.mxu0
    %2800 = vmatprep.mubr.f32.mxu0 0.0
    %2801 = vmatmul.mubr.f32.gmra.mxu0 %v2729
    %v2802 = vpop.f32.mrf.mxu0
    %v2803 = vadd.f32 0.0, %v2802
    %v2804 = vpop.f32.mrf.mxu0
    %2805 = vdwg.mxu0
    %v2809 = vrot.slane %v2430, 1
    %v2810 = vrot.slane %v2431, 1
    %v2811 = vsel %vm528, %v2809, %v2810
    %v2812 = vrot.slane %v2432, 1
    %v2813 = vsel %vm528, %v2810, %v2812
    %2814 = vrot.lane.b32.xlu0 %v2811, 127
    %v2815 = vpop.permute.xlu0 %2814
    %2816 = vrot.lane.b32.xlu0 %v2813, 127
    %v2817 = vpop.permute.xlu0 %2816
    %v2818 = vsel %vm839, %v2815, 0
    %v2820 = vsel %vm839, %v2817, 0
    %2822 = vmatprep.subr.mxu0 0.0
    %2823 = vmatpush1.msra.mxu0 0.0
    %2824 = vmatprep.subr.mxu0 0.0
    %2825 = vmatpush1.msra.mxu0 0.0
    %2826 = vmatprep.subr.mxu0 0.0
    %2827 = vmatpush1.msra.mxu0 0.0
    %2828 = vmatprep.subr.mxu0 0.0
    %2829 = vmatpush1.msra.mxu0 0.0
    %2830 = vmatprep.subr.mxu0 0.0
    %2831 = vmatpush1.msra.mxu0 0.0
    %2832 = vmatprep.subr.mxu0 0.0
    %2833 = vmatpush1.msra.mxu0 0.0
    %2834 = vmatprep.subr.mxu0 0.0
    %2835 = vmatpush1.msra.mxu0 0.0
    %2836 = vmatprep.subr.mxu0 0.0
    %2837 = vmatpush1.msra.mxu0 0.0
    %2838 = vmatprep.subr.mxu0 0.0
    %2839 = vmatpush1.msra.mxu0 0.0
    %2840 = vmatprep.subr.mxu0 0.0
    %2841 = vmatpush1.msra.mxu0 0.0
    %2842 = vmatprep.subr.mxu0 0.0
    %2843 = vmatpush1.msra.mxu0 0.0
    %2844 = vmatprep.subr.mxu0 0.0
    %2845 = vmatpush1.msra.mxu0 0.0
    %2846 = vmatprep.subr.mxu0 0.0
    %2847 = vmatpush1.msra.mxu0 0.0
    %2848 = vmatprep.subr.mxu0 0.0
    %2849 = vmatpush1.msra.mxu0 0.0
    %2850 = vmatprep.subr.mxu0 0.0
    %2851 = vmatpush1.msra.mxu0 %v239
    %2852 = vmatprep.subr.mxu0 0.0
    %2853 = vmatpush1.msra.mxu0 %v238
    %2854 = vmatprep.subr.mxu0 0.0
    %2855 = vmatpush2.msra.mxu0 0.0
    %2856 = vmatprep.subr.mxu0 0.0
    %2857 = vmatpush2.msra.mxu0 0.0
    %2858 = vmatprep.subr.mxu0 0.0
    %2859 = vmatpush2.msra.mxu0 0.0
    %2860 = vmatprep.subr.mxu0 0.0
    %2861 = vmatpush2.msra.mxu0 0.0
    %2862 = vmatprep.subr.mxu0 0.0
    %2863 = vmatpush2.msra.mxu0 0.0
    %2864 = vmatprep.subr.mxu0 0.0
    %2865 = vmatpush2.msra.mxu0 0.0
    %2866 = vmatprep.subr.mxu0 0.0
    %2867 = vmatpush2.msra.mxu0 0.0
    %2868 = vmatprep.subr.mxu0 0.0
    %2869 = vmatpush2.msra.mxu0 0.0
    %2870 = vmatprep.subr.mxu0 0.0
    %2871 = vmatpush2.msra.mxu0 0.0
    %2872 = vmatprep.subr.mxu0 0.0
    %2873 = vmatpush2.msra.mxu0 0.0
    %2874 = vmatprep.subr.mxu0 0.0
    %2875 = vmatpush2.msra.mxu0 0.0
    %2876 = vmatprep.subr.mxu0 0.0
    %2877 = vmatpush2.msra.mxu0 0.0
    %2878 = vmatprep.subr.mxu0 0.0
    %2879 = vmatpush2.msra.mxu0 0.0
    %2880 = vmatprep.subr.mxu0 0.0
    %2881 = vmatpush2.msra.mxu0 0.0
    %2882 = vmatprep.subr.mxu0 0.0
    %2883 = vmatpush2.msra.mxu0 0.0
    %2884 = vmatprep.subr.mxu0 0.0
    %2885 = vmatpush2.msra.mxu0 0.0
    %2886 = vmatprep.mubr.f32.mxu0 0.0
    %2887 = vmatmul.mubr.f32.gmra.mxu0 %v2818
    %v2888 = vpop.f32.mrf.mxu0
    %v2889 = vadd.f32 0.0, %v2888
    %v2890 = vpop.f32.mrf.mxu0
    %2891 = vmatprep.mubr.f32.mxu0 0.0
    %2892 = vmatmul.mubr.f32.gmra.mxu0 %v2820
    %v2893 = vpop.f32.mrf.mxu0
    %v2894 = vadd.f32 0.0, %v2893
    %v2895 = vpop.f32.mrf.mxu0
    %2896 = vdwg.mxu0
    %v2900 = vrot.slane %v2433, 1
    %v2901 = vrot.slane %v2434, 1
    %v2902 = vsel %vm528, %v2900, %v2901
    %v2903 = vrot.slane %v2435, 1
    %v2904 = vsel %vm528, %v2901, %v2903
    %2905 = vrot.lane.b32.xlu0 %v2902, 127
    %v2906 = vpop.permute.xlu0 %2905
    %2907 = vrot.lane.b32.xlu0 %v2904, 127
    %v2908 = vpop.permute.xlu0 %2907
    %v2909 = vsel %vm839, %v2906, 0
    %v2911 = vsel %vm839, %v2908, 0
    %2913 = vmatprep.subr.mxu0 0.0
    %2914 = vmatpush1.msra.mxu0 0.0
    %2915 = vmatprep.subr.mxu0 0.0
    %2916 = vmatpush1.msra.mxu0 0.0
    %2917 = vmatprep.subr.mxu0 0.0
    %2918 = vmatpush1.msra.mxu0 0.0
    %2919 = vmatprep.subr.mxu0 0.0
    %2920 = vmatpush1.msra.mxu0 0.0
    %2921 = vmatprep.subr.mxu0 0.0
    %2922 = vmatpush1.msra.mxu0 0.0
    %2923 = vmatprep.subr.mxu0 0.0
    %2924 = vmatpush1.msra.mxu0 0.0
    %2925 = vmatprep.subr.mxu0 0.0
    %2926 = vmatpush1.msra.mxu0 0.0
    %2927 = vmatprep.subr.mxu0 0.0
    %2928 = vmatpush1.msra.mxu0 0.0
    %2929 = vmatprep.subr.mxu0 0.0
    %2930 = vmatpush1.msra.mxu0 0.0
    %2931 = vmatprep.subr.mxu0 0.0
    %2932 = vmatpush1.msra.mxu0 0.0
    %2933 = vmatprep.subr.mxu0 0.0
    %2934 = vmatpush1.msra.mxu0 0.0
    %2935 = vmatprep.subr.mxu0 0.0
    %2936 = vmatpush1.msra.mxu0 0.0
    %2937 = vmatprep.subr.mxu0 0.0
    %2938 = vmatpush1.msra.mxu0 0.0
    %2939 = vmatprep.subr.mxu0 0.0
    %2940 = vmatpush1.msra.mxu0 0.0
    %2941 = vmatprep.subr.mxu0 0.0
    %2942 = vmatpush1.msra.mxu0 %v239
    %2943 = vmatprep.subr.mxu0 0.0
    %2944 = vmatpush1.msra.mxu0 %v238
    %2945 = vmatprep.subr.mxu0 0.0
    %2946 = vmatpush2.msra.mxu0 0.0
    %2947 = vmatprep.subr.mxu0 0.0
    %2948 = vmatpush2.msra.mxu0 0.0
    %2949 = vmatprep.subr.mxu0 0.0
    %2950 = vmatpush2.msra.mxu0 0.0
    %2951 = vmatprep.subr.mxu0 0.0
    %2952 = vmatpush2.msra.mxu0 0.0
    %2953 = vmatprep.subr.mxu0 0.0
    %2954 = vmatpush2.msra.mxu0 0.0
    %2955 = vmatprep.subr.mxu0 0.0
    %2956 = vmatpush2.msra.mxu0 0.0
    %2957 = vmatprep.subr.mxu0 0.0
    %2958 = vmatpush2.msra.mxu0 0.0
    %2959 = vmatprep.subr.mxu0 0.0
    %2960 = vmatpush2.msra.mxu0 0.0
    %2961 = vmatprep.subr.mxu0 0.0
    %2962 = vmatpush2.msra.mxu0 0.0
    %2963 = vmatprep.subr.mxu0 0.0
    %2964 = vmatpush2.msra.mxu0 0.0
    %2965 = vmatprep.subr.mxu0 0.0
    %2966 = vmatpush2.msra.mxu0 0.0
    %2967 = vmatprep.subr.mxu0 0.0
    %2968 = vmatpush2.msra.mxu0 0.0
    %2969 = vmatprep.subr.mxu0 0.0
    %2970 = vmatpush2.msra.mxu0 0.0
    %2971 = vmatprep.subr.mxu0 0.0
    %2972 = vmatpush2.msra.mxu0 0.0
    %2973 = vmatprep.subr.mxu0 0.0
    %2974 = vmatpush2.msra.mxu0 0.0
    %2975 = vmatprep.subr.mxu0 0.0
    %2976 = vmatpush2.msra.mxu0 0.0
    %2977 = vmatprep.mubr.f32.mxu0 0.0
    %2978 = vmatmul.mubr.f32.gmra.mxu0 %v2909
    %v2979 = vpop.f32.mrf.mxu0
    %v2980 = vadd.f32 0.0, %v2979
    %v2981 = vpop.f32.mrf.mxu0
    %2982 = vmatprep.mubr.f32.mxu0 0.0
    %2983 = vmatmul.mubr.f32.gmra.mxu0 %v2911
    %v2984 = vpop.f32.mrf.mxu0
    %v2985 = vadd.f32 0.0, %v2984
    %v2986 = vpop.f32.mrf.mxu0
    %2987 = vdwg.mxu0
    %v2991 = vrot.slane %v2436, 1
    %v2992 = vrot.slane %v2437, 1
    %v2993 = vsel %vm528, %v2991, %v2992
    %v2994 = vrot.slane %v2438, 1
    %v2995 = vsel %vm528, %v2992, %v2994
    %2996 = vrot.lane.b32.xlu0 %v2993, 127
    %v2997 = vpop.permute.xlu0 %2996
    %2998 = vrot.lane.b32.xlu0 %v2995, 127
    %v2999 = vpop.permute.xlu0 %2998
    %v3000 = vsel %vm839, %v2997, 0
    %v3002 = vsel %vm839, %v2999, 0
    %3004 = vmatprep.subr.mxu0 0.0
    %3005 = vmatpush1.msra.mxu0 0.0
    %3006 = vmatprep.subr.mxu0 0.0
    %3007 = vmatpush1.msra.mxu0 0.0
    %3008 = vmatprep.subr.mxu0 0.0
    %3009 = vmatpush1.msra.mxu0 0.0
    %3010 = vmatprep.subr.mxu0 0.0
    %3011 = vmatpush1.msra.mxu0 0.0
    %3012 = vmatprep.subr.mxu0 0.0
    %3013 = vmatpush1.msra.mxu0 0.0
    %3014 = vmatprep.subr.mxu0 0.0
    %3015 = vmatpush1.msra.mxu0 0.0
    %3016 = vmatprep.subr.mxu0 0.0
    %3017 = vmatpush1.msra.mxu0 0.0
    %3018 = vmatprep.subr.mxu0 0.0
    %3019 = vmatpush1.msra.mxu0 0.0
    %3020 = vmatprep.subr.mxu0 0.0
    %3021 = vmatpush1.msra.mxu0 0.0
    %3022 = vmatprep.subr.mxu0 0.0
    %3023 = vmatpush1.msra.mxu0 0.0
    %3024 = vmatprep.subr.mxu0 0.0
    %3025 = vmatpush1.msra.mxu0 0.0
    %3026 = vmatprep.subr.mxu0 0.0
    %3027 = vmatpush1.msra.mxu0 0.0
    %3028 = vmatprep.subr.mxu0 0.0
    %3029 = vmatpush1.msra.mxu0 0.0
    %3030 = vmatprep.subr.mxu0 0.0
    %3031 = vmatpush1.msra.mxu0 0.0
    %3032 = vmatprep.subr.mxu0 0.0
    %3033 = vmatpush1.msra.mxu0 %v239
    %3034 = vmatprep.subr.mxu0 0.0
    %3035 = vmatpush1.msra.mxu0 %v238
    %3036 = vmatprep.subr.mxu0 0.0
    %3037 = vmatpush2.msra.mxu0 0.0
    %3038 = vmatprep.subr.mxu0 0.0
    %3039 = vmatpush2.msra.mxu0 0.0
    %3040 = vmatprep.subr.mxu0 0.0
    %3041 = vmatpush2.msra.mxu0 0.0
    %3042 = vmatprep.subr.mxu0 0.0
    %3043 = vmatpush2.msra.mxu0 0.0
    %3044 = vmatprep.subr.mxu0 0.0
    %3045 = vmatpush2.msra.mxu0 0.0
    %3046 = vmatprep.subr.mxu0 0.0
    %3047 = vmatpush2.msra.mxu0 0.0
    %3048 = vmatprep.subr.mxu0 0.0
    %3049 = vmatpush2.msra.mxu0 0.0
    %3050 = vmatprep.subr.mxu0 0.0
    %3051 = vmatpush2.msra.mxu0 0.0
    %3052 = vmatprep.subr.mxu0 0.0
    %3053 = vmatpush2.msra.mxu0 0.0
    %3054 = vmatprep.subr.mxu0 0.0
    %3055 = vmatpush2.msra.mxu0 0.0
    %3056 = vmatprep.subr.mxu0 0.0
    %3057 = vmatpush2.msra.mxu0 0.0
    %3058 = vmatprep.subr.mxu0 0.0
    %3059 = vmatpush2.msra.mxu0 0.0
    %3060 = vmatprep.subr.mxu0 0.0
    %3061 = vmatpush2.msra.mxu0 0.0
    %3062 = vmatprep.subr.mxu0 0.0
    %3063 = vmatpush2.msra.mxu0 0.0
    %3064 = vmatprep.subr.mxu0 0.0
    %3065 = vmatpush2.msra.mxu0 0.0
    %3066 = vmatprep.subr.mxu0 0.0
    %3067 = vmatpush2.msra.mxu0 0.0
    %3068 = vmatprep.mubr.f32.mxu0 0.0
    %3069 = vmatmul.mubr.f32.gmra.mxu0 %v3000
    %v3070 = vpop.f32.mrf.mxu0
    %v3071 = vadd.f32 0.0, %v3070
    %v3072 = vpop.f32.mrf.mxu0
    %3073 = vmatprep.mubr.f32.mxu0 0.0
    %3074 = vmatmul.mubr.f32.gmra.mxu0 %v3002
    %v3075 = vpop.f32.mrf.mxu0
    %v3076 = vadd.f32 0.0, %v3075
    %v3077 = vpop.f32.mrf.mxu0
    %3078 = vdwg.mxu0
    %v3082 = vrot.slane %v2439, 1
    %v3083 = vrot.slane %v2440, 1
    %v3084 = vsel %vm528, %v3082, %v3083
    %v3085 = vrot.slane %v2441, 1
    %v3086 = vsel %vm528, %v3083, %v3085
    %3087 = vrot.lane.b32.xlu0 %v3084, 127
    %v3088 = vpop.permute.xlu0 %3087
    %3089 = vrot.lane.b32.xlu0 %v3086, 127
    %v3090 = vpop.permute.xlu0 %3089
    %v3091 = vsel %vm839, %v3088, 0
    %v3093 = vsel %vm839, %v3090, 0
    %3095 = vmatprep.subr.mxu0 0.0
    %3096 = vmatpush1.msra.mxu0 0.0
    %3097 = vmatprep.subr.mxu0 0.0
    %3098 = vmatpush1.msra.mxu0 0.0
    %3099 = vmatprep.subr.mxu0 0.0
    %3100 = vmatpush1.msra.mxu0 0.0
    %3101 = vmatprep.subr.mxu0 0.0
    %3102 = vmatpush1.msra.mxu0 0.0
    %3103 = vmatprep.subr.mxu0 0.0
    %3104 = vmatpush1.msra.mxu0 0.0
    %3105 = vmatprep.subr.mxu0 0.0
    %3106 = vmatpush1.msra.mxu0 0.0
    %3107 = vmatprep.subr.mxu0 0.0
    %3108 = vmatpush1.msra.mxu0 0.0
    %3109 = vmatprep.subr.mxu0 0.0
    %3110 = vmatpush1.msra.mxu0 0.0
    %3111 = vmatprep.subr.mxu0 0.0
    %3112 = vmatpush1.msra.mxu0 0.0
    %3113 = vmatprep.subr.mxu0 0.0
    %3114 = vmatpush1.msra.mxu0 0.0
    %3115 = vmatprep.subr.mxu0 0.0
    %3116 = vmatpush1.msra.mxu0 0.0
    %3117 = vmatprep.subr.mxu0 0.0
    %3118 = vmatpush1.msra.mxu0 0.0
    %3119 = vmatprep.subr.mxu0 0.0
    %3120 = vmatpush1.msra.mxu0 0.0
    %3121 = vmatprep.subr.mxu0 0.0
    %3122 = vmatpush1.msra.mxu0 0.0
    %3123 = vmatprep.subr.mxu0 0.0
    %3124 = vmatpush1.msra.mxu0 %v239
    %3125 = vmatprep.subr.mxu0 0.0
    %3126 = vmatpush1.msra.mxu0 %v238
    %3127 = vmatprep.subr.mxu0 0.0
    %3128 = vmatpush2.msra.mxu0 0.0
    %3129 = vmatprep.subr.mxu0 0.0
    %3130 = vmatpush2.msra.mxu0 0.0
    %3131 = vmatprep.subr.mxu0 0.0
    %3132 = vmatpush2.msra.mxu0 0.0
    %3133 = vmatprep.subr.mxu0 0.0
    %3134 = vmatpush2.msra.mxu0 0.0
    %3135 = vmatprep.subr.mxu0 0.0
    %3136 = vmatpush2.msra.mxu0 0.0
    %3137 = vmatprep.subr.mxu0 0.0
    %3138 = vmatpush2.msra.mxu0 0.0
    %3139 = vmatprep.subr.mxu0 0.0
    %3140 = vmatpush2.msra.mxu0 0.0
    %3141 = vmatprep.subr.mxu0 0.0
    %3142 = vmatpush2.msra.mxu0 0.0
    %3143 = vmatprep.subr.mxu0 0.0
    %3144 = vmatpush2.msra.mxu0 0.0
    %3145 = vmatprep.subr.mxu0 0.0
    %3146 = vmatpush2.msra.mxu0 0.0
    %3147 = vmatprep.subr.mxu0 0.0
    %3148 = vmatpush2.msra.mxu0 0.0
    %3149 = vmatprep.subr.mxu0 0.0
    %3150 = vmatpush2.msra.mxu0 0.0
    %3151 = vmatprep.subr.mxu0 0.0
    %3152 = vmatpush2.msra.mxu0 0.0
    %3153 = vmatprep.subr.mxu0 0.0
    %3154 = vmatpush2.msra.mxu0 0.0
    %3155 = vmatprep.subr.mxu0 0.0
    %3156 = vmatpush2.msra.mxu0 0.0
    %3157 = vmatprep.subr.mxu0 0.0
    %3158 = vmatpush2.msra.mxu0 0.0
    %3159 = vmatprep.mubr.f32.mxu0 0.0
    %3160 = vmatmul.mubr.f32.gmra.mxu0 %v3091
    %v3161 = vpop.f32.mrf.mxu0
    %v3162 = vadd.f32 0.0, %v3161
    %v3163 = vpop.f32.mrf.mxu0
    %3164 = vmatprep.mubr.f32.mxu0 0.0
    %3165 = vmatmul.mubr.f32.gmra.mxu0 %v3093
    %v3166 = vpop.f32.mrf.mxu0
    %v3167 = vadd.f32 0.0, %v3166
    %v3168 = vpop.f32.mrf.mxu0
    %3169 = vdwg.mxu0
    %v3173 = vrot.slane %v2266, 1
    %v3174 = vrot.slane %v2267, 1
    %v3175 = vsel %vm528, %v3173, %v3174
    %v3176 = vrot.slane %v2268, 1
    %v3177 = vsel %vm528, %v3174, %v3176
    %v3178 = vsel %vm839, %v3175, 0
    %v3180 = vsel %vm839, %v3177, 0
    %3182 = vmatprep.subr.mxu0 0.0
    %3183 = vmatpush1.msra.mxu0 0.0
    %3184 = vmatprep.subr.mxu0 0.0
    %3185 = vmatpush1.msra.mxu0 0.0
    %3186 = vmatprep.subr.mxu0 0.0
    %3187 = vmatpush1.msra.mxu0 0.0
    %3188 = vmatprep.subr.mxu0 0.0
    %3189 = vmatpush1.msra.mxu0 0.0
    %3190 = vmatprep.subr.mxu0 0.0
    %3191 = vmatpush1.msra.mxu0 0.0
    %3192 = vmatprep.subr.mxu0 0.0
    %3193 = vmatpush1.msra.mxu0 0.0
    %3194 = vmatprep.subr.mxu0 0.0
    %3195 = vmatpush1.msra.mxu0 0.0
    %3196 = vmatprep.subr.mxu0 0.0
    %3197 = vmatpush1.msra.mxu0 0.0
    %3198 = vmatprep.subr.mxu0 0.0
    %3199 = vmatpush1.msra.mxu0 0.0
    %3200 = vmatprep.subr.mxu0 0.0
    %3201 = vmatpush1.msra.mxu0 0.0
    %3202 = vmatprep.subr.mxu0 0.0
    %3203 = vmatpush1.msra.mxu0 0.0
    %3204 = vmatprep.subr.mxu0 0.0
    %3205 = vmatpush1.msra.mxu0 0.0
    %3206 = vmatprep.subr.mxu0 0.0
    %3207 = vmatpush1.msra.mxu0 0.0
    %3208 = vmatprep.subr.mxu0 0.0
    %3209 = vmatpush1.msra.mxu0 0.0
    %3210 = vmatprep.subr.mxu0 0.0
    %3211 = vmatpush1.msra.mxu0 %v236
    %3212 = vmatprep.subr.mxu0 0.0
    %3213 = vmatpush1.msra.mxu0 %v235
    %3214 = vmatprep.subr.mxu0 0.0
    %3215 = vmatpush2.msra.mxu0 0.0
    %3216 = vmatprep.subr.mxu0 0.0
    %3217 = vmatpush2.msra.mxu0 0.0
    %3218 = vmatprep.subr.mxu0 0.0
    %3219 = vmatpush2.msra.mxu0 0.0
    %3220 = vmatprep.subr.mxu0 0.0
    %3221 = vmatpush2.msra.mxu0 0.0
    %3222 = vmatprep.subr.mxu0 0.0
    %3223 = vmatpush2.msra.mxu0 0.0
    %3224 = vmatprep.subr.mxu0 0.0
    %3225 = vmatpush2.msra.mxu0 0.0
    %3226 = vmatprep.subr.mxu0 0.0
    %3227 = vmatpush2.msra.mxu0 0.0
    %3228 = vmatprep.subr.mxu0 0.0
    %3229 = vmatpush2.msra.mxu0 0.0
    %3230 = vmatprep.subr.mxu0 0.0
    %3231 = vmatpush2.msra.mxu0 0.0
    %3232 = vmatprep.subr.mxu0 0.0
    %3233 = vmatpush2.msra.mxu0 0.0
    %3234 = vmatprep.subr.mxu0 0.0
    %3235 = vmatpush2.msra.mxu0 0.0
    %3236 = vmatprep.subr.mxu0 0.0
    %3237 = vmatpush2.msra.mxu0 0.0
    %3238 = vmatprep.subr.mxu0 0.0
    %3239 = vmatpush2.msra.mxu0 0.0
    %3240 = vmatprep.subr.mxu0 0.0
    %3241 = vmatpush2.msra.mxu0 0.0
    %3242 = vmatprep.subr.mxu0 0.0
    %3243 = vmatpush2.msra.mxu0 0.0
    %3244 = vmatprep.subr.mxu0 0.0
    %3245 = vmatpush2.msra.mxu0 0.0
    %3246 = vmatprep.mubr.f32.mxu0 0.0
    %3247 = vmatmul.mubr.f32.gmra.mxu0 %v3178
    %v3248 = vpop.f32.mrf.mxu0
    %v3249 = vadd.f32 %v2525, %v3248
    %v3250 = vpop.f32.mrf.mxu0
    %3251 = vmatprep.mubr.f32.mxu0 0.0
    %3252 = vmatmul.mubr.f32.gmra.mxu0 %v3180
    %v3253 = vpop.f32.mrf.mxu0
    %v3254 = vadd.f32 %v2530, %v3253
    %v3255 = vpop.f32.mrf.mxu0
    %3256 = vdwg.mxu0
    %v3260 = vrot.slane %v2269, 1
    %v3261 = vrot.slane %v2270, 1
    %v3262 = vsel %vm528, %v3260, %v3261
    %v3263 = vrot.slane %v2271, 1
    %v3264 = vsel %vm528, %v3261, %v3263
    %v3265 = vsel %vm839, %v3262, 0
    %v3267 = vsel %vm839, %v3264, 0
    %3269 = vmatprep.subr.mxu0 0.0
    %3270 = vmatpush1.msra.mxu0 0.0
    %3271 = vmatprep.subr.mxu0 0.0
    %3272 = vmatpush1.msra.mxu0 0.0
    %3273 = vmatprep.subr.mxu0 0.0
    %3274 = vmatpush1.msra.mxu0 0.0
    %3275 = vmatprep.subr.mxu0 0.0
    %3276 = vmatpush1.msra.mxu0 0.0
    %3277 = vmatprep.subr.mxu0 0.0
    %3278 = vmatpush1.msra.mxu0 0.0
    %3279 = vmatprep.subr.mxu0 0.0
    %3280 = vmatpush1.msra.mxu0 0.0
    %3281 = vmatprep.subr.mxu0 0.0
    %3282 = vmatpush1.msra.mxu0 0.0
    %3283 = vmatprep.subr.mxu0 0.0
    %3284 = vmatpush1.msra.mxu0 0.0
    %3285 = vmatprep.subr.mxu0 0.0
    %3286 = vmatpush1.msra.mxu0 0.0
    %3287 = vmatprep.subr.mxu0 0.0
    %3288 = vmatpush1.msra.mxu0 0.0
    %3289 = vmatprep.subr.mxu0 0.0
    %3290 = vmatpush1.msra.mxu0 0.0
    %3291 = vmatprep.subr.mxu0 0.0
    %3292 = vmatpush1.msra.mxu0 0.0
    %3293 = vmatprep.subr.mxu0 0.0
    %3294 = vmatpush1.msra.mxu0 0.0
    %3295 = vmatprep.subr.mxu0 0.0
    %3296 = vmatpush1.msra.mxu0 0.0
    %3297 = vmatprep.subr.mxu0 0.0
    %3298 = vmatpush1.msra.mxu0 %v236
    %3299 = vmatprep.subr.mxu0 0.0
    %3300 = vmatpush1.msra.mxu0 %v235
    %3301 = vmatprep.subr.mxu0 0.0
    %3302 = vmatpush2.msra.mxu0 0.0
    %3303 = vmatprep.subr.mxu0 0.0
    %3304 = vmatpush2.msra.mxu0 0.0
    %3305 = vmatprep.subr.mxu0 0.0
    %3306 = vmatpush2.msra.mxu0 0.0
    %3307 = vmatprep.subr.mxu0 0.0
    %3308 = vmatpush2.msra.mxu0 0.0
    %3309 = vmatprep.subr.mxu0 0.0
    %3310 = vmatpush2.msra.mxu0 0.0
    %3311 = vmatprep.subr.mxu0 0.0
    %3312 = vmatpush2.msra.mxu0 0.0
    %3313 = vmatprep.subr.mxu0 0.0
    %3314 = vmatpush2.msra.mxu0 0.0
    %3315 = vmatprep.subr.mxu0 0.0
    %3316 = vmatpush2.msra.mxu0 0.0
    %3317 = vmatprep.subr.mxu0 0.0
    %3318 = vmatpush2.msra.mxu0 0.0
    %3319 = vmatprep.subr.mxu0 0.0
    %3320 = vmatpush2.msra.mxu0 0.0
    %3321 = vmatprep.subr.mxu0 0.0
    %3322 = vmatpush2.msra.mxu0 0.0
    %3323 = vmatprep.subr.mxu0 0.0
    %3324 = vmatpush2.msra.mxu0 0.0
    %3325 = vmatprep.subr.mxu0 0.0
    %3326 = vmatpush2.msra.mxu0 0.0
    %3327 = vmatprep.subr.mxu0 0.0
    %3328 = vmatpush2.msra.mxu0 0.0
    %3329 = vmatprep.subr.mxu0 0.0
    %3330 = vmatpush2.msra.mxu0 0.0
    %3331 = vmatprep.subr.mxu0 0.0
    %3332 = vmatpush2.msra.mxu0 0.0
    %3333 = vmatprep.mubr.f32.mxu0 0.0
    %3334 = vmatmul.mubr.f32.gmra.mxu0 %v3265
    %v3335 = vpop.f32.mrf.mxu0
    %v3336 = vadd.f32 %v2616, %v3335
    %v3337 = vpop.f32.mrf.mxu0
    %3338 = vmatprep.mubr.f32.mxu0 0.0
    %3339 = vmatmul.mubr.f32.gmra.mxu0 %v3267
    %v3340 = vpop.f32.mrf.mxu0
    %v3341 = vadd.f32 %v2621, %v3340
    %v3342 = vpop.f32.mrf.mxu0
    %3343 = vdwg.mxu0
    %v3347 = vrot.slane %v2272, 1
    %v3348 = vrot.slane %v2273, 1
    %v3349 = vsel %vm528, %v3347, %v3348
    %v3350 = vrot.slane %v2274, 1
    %v3351 = vsel %vm528, %v3348, %v3350
    %v3352 = vsel %vm839, %v3349, 0
    %v3354 = vsel %vm839, %v3351, 0
    %3356 = vmatprep.subr.mxu0 0.0
    %3357 = vmatpush1.msra.mxu0 0.0
    %3358 = vmatprep.subr.mxu0 0.0
    %3359 = vmatpush1.msra.mxu0 0.0
    %3360 = vmatprep.subr.mxu0 0.0
    %3361 = vmatpush1.msra.mxu0 0.0
    %3362 = vmatprep.subr.mxu0 0.0
    %3363 = vmatpush1.msra.mxu0 0.0
    %3364 = vmatprep.subr.mxu0 0.0
    %3365 = vmatpush1.msra.mxu0 0.0
    %3366 = vmatprep.subr.mxu0 0.0
    %3367 = vmatpush1.msra.mxu0 0.0
    %3368 = vmatprep.subr.mxu0 0.0
    %3369 = vmatpush1.msra.mxu0 0.0
    %3370 = vmatprep.subr.mxu0 0.0
    %3371 = vmatpush1.msra.mxu0 0.0
    %3372 = vmatprep.subr.mxu0 0.0
    %3373 = vmatpush1.msra.mxu0 0.0
    %3374 = vmatprep.subr.mxu0 0.0
    %3375 = vmatpush1.msra.mxu0 0.0
    %3376 = vmatprep.subr.mxu0 0.0
    %3377 = vmatpush1.msra.mxu0 0.0
    %3378 = vmatprep.subr.mxu0 0.0
    %3379 = vmatpush1.msra.mxu0 0.0
    %3380 = vmatprep.subr.mxu0 0.0
    %3381 = vmatpush1.msra.mxu0 0.0
    %3382 = vmatprep.subr.mxu0 0.0
    %3383 = vmatpush1.msra.mxu0 0.0
    %3384 = vmatprep.subr.mxu0 0.0
    %3385 = vmatpush1.msra.mxu0 %v236
    %3386 = vmatprep.subr.mxu0 0.0
    %3387 = vmatpush1.msra.mxu0 %v235
    %3388 = vmatprep.subr.mxu0 0.0
    %3389 = vmatpush2.msra.mxu0 0.0
    %3390 = vmatprep.subr.mxu0 0.0
    %3391 = vmatpush2.msra.mxu0 0.0
    %3392 = vmatprep.subr.mxu0 0.0
    %3393 = vmatpush2.msra.mxu0 0.0
    %3394 = vmatprep.subr.mxu0 0.0
    %3395 = vmatpush2.msra.mxu0 0.0
    %3396 = vmatprep.subr.mxu0 0.0
    %3397 = vmatpush2.msra.mxu0 0.0
    %3398 = vmatprep.subr.mxu0 0.0
    %3399 = vmatpush2.msra.mxu0 0.0
    %3400 = vmatprep.subr.mxu0 0.0
    %3401 = vmatpush2.msra.mxu0 0.0
    %3402 = vmatprep.subr.mxu0 0.0
    %3403 = vmatpush2.msra.mxu0 0.0
    %3404 = vmatprep.subr.mxu0 0.0
    %3405 = vmatpush2.msra.mxu0 0.0
    %3406 = vmatprep.subr.mxu0 0.0
    %3407 = vmatpush2.msra.mxu0 0.0
    %3408 = vmatprep.subr.mxu0 0.0
    %3409 = vmatpush2.msra.mxu0 0.0
    %3410 = vmatprep.subr.mxu0 0.0
    %3411 = vmatpush2.msra.mxu0 0.0
    %3412 = vmatprep.subr.mxu0 0.0
    %3413 = vmatpush2.msra.mxu0 0.0
    %3414 = vmatprep.subr.mxu0 0.0
    %3415 = vmatpush2.msra.mxu0 0.0
    %3416 = vmatprep.subr.mxu0 0.0
    %3417 = vmatpush2.msra.mxu0 0.0
    %3418 = vmatprep.subr.mxu0 0.0
    %3419 = vmatpush2.msra.mxu0 0.0
    %3420 = vmatprep.mubr.f32.mxu0 0.0
    %3421 = vmatmul.mubr.f32.gmra.mxu0 %v3352
    %v3422 = vpop.f32.mrf.mxu0
    %v3423 = vadd.f32 %v2707, %v3422
    %v3424 = vpop.f32.mrf.mxu0
    %3425 = vmatprep.mubr.f32.mxu0 0.0
    %3426 = vmatmul.mubr.f32.gmra.mxu0 %v3354
    %v3427 = vpop.f32.mrf.mxu0
    %v3428 = vadd.f32 %v2712, %v3427
    %v3429 = vpop.f32.mrf.mxu0
    %3430 = vdwg.mxu0
    %v3434 = vrot.slane %v2275, 1
    %v3435 = vrot.slane %v2276, 1
    %v3436 = vsel %vm528, %v3434, %v3435
    %v3437 = vrot.slane %v2277, 1
    %v3438 = vsel %vm528, %v3435, %v3437
    %v3439 = vsel %vm839, %v3436, 0
    %v3441 = vsel %vm839, %v3438, 0
    %3443 = vmatprep.subr.mxu0 0.0
    %3444 = vmatpush1.msra.mxu0 0.0
    %3445 = vmatprep.subr.mxu0 0.0
    %3446 = vmatpush1.msra.mxu0 0.0
    %3447 = vmatprep.subr.mxu0 0.0
    %3448 = vmatpush1.msra.mxu0 0.0
    %3449 = vmatprep.subr.mxu0 0.0
    %3450 = vmatpush1.msra.mxu0 0.0
    %3451 = vmatprep.subr.mxu0 0.0
    %3452 = vmatpush1.msra.mxu0 0.0
    %3453 = vmatprep.subr.mxu0 0.0
    %3454 = vmatpush1.msra.mxu0 0.0
    %3455 = vmatprep.subr.mxu0 0.0
    %3456 = vmatpush1.msra.mxu0 0.0
    %3457 = vmatprep.subr.mxu0 0.0
    %3458 = vmatpush1.msra.mxu0 0.0
    %3459 = vmatprep.subr.mxu0 0.0
    %3460 = vmatpush1.msra.mxu0 0.0
    %3461 = vmatprep.subr.mxu0 0.0
    %3462 = vmatpush1.msra.mxu0 0.0
    %3463 = vmatprep.subr.mxu0 0.0
    %3464 = vmatpush1.msra.mxu0 0.0
    %3465 = vmatprep.subr.mxu0 0.0
    %3466 = vmatpush1.msra.mxu0 0.0
    %3467 = vmatprep.subr.mxu0 0.0
    %3468 = vmatpush1.msra.mxu0 0.0
    %3469 = vmatprep.subr.mxu0 0.0
    %3470 = vmatpush1.msra.mxu0 0.0
    %3471 = vmatprep.subr.mxu0 0.0
    %3472 = vmatpush1.msra.mxu0 %v236
    %3473 = vmatprep.subr.mxu0 0.0
    %3474 = vmatpush1.msra.mxu0 %v235
    %3475 = vmatprep.subr.mxu0 0.0
    %3476 = vmatpush2.msra.mxu0 0.0
    %3477 = vmatprep.subr.mxu0 0.0
    %3478 = vmatpush2.msra.mxu0 0.0
    %3479 = vmatprep.subr.mxu0 0.0
    %3480 = vmatpush2.msra.mxu0 0.0
    %3481 = vmatprep.subr.mxu0 0.0
    %3482 = vmatpush2.msra.mxu0 0.0
    %3483 = vmatprep.subr.mxu0 0.0
    %3484 = vmatpush2.msra.mxu0 0.0
    %3485 = vmatprep.subr.mxu0 0.0
    %3486 = vmatpush2.msra.mxu0 0.0
    %3487 = vmatprep.subr.mxu0 0.0
    %3488 = vmatpush2.msra.mxu0 0.0
    %3489 = vmatprep.subr.mxu0 0.0
    %3490 = vmatpush2.msra.mxu0 0.0
    %3491 = vmatprep.subr.mxu0 0.0
    %3492 = vmatpush2.msra.mxu0 0.0
    %3493 = vmatprep.subr.mxu0 0.0
    %3494 = vmatpush2.msra.mxu0 0.0
    %3495 = vmatprep.subr.mxu0 0.0
    %3496 = vmatpush2.msra.mxu0 0.0
    %3497 = vmatprep.subr.mxu0 0.0
    %3498 = vmatpush2.msra.mxu0 0.0
    %3499 = vmatprep.subr.mxu0 0.0
    %3500 = vmatpush2.msra.mxu0 0.0
    %3501 = vmatprep.subr.mxu0 0.0
    %3502 = vmatpush2.msra.mxu0 0.0
    %3503 = vmatprep.subr.mxu0 0.0
    %3504 = vmatpush2.msra.mxu0 0.0
    %3505 = vmatprep.subr.mxu0 0.0
    %3506 = vmatpush2.msra.mxu0 0.0
    %3507 = vmatprep.mubr.f32.mxu0 0.0
    %3508 = vmatmul.mubr.f32.gmra.mxu0 %v3439
    %v3509 = vpop.f32.mrf.mxu0
    %v3510 = vadd.f32 %v2798, %v3509
    %v3511 = vpop.f32.mrf.mxu0
    %3512 = vmatprep.mubr.f32.mxu0 0.0
    %3513 = vmatmul.mubr.f32.gmra.mxu0 %v3441
    %v3514 = vpop.f32.mrf.mxu0
    %v3515 = vadd.f32 %v2803, %v3514
    %v3516 = vpop.f32.mrf.mxu0
    %3517 = vdwg.mxu0
    %v3521 = vrot.slane %v2278, 1
    %v3522 = vrot.slane %v2279, 1
    %v3523 = vsel %vm528, %v3521, %v3522
    %v3524 = vrot.slane %v2280, 1
    %v3525 = vsel %vm528, %v3522, %v3524
    %v3526 = vsel %vm839, %v3523, 0
    %v3528 = vsel %vm839, %v3525, 0
    %3530 = vmatprep.subr.mxu0 0.0
    %3531 = vmatpush1.msra.mxu0 0.0
    %3532 = vmatprep.subr.mxu0 0.0
    %3533 = vmatpush1.msra.mxu0 0.0
    %3534 = vmatprep.subr.mxu0 0.0
    %3535 = vmatpush1.msra.mxu0 0.0
    %3536 = vmatprep.subr.mxu0 0.0
    %3537 = vmatpush1.msra.mxu0 0.0
    %3538 = vmatprep.subr.mxu0 0.0
    %3539 = vmatpush1.msra.mxu0 0.0
    %3540 = vmatprep.subr.mxu0 0.0
    %3541 = vmatpush1.msra.mxu0 0.0
    %3542 = vmatprep.subr.mxu0 0.0
    %3543 = vmatpush1.msra.mxu0 0.0
    %3544 = vmatprep.subr.mxu0 0.0
    %3545 = vmatpush1.msra.mxu0 0.0
    %3546 = vmatprep.subr.mxu0 0.0
    %3547 = vmatpush1.msra.mxu0 0.0
    %3548 = vmatprep.subr.mxu0 0.0
    %3549 = vmatpush1.msra.mxu0 0.0
    %3550 = vmatprep.subr.mxu0 0.0
    %3551 = vmatpush1.msra.mxu0 0.0
    %3552 = vmatprep.subr.mxu0 0.0
    %3553 = vmatpush1.msra.mxu0 0.0
    %3554 = vmatprep.subr.mxu0 0.0
    %3555 = vmatpush1.msra.mxu0 0.0
    %3556 = vmatprep.subr.mxu0 0.0
    %3557 = vmatpush1.msra.mxu0 0.0
    %3558 = vmatprep.subr.mxu0 0.0
    %3559 = vmatpush1.msra.mxu0 %v236
    %3560 = vmatprep.subr.mxu0 0.0
    %3561 = vmatpush1.msra.mxu0 %v235
    %3562 = vmatprep.subr.mxu0 0.0
    %3563 = vmatpush2.msra.mxu0 0.0
    %3564 = vmatprep.subr.mxu0 0.0
    %3565 = vmatpush2.msra.mxu0 0.0
    %3566 = vmatprep.subr.mxu0 0.0
    %3567 = vmatpush2.msra.mxu0 0.0
    %3568 = vmatprep.subr.mxu0 0.0
    %3569 = vmatpush2.msra.mxu0 0.0
    %3570 = vmatprep.subr.mxu0 0.0
    %3571 = vmatpush2.msra.mxu0 0.0
    %3572 = vmatprep.subr.mxu0 0.0
    %3573 = vmatpush2.msra.mxu0 0.0
    %3574 = vmatprep.subr.mxu0 0.0
    %3575 = vmatpush2.msra.mxu0 0.0
    %3576 = vmatprep.subr.mxu0 0.0
    %3577 = vmatpush2.msra.mxu0 0.0
    %3578 = vmatprep.subr.mxu0 0.0
    %3579 = vmatpush2.msra.mxu0 0.0
    %3580 = vmatprep.subr.mxu0 0.0
    %3581 = vmatpush2.msra.mxu0 0.0
    %3582 = vmatprep.subr.mxu0 0.0
    %3583 = vmatpush2.msra.mxu0 0.0
    %3584 = vmatprep.subr.mxu0 0.0
    %3585 = vmatpush2.msra.mxu0 0.0
    %3586 = vmatprep.subr.mxu0 0.0
    %3587 = vmatpush2.msra.mxu0 0.0
    %3588 = vmatprep.subr.mxu0 0.0
    %3589 = vmatpush2.msra.mxu0 0.0
    %3590 = vmatprep.subr.mxu0 0.0
    %3591 = vmatpush2.msra.mxu0 0.0
    %3592 = vmatprep.subr.mxu0 0.0
    %3593 = vmatpush2.msra.mxu0 0.0
    %3594 = vmatprep.mubr.f32.mxu0 0.0
    %3595 = vmatmul.mubr.f32.gmra.mxu0 %v3526
    %v3596 = vpop.f32.mrf.mxu0
    %v3597 = vadd.f32 %v2889, %v3596
    %v3598 = vpop.f32.mrf.mxu0
    %3599 = vmatprep.mubr.f32.mxu0 0.0
    %3600 = vmatmul.mubr.f32.gmra.mxu0 %v3528
    %v3601 = vpop.f32.mrf.mxu0
    %v3602 = vadd.f32 %v2894, %v3601
    %v3603 = vpop.f32.mrf.mxu0
    %3604 = vdwg.mxu0
    %v3608 = vrot.slane %v2281, 1
    %v3609 = vrot.slane %v2282, 1
    %v3610 = vsel %vm528, %v3608, %v3609
    %v3611 = vrot.slane %v2283, 1
    %v3612 = vsel %vm528, %v3609, %v3611
    %v3613 = vsel %vm839, %v3610, 0
    %v3615 = vsel %vm839, %v3612, 0
    %3617 = vmatprep.subr.mxu0 0.0
    %3618 = vmatpush1.msra.mxu0 0.0
    %3619 = vmatprep.subr.mxu0 0.0
    %3620 = vmatpush1.msra.mxu0 0.0
    %3621 = vmatprep.subr.mxu0 0.0
    %3622 = vmatpush1.msra.mxu0 0.0
    %3623 = vmatprep.subr.mxu0 0.0
    %3624 = vmatpush1.msra.mxu0 0.0
    %3625 = vmatprep.subr.mxu0 0.0
    %3626 = vmatpush1.msra.mxu0 0.0
    %3627 = vmatprep.subr.mxu0 0.0
    %3628 = vmatpush1.msra.mxu0 0.0
    %3629 = vmatprep.subr.mxu0 0.0
    %3630 = vmatpush1.msra.mxu0 0.0
    %3631 = vmatprep.subr.mxu0 0.0
    %3632 = vmatpush1.msra.mxu0 0.0
    %3633 = vmatprep.subr.mxu0 0.0
    %3634 = vmatpush1.msra.mxu0 0.0
    %3635 = vmatprep.subr.mxu0 0.0
    %3636 = vmatpush1.msra.mxu0 0.0
    %3637 = vmatprep.subr.mxu0 0.0
    %3638 = vmatpush1.msra.mxu0 0.0
    %3639 = vmatprep.subr.mxu0 0.0
    %3640 = vmatpush1.msra.mxu0 0.0
    %3641 = vmatprep.subr.mxu0 0.0
    %3642 = vmatpush1.msra.mxu0 0.0
    %3643 = vmatprep.subr.mxu0 0.0
    %3644 = vmatpush1.msra.mxu0 0.0
    %3645 = vmatprep.subr.mxu0 0.0
    %3646 = vmatpush1.msra.mxu0 %v236
    %3647 = vmatprep.subr.mxu0 0.0
    %3648 = vmatpush1.msra.mxu0 %v235
    %3649 = vmatprep.subr.mxu0 0.0
    %3650 = vmatpush2.msra.mxu0 0.0
    %3651 = vmatprep.subr.mxu0 0.0
    %3652 = vmatpush2.msra.mxu0 0.0
    %3653 = vmatprep.subr.mxu0 0.0
    %3654 = vmatpush2.msra.mxu0 0.0
    %3655 = vmatprep.subr.mxu0 0.0
    %3656 = vmatpush2.msra.mxu0 0.0
    %3657 = vmatprep.subr.mxu0 0.0
    %3658 = vmatpush2.msra.mxu0 0.0
    %3659 = vmatprep.subr.mxu0 0.0
    %3660 = vmatpush2.msra.mxu0 0.0
    %3661 = vmatprep.subr.mxu0 0.0
    %3662 = vmatpush2.msra.mxu0 0.0
    %3663 = vmatprep.subr.mxu0 0.0
    %3664 = vmatpush2.msra.mxu0 0.0
    %3665 = vmatprep.subr.mxu0 0.0
    %3666 = vmatpush2.msra.mxu0 0.0
    %3667 = vmatprep.subr.mxu0 0.0
    %3668 = vmatpush2.msra.mxu0 0.0
    %3669 = vmatprep.subr.mxu0 0.0
    %3670 = vmatpush2.msra.mxu0 0.0
    %3671 = vmatprep.subr.mxu0 0.0
    %3672 = vmatpush2.msra.mxu0 0.0
    %3673 = vmatprep.subr.mxu0 0.0
    %3674 = vmatpush2.msra.mxu0 0.0
    %3675 = vmatprep.subr.mxu0 0.0
    %3676 = vmatpush2.msra.mxu0 0.0
    %3677 = vmatprep.subr.mxu0 0.0
    %3678 = vmatpush2.msra.mxu0 0.0
    %3679 = vmatprep.subr.mxu0 0.0
    %3680 = vmatpush2.msra.mxu0 0.0
    %3681 = vmatprep.mubr.f32.mxu0 0.0
    %3682 = vmatmul.mubr.f32.gmra.mxu0 %v3613
    %v3683 = vpop.f32.mrf.mxu0
    %v3684 = vadd.f32 %v2980, %v3683
    %v3685 = vpop.f32.mrf.mxu0
    %3686 = vmatprep.mubr.f32.mxu0 0.0
    %3687 = vmatmul.mubr.f32.gmra.mxu0 %v3615
    %v3688 = vpop.f32.mrf.mxu0
    %v3689 = vadd.f32 %v2985, %v3688
    %v3690 = vpop.f32.mrf.mxu0
    %3691 = vdwg.mxu0
    %v3695 = vrot.slane %v2284, 1
    %v3696 = vrot.slane %v2285, 1
    %v3697 = vsel %vm528, %v3695, %v3696
    %v3698 = vrot.slane %v2286, 1
    %v3699 = vsel %vm528, %v3696, %v3698
    %v3700 = vsel %vm839, %v3697, 0
    %v3702 = vsel %vm839, %v3699, 0
    %3704 = vmatprep.subr.mxu0 0.0
    %3705 = vmatpush1.msra.mxu0 0.0
    %3706 = vmatprep.subr.mxu0 0.0
    %3707 = vmatpush1.msra.mxu0 0.0
    %3708 = vmatprep.subr.mxu0 0.0
    %3709 = vmatpush1.msra.mxu0 0.0
    %3710 = vmatprep.subr.mxu0 0.0
    %3711 = vmatpush1.msra.mxu0 0.0
    %3712 = vmatprep.subr.mxu0 0.0
    %3713 = vmatpush1.msra.mxu0 0.0
    %3714 = vmatprep.subr.mxu0 0.0
    %3715 = vmatpush1.msra.mxu0 0.0
    %3716 = vmatprep.subr.mxu0 0.0
    %3717 = vmatpush1.msra.mxu0 0.0
    %3718 = vmatprep.subr.mxu0 0.0
    %3719 = vmatpush1.msra.mxu0 0.0
    %3720 = vmatprep.subr.mxu0 0.0
    %3721 = vmatpush1.msra.mxu0 0.0
    %3722 = vmatprep.subr.mxu0 0.0
    %3723 = vmatpush1.msra.mxu0 0.0
    %3724 = vmatprep.subr.mxu0 0.0
    %3725 = vmatpush1.msra.mxu0 0.0
    %3726 = vmatprep.subr.mxu0 0.0
    %3727 = vmatpush1.msra.mxu0 0.0
    %3728 = vmatprep.subr.mxu0 0.0
    %3729 = vmatpush1.msra.mxu0 0.0
    %3730 = vmatprep.subr.mxu0 0.0
    %3731 = vmatpush1.msra.mxu0 0.0
    %3732 = vmatprep.subr.mxu0 0.0
    %3733 = vmatpush1.msra.mxu0 %v236
    %3734 = vmatprep.subr.mxu0 0.0
    %3735 = vmatpush1.msra.mxu0 %v235
    %3736 = vmatprep.subr.mxu0 0.0
    %3737 = vmatpush2.msra.mxu0 0.0
    %3738 = vmatprep.subr.mxu0 0.0
    %3739 = vmatpush2.msra.mxu0 0.0
    %3740 = vmatprep.subr.mxu0 0.0
    %3741 = vmatpush2.msra.mxu0 0.0
    %3742 = vmatprep.subr.mxu0 0.0
    %3743 = vmatpush2.msra.mxu0 0.0
    %3744 = vmatprep.subr.mxu0 0.0
    %3745 = vmatpush2.msra.mxu0 0.0
    %3746 = vmatprep.subr.mxu0 0.0
    %3747 = vmatpush2.msra.mxu0 0.0
    %3748 = vmatprep.subr.mxu0 0.0
    %3749 = vmatpush2.msra.mxu0 0.0
    %3750 = vmatprep.subr.mxu0 0.0
    %3751 = vmatpush2.msra.mxu0 0.0
    %3752 = vmatprep.subr.mxu0 0.0
    %3753 = vmatpush2.msra.mxu0 0.0
    %3754 = vmatprep.subr.mxu0 0.0
    %3755 = vmatpush2.msra.mxu0 0.0
    %3756 = vmatprep.subr.mxu0 0.0
    %3757 = vmatpush2.msra.mxu0 0.0
    %3758 = vmatprep.subr.mxu0 0.0
    %3759 = vmatpush2.msra.mxu0 0.0
    %3760 = vmatprep.subr.mxu0 0.0
    %3761 = vmatpush2.msra.mxu0 0.0
    %3762 = vmatprep.subr.mxu0 0.0
    %3763 = vmatpush2.msra.mxu0 0.0
    %3764 = vmatprep.subr.mxu0 0.0
    %3765 = vmatpush2.msra.mxu0 0.0
    %3766 = vmatprep.subr.mxu0 0.0
    %3767 = vmatpush2.msra.mxu0 0.0
    %3768 = vmatprep.mubr.f32.mxu0 0.0
    %3769 = vmatmul.mubr.f32.gmra.mxu0 %v3700
    %v3770 = vpop.f32.mrf.mxu0
    %v3771 = vadd.f32 %v3071, %v3770
    %v3772 = vpop.f32.mrf.mxu0
    %3773 = vmatprep.mubr.f32.mxu0 0.0
    %3774 = vmatmul.mubr.f32.gmra.mxu0 %v3702
    %v3775 = vpop.f32.mrf.mxu0
    %v3776 = vadd.f32 %v3076, %v3775
    %v3777 = vpop.f32.mrf.mxu0
    %3778 = vdwg.mxu0
    %v3782 = vrot.slane %v2287, 1
    %v3783 = vrot.slane %v2288, 1
    %v3784 = vsel %vm528, %v3782, %v3783
    %v3785 = vrot.slane %v2289, 1
    %v3786 = vsel %vm528, %v3783, %v3785
    %v3787 = vsel %vm839, %v3784, 0
    %v3789 = vsel %vm839, %v3786, 0
    %3791 = vmatprep.subr.mxu0 0.0
    %3792 = vmatpush1.msra.mxu0 0.0
    %3793 = vmatprep.subr.mxu0 0.0
    %3794 = vmatpush1.msra.mxu0 0.0
    %3795 = vmatprep.subr.mxu0 0.0
    %3796 = vmatpush1.msra.mxu0 0.0
    %3797 = vmatprep.subr.mxu0 0.0
    %3798 = vmatpush1.msra.mxu0 0.0
    %3799 = vmatprep.subr.mxu0 0.0
    %3800 = vmatpush1.msra.mxu0 0.0
    %3801 = vmatprep.subr.mxu0 0.0
    %3802 = vmatpush1.msra.mxu0 0.0
    %3803 = vmatprep.subr.mxu0 0.0
    %3804 = vmatpush1.msra.mxu0 0.0
    %3805 = vmatprep.subr.mxu0 0.0
    %3806 = vmatpush1.msra.mxu0 0.0
    %3807 = vmatprep.subr.mxu0 0.0
    %3808 = vmatpush1.msra.mxu0 0.0
    %3809 = vmatprep.subr.mxu0 0.0
    %3810 = vmatpush1.msra.mxu0 0.0
    %3811 = vmatprep.subr.mxu0 0.0
    %3812 = vmatpush1.msra.mxu0 0.0
    %3813 = vmatprep.subr.mxu0 0.0
    %3814 = vmatpush1.msra.mxu0 0.0
    %3815 = vmatprep.subr.mxu0 0.0
    %3816 = vmatpush1.msra.mxu0 0.0
    %3817 = vmatprep.subr.mxu0 0.0
    %3818 = vmatpush1.msra.mxu0 0.0
    %3819 = vmatprep.subr.mxu0 0.0
    %3820 = vmatpush1.msra.mxu0 %v236
    %3821 = vmatprep.subr.mxu0 0.0
    %3822 = vmatpush1.msra.mxu0 %v235
    %3823 = vmatprep.subr.mxu0 0.0
    %3824 = vmatpush2.msra.mxu0 0.0
    %3825 = vmatprep.subr.mxu0 0.0
    %3826 = vmatpush2.msra.mxu0 0.0
    %3827 = vmatprep.subr.mxu0 0.0
    %3828 = vmatpush2.msra.mxu0 0.0
    %3829 = vmatprep.subr.mxu0 0.0
    %3830 = vmatpush2.msra.mxu0 0.0
    %3831 = vmatprep.subr.mxu0 0.0
    %3832 = vmatpush2.msra.mxu0 0.0
    %3833 = vmatprep.subr.mxu0 0.0
    %3834 = vmatpush2.msra.mxu0 0.0
    %3835 = vmatprep.subr.mxu0 0.0
    %3836 = vmatpush2.msra.mxu0 0.0
    %3837 = vmatprep.subr.mxu0 0.0
    %3838 = vmatpush2.msra.mxu0 0.0
    %3839 = vmatprep.subr.mxu0 0.0
    %3840 = vmatpush2.msra.mxu0 0.0
    %3841 = vmatprep.subr.mxu0 0.0
    %3842 = vmatpush2.msra.mxu0 0.0
    %3843 = vmatprep.subr.mxu0 0.0
    %3844 = vmatpush2.msra.mxu0 0.0
    %3845 = vmatprep.subr.mxu0 0.0
    %3846 = vmatpush2.msra.mxu0 0.0
    %3847 = vmatprep.subr.mxu0 0.0
    %3848 = vmatpush2.msra.mxu0 0.0
    %3849 = vmatprep.subr.mxu0 0.0
    %3850 = vmatpush2.msra.mxu0 0.0
    %3851 = vmatprep.subr.mxu0 0.0
    %3852 = vmatpush2.msra.mxu0 0.0
    %3853 = vmatprep.subr.mxu0 0.0
    %3854 = vmatpush2.msra.mxu0 0.0
    %3855 = vmatprep.mubr.f32.mxu0 0.0
    %3856 = vmatmul.mubr.f32.gmra.mxu0 %v3787
    %v3857 = vpop.f32.mrf.mxu0
    %v3858 = vadd.f32 %v3162, %v3857
    %v3859 = vpop.f32.mrf.mxu0
    %3860 = vmatprep.mubr.f32.mxu0 0.0
    %3861 = vmatmul.mubr.f32.gmra.mxu0 %v3789
    %v3862 = vpop.f32.mrf.mxu0
    %v3863 = vadd.f32 %v3167, %v3862
    %v3864 = vpop.f32.mrf.mxu0
    %3865 = vdwg.mxu0
    %3882 = vrot.lane.b32.xlu0 %v3249, 32
    %v3883 = vpop.permute.xlu0 %3882
    %3884 = vrot.lane.b32.xlu0 %v3254, 32
    %v3885 = vpop.permute.xlu0 %3884
    %3886 = vrot.lane.b32.xlu0 %v3336, 32
    %v3887 = vpop.permute.xlu0 %3886
    %3888 = vrot.lane.b32.xlu0 %v3341, 32
    %v3889 = vpop.permute.xlu0 %3888
    %3890 = vrot.lane.b32.xlu0 %v3423, 32
    %v3891 = vpop.permute.xlu0 %3890
    %3892 = vrot.lane.b32.xlu0 %v3428, 32
    %v3893 = vpop.permute.xlu0 %3892
    %3894 = vrot.lane.b32.xlu0 %v3510, 32
    %v3895 = vpop.permute.xlu0 %3894
    %3896 = vrot.lane.b32.xlu0 %v3515, 32
    %v3897 = vpop.permute.xlu0 %3896
    %3898 = vrot.lane.b32.xlu0 %v3597, 32
    %v3899 = vpop.permute.xlu0 %3898
    %3900 = vrot.lane.b32.xlu0 %v3602, 32
    %v3901 = vpop.permute.xlu0 %3900
    %3902 = vrot.lane.b32.xlu0 %v3684, 32
    %v3903 = vpop.permute.xlu0 %3902
    %3904 = vrot.lane.b32.xlu0 %v3689, 32
    %v3905 = vpop.permute.xlu0 %3904
    %3906 = vrot.lane.b32.xlu0 %v3771, 32
    %v3907 = vpop.permute.xlu0 %3906
    %3908 = vrot.lane.b32.xlu0 %v3776, 32
    %v3909 = vpop.permute.xlu0 %3908
    %3910 = vrot.lane.b32.xlu0 %v3858, 32
    %v3911 = vpop.permute.xlu0 %3910
    %3912 = vrot.lane.b32.xlu0 %v3863, 32
    %v3913 = vpop.permute.xlu0 %3912
    %vm3930 = vcmask 261120
    %v3931 = vsel %vm3930, %v1587, %v3883
    %v3932 = vsel %vm3930, %v1592, %v3885
    %v3933 = vsel %vm3930, %v1668, %v3887
    %v3934 = vsel %vm3930, %v1673, %v3889
    %v3935 = vsel %vm3930, %v1749, %v3891
    %v3936 = vsel %vm3930, %v1754, %v3893
    %v3937 = vsel %vm3930, %v1830, %v3895
    %v3938 = vsel %vm3930, %v1835, %v3897
    %v3939 = vsel %vm3930, %v1911, %v3899
    %v3940 = vsel %vm3930, %v1916, %v3901
    %v3941 = vsel %vm3930, %v1992, %v3903
    %v3942 = vsel %vm3930, %v1997, %v3905
    %v3943 = vsel %vm3930, %v2073, %v3907
    %v3944 = vsel %vm3930, %v2078, %v3909
    %v3945 = vsel %vm3930, %v2154, %v3911
    %v3946 = vsel %vm3930, %v2159, %v3913
    %vm3947 = vcmask 523264
    %3948 = vst.msk [vmem:[#allocation7] sm:$0xff] %vm3947, %v3931
    %3949 = vst.msk [vmem:[#allocation7 + $0x8] sm:$0xff] %vm3947, %v3932
    %3950 = vst.msk [vmem:[#allocation7 + $0x10] sm:$0xff] %vm3947, %v3933
    %3951 = vst.msk [vmem:[#allocation7 + $0x18] sm:$0xff] %vm3947, %v3934
    %3952 = vst.msk [vmem:[#allocation7 + $0x20] sm:$0xff] %vm3947, %v3935
    %3953 = vst.msk [vmem:[#allocation7 + $0x28] sm:$0xff] %vm3947, %v3936
    %3954 = vst.msk [vmem:[#allocation7 + $0x30] sm:$0xff] %vm3947, %v3937
    %3955 = vst.msk [vmem:[#allocation7 + $0x38] sm:$0xff] %vm3947, %v3938
    %3956 = vst.msk [vmem:[#allocation7 + $0x40] sm:$0xff] %vm3947, %v3939
    %3957 = vst.msk [vmem:[#allocation7 + $0x48] sm:$0xff] %vm3947, %v3940
    %3958 = vst.msk [vmem:[#allocation7 + $0x50] sm:$0xff] %vm3947, %v3941
    %3959 = vst.msk [vmem:[#allocation7 + $0x58] sm:$0xff] %vm3947, %v3942
    %3960 = vst.msk [vmem:[#allocation7 + $0x60] sm:$0xff] %vm3947, %v3943
    %3961 = vst.msk [vmem:[#allocation7 + $0x68] sm:$0xff] %vm3947, %v3944
    %3962 = vst.msk [vmem:[#allocation7 + $0x70] sm:$0xff] %vm3947, %v3945
    %3963 = vst.msk [vmem:[#allocation7 + $0x78] sm:$0xff] %vm3947, %v3946
    // Predicated region
    $region18: #{tpu_custom_call.1} parent=1 // pred_check
      _
    $region19: #{tpu_custom_call.1} parent=1 // pred_check_branch
      %3965 = sbr.rel (0) target = $region21
    $region20: #{tpu_custom_call.1} parent=1 // pred_region
      %s3967 = ssub.s32 2048, 2048
      %3968 = vsyncadd [#allocation4], %s3967
      %s3969 = sshll.u32 [#allocation7], 4
      %s3970 = int_to_ptr.vmem [resolvable:$true] %s3969
      %3975 = dma.vmem_to_hbm [thread:$0]  %s3970, 2048, %s2, [#allocation4], 128, 128, 8
    $region21: #{tpu_custom_call.1} parent=1 // pred_fallthru
      _
    // Predicated region
    $region22: #{tpu_custom_call.1} parent=1 // pred_check
      _
    $region23: #{tpu_custom_call.1} parent=1 // pred_check_branch
      %3977 = sbr.rel (0) target = $region25
    $region24: #{tpu_custom_call.1} parent=1 // pred_region
      %3978 = dma.done [#allocation4], 2048
    $region25: #{tpu_custom_call.1} parent=1 // pred_fallthru
      _
    %3979 = vsyncpa [#allocation3], 1
    %3980 = vsyncpa [#allocation6], 1
    %3981 = vsyncpa [#allocation4], 1

</llo_original>
